<compile_context>
chip_gen: v7x
topology: tpu7x:2x2x1
jax: 0.10.0
libtpu: 0.0.40
codegen_flags: <defaults>
</compile_context>

<pallas_src>
import functools

import jax
import jax.numpy as jnp
from jax.experimental import pallas as pl
from jax.experimental.pallas import tpu as pltpu


# --------------------------------------------------------------------------- #
# Phase A: fusion1 (bias folded out) + running global sum/max pooling.
# Grid: (B, n_splits, n_t_split). The last axis is the "arbitrary" reduction
# axis; the n_splits axis is "parallel" so both v7x TensorCores are busy even
# when B == 1. The pooling accumulators live directly in the resident outputs.
# --------------------------------------------------------------------------- #
def pool_kernel(sar_ref, opt_ref, w1a_ref, w1b_ref, sum_ref, max_ref):
    t = pl.program_id(2)

    @pl.when(t == 0)
    def _init():
        sum_ref[...] = jnp.zeros_like(sum_ref)
        max_ref[...] = jnp.full_like(max_ref, -jnp.inf)

    # fusion1: two K=C MXU dots accumulated in f32 (== one K=2C dot on the
    # concatenated input, without ever materializing the concat in HBM).
    fea_u = jnp.dot(sar_ref[0].astype(jnp.bfloat16), w1a_ref[...],
                    preferred_element_type=jnp.float32)
    fea_u = fea_u + jnp.dot(opt_ref[0].astype(jnp.bfloat16), w1b_ref[...],
                            preferred_element_type=jnp.float32)   # (tile_hw, C) f32

    sum_ref[0, 0] = sum_ref[0, 0] + jnp.sum(fea_u, axis=0, keepdims=True)
    max_ref[0, 0] = jnp.maximum(max_ref[0, 0], jnp.max(fea_u, axis=0, keepdims=True))


# --------------------------------------------------------------------------- #
# Phase B: gated fusion2. The per-image channel gate is pre-folded into the two
# fusion2 weight halves, so the body is two K=C MXU dots + bias per HW tile
# (no O(HW*C) VPU gating of the activations).
# --------------------------------------------------------------------------- #
def fusion2_kernel(sar_ref, opt_ref, w2a_ref, w2b_ref, b2_ref, out_ref):
    acc = jnp.dot(sar_ref[0].astype(jnp.bfloat16), w2a_ref[0],
                  preferred_element_type=jnp.float32)
    acc = acc + jnp.dot(opt_ref[0].astype(jnp.bfloat16), w2b_ref[0],
                        preferred_element_type=jnp.float32)
    out_ref[0] = (acc + b2_ref[...]).astype(out_ref.dtype)


def _vmem_limit(tile_bytes):
    """Generation-aware scoped-VMEM limit: grow with the tile, respect the chip."""
    try:
        cap = int(pltpu.get_tpu_info().vmem_capacity_bytes)
    except Exception:
        cap = 64 * 1024 * 1024            # conservative fallback (v7x per-TC VMEM)
    want = max(4 * tile_bytes, 16 * 1024 * 1024)
    return int(min(want, int(0.70 * cap)))


def make_params(key, channels, out_ch, reduction=16):
    C = channels
    hidden = max(C // reduction, 1)
    ks = jax.random.split(key, 6)
    s = 0.1
    # weights stored directly in matmul layout (C_in, C_out)
    w1 = s * jax.random.normal(ks[0], (2 * C, C), jnp.float32)        # fusion1
    b1 = s * jax.random.normal(ks[1], (1, C), jnp.float32)
    wg1 = s * jax.random.normal(ks[2], (C, hidden), jnp.float32)      # gate[0] (no bias)
    wg2 = s * jax.random.normal(ks[3], (hidden, 2 * C), jnp.float32)  # gate[2] (no bias)
    w2 = s * jax.random.normal(ks[4], (2 * C, out_ch), jnp.float32)   # fusion2
    b2 = s * jax.random.normal(ks[5], (1, out_ch), jnp.float32)
    return (w1, b1, wg1, wg2, w2, b2)


def sagate_pallas(sar, opt, params, *, tile_hw=512, out_dtype=jnp.float32):
    """SAGate forward.

    sar, opt: (B, H, W, C) channels-last float32 (keep activations NHWC upstream so
    every 1x1 conv is a lane-aligned matmul with no NCHW<->NHWC HBM round trips).
    Returns (B, H, W, out_ch) in `out_dtype` (pass jnp.bfloat16 to halve writeback).
    """
    w1, b1, wg1, wg2, w2, b2 = params
    B, H, W, C = sar.shape
    HW = H * W
    out_ch = w2.shape[1]

    # Fail loudly on layouts that would silently take masked-store / padded paths.
    assert C % 128 == 0, "channels must be a multiple of 128 (lane dim)"
    assert out_ch % 128 == 0, "out_ch must be a multiple of 128 (lane dim)"

    tile_hw = min(tile_hw, HW)
    assert HW % tile_hw == 0 and tile_hw % 8 == 0, \
        "H*W must be divisible by tile_hw and tile_hw by 8"
    n_t = HW // tile_hw
    # Split the phase-A reduction over two parallel slots when possible (v7x: 2 TCs).
    n_splits = 2 if (n_t % 2 == 0 and n_t >= 2) else 1
    n_t_split = n_t // n_splits

    sar2 = sar.reshape(B, HW, C)           # free reshapes; no concat / cast pass
    opt2 = opt.reshape(B, HW, C)

    # fusion1 weight split into the sar / opt K=C halves (bf16 MXU operands).
    w1a = w1[:C].astype(jnp.bfloat16)
    w1b = w1[C:].astype(jnp.bfloat16)

    # ---------------- phase A: global sum/max pooling of fusion1 ------------- #
    bytes_a = (2 * (2 * tile_hw * C * 4)       # sar + opt tiles, double-buffered f32
               + 2 * (2 * C * C * 2)           # w1 halves, double-buffered bf16
               + tile_hw * C * 4               # fea_u intermediate f32
               + 8 * C * 4)                    # tiny pooling outputs
    sum_out, max_out = pl.pallas_call(
        pool_kernel,
        out_shape=(jax.ShapeDtypeStruct((B, n_splits, 1, C), jnp.float32),
                   jax.ShapeDtypeStruct((B, n_splits, 1, C), jnp.float32)),
        grid=(B, n_splits, n_t_split),
        in_specs=[
            pl.BlockSpec((1, tile_hw, C), lambda b, s, t: (b, s * n_t_split + t, 0)),
            pl.BlockSpec((1, tile_hw, C), lambda b, s, t: (b, s * n_t_split + t, 0)),
            pl.BlockSpec((C, C), lambda b, s, t: (0, 0)),
            pl.BlockSpec((C, C), lambda b, s, t: (0, 0)),
        ],
        out_specs=(pl.BlockSpec((1, 1, 1, C), lambda b, s, t: (b, s, 0, 0)),
                   pl.BlockSpec((1, 1, 1, C), lambda b, s, t: (b, s, 0, 0))),
        compiler_params=pltpu.CompilerParams(
            dimension_semantics=("parallel", "parallel", "arbitrary"),
            vmem_limit_bytes=_vmem_limit(bytes_a)),
    )(sar2, opt2, w1a, w1b)

    # ------ per-image combine: pool merge + gate MLP + softmax + gate fold ------ #
    # Tiny O(C*out_ch) work per image; fused XLA here keeps the kernels simple and
    # allows the phase-A reduction to be split across TensorCores.
    pooled = (jnp.sum(sum_out[:, :, 0, :], axis=1) * (1.0 / HW)
              + jnp.max(max_out[:, :, 0, :], axis=1)
              + 2.0 * b1)                                   # (B, C); b1 via mean + max
    hid = jnp.maximum(pooled @ wg1, 0.0)                    # (B, hidden)
    logits = hid @ wg2                                      # (B, 2C)
    att = jax.nn.softmax(logits.reshape(B, 2, C), axis=1)   # exact pairwise softmax
    # Fold the channel gate into the fusion2 weight halves (bf16 MXU operands)
    # instead of scaling O(HW*C) activations on the VPU.
    w2a = (att[:, 0, :, None] * w2[None, :C, :]).astype(jnp.bfloat16)   # (B, C, out_ch)
    w2b = (att[:, 1, :, None] * w2[None, C:, :]).astype(jnp.bfloat16)   # (B, C, out_ch)

    # ---------------- phase B: gated fusion2 per HW tile (fully parallel) -------- #
    bytes_b = (2 * (2 * tile_hw * C * 4)                    # sar + opt tiles f32
               + 2 * (2 * C * out_ch * 2)                   # folded weight halves bf16
               + 2 * tile_hw * out_ch * jnp.dtype(out_dtype).itemsize
               + tile_hw * out_ch * 4)                      # f32 accumulator
    out = pl.pallas_call(
        fusion2_kernel,
        out_shape=jax.ShapeDtypeStruct((B, HW, out_ch), out_dtype),
        grid=(B, n_t),
        in_specs=[
            pl.BlockSpec((1, tile_hw, C), lambda b, t: (b, t, 0)),
            pl.BlockSpec((1, tile_hw, C), lambda b, t: (b, t, 0)),
            pl.BlockSpec((1, C, out_ch), lambda b, t: (b, 0, 0)),
            pl.BlockSpec((1, C, out_ch), lambda b, t: (b, 0, 0)),
            pl.BlockSpec((1, out_ch), lambda b, t: (0, 0)),
        ],
        out_specs=pl.BlockSpec((1, tile_hw, out_ch), lambda b, t: (b, t, 0)),
        compiler_params=pltpu.CompilerParams(
            dimension_semantics=("parallel", "parallel"),
            vmem_limit_bytes=_vmem_limit(bytes_b)),
    )(sar2, opt2, w2a, w2b, b2)

    return out.reshape(B, H, W, out_ch)


def sagate_ref(sar, opt, params):
    """Pure-JAX f32 reference with the exact PyTorch-module semantics (channels-last)."""
    w1, b1, wg1, wg2, w2, b2 = params
    B, H, W, C = sar.shape
    x = jnp.concatenate([sar, opt], axis=-1).reshape(B, H * W, 2 * C)
    fea_u = x @ w1 + b1
    fea_s = fea_u.mean(axis=1, keepdims=True) + fea_u.max(axis=1, keepdims=True)
    logits = jnp.maximum(fea_s @ wg1, 0.0) @ wg2                 # (B, 1, 2C)
    att = jax.nn.softmax(logits.reshape(B, 2, C), axis=1)        # pairwise softmax
    gate = att.reshape(B, 1, 2 * C)                              # [sar-gate | opt-gate]
    out = (x * gate) @ w2 + b2
    return out.reshape(B, H, W, -1)


if __name__ == "__main__":
    # Small but lane-dense shapes: C and out_ch multiples of 128, hidden = C//16 = 8.
    B, C, H, W = 2, 128, 32, 32
    reduction, out_ch = 16, 128

    key = jax.random.PRNGKey(0)
    k_sar, k_opt, k_par = jax.random.split(key, 3)
    sar = jax.random.normal(k_sar, (B, H, W, C), jnp.float32)    # channels-last
    opt = jax.random.normal(k_opt, (B, H, W, C), jnp.float32)
    params = make_params(k_par, C, out_ch, reduction)

    fwd = jax.jit(functools.partial(sagate_pallas, tile_hw=512))
    out = fwd(sar, opt, params)
    jax.block_until_ready(out)

    ref = sagate_ref(sar, opt, params)
    assert out.shape == (B, H, W, out_ch)
    # bf16 MXU operands vs. full-f32 reference -> tolerance sized for bf16 rounding.
    assert jnp.allclose(out, ref, rtol=5e-2, atol=5e-2), "mismatch vs reference"

    print("KERNEL_OK")
</pallas_src>

<mosaic_0001>
module attributes {stable_mosaic.version = 11 : i64} {
  func.func @pool_kernel(%arg0: i32, %arg1: i32, %arg2: i32, %arg3: memref<1x512x128xf32, #tpu.memory_space<vmem>>, %arg4: memref<1x512x128xf32, #tpu.memory_space<vmem>>, %arg5: memref<128x128xbf16, #tpu.memory_space<vmem>>, %arg6: memref<128x128xbf16, #tpu.memory_space<vmem>>, %arg7: memref<1x1x1x128xf32, #tpu.memory_space<vmem>>, %arg8: memref<1x1x1x128xf32, #tpu.memory_space<vmem>>) attributes {dimension_semantics = [#tpu.dimension_semantics<parallel>, #tpu.dimension_semantics<parallel>, #tpu.dimension_semantics<arbitrary>], iteration_bounds = array<i64: 2, 2, 1>, scalar_prefetch = 0 : i64, scratch_operands = 0 : i64, tpu.core_type = #tpu.core_type<tc>, window_params = [{transform_indices = @transform_0, window_bounds = array<i64: 1, 512, 128>}, {transform_indices = @transform_1, window_bounds = array<i64: 1, 512, 128>}, {pipeline_mode = #tpu.pipeline_mode<synchronous>, transform_indices = @transform_2, window_bounds = array<i64: 128, 128>}, {pipeline_mode = #tpu.pipeline_mode<synchronous>, transform_indices = @transform_3, window_bounds = array<i64: 128, 128>}, {transform_indices = @transform_4, window_bounds = array<i64: 1, 1, 1, 128>}, {transform_indices = @transform_5, window_bounds = array<i64: 1, 1, 1, 128>}]} {
    %c0_i32 = arith.constant 0 : i32
    %0 = arith.cmpi eq, %arg2, %c0_i32 : i32
    %1 = arith.extui %0 : i1 to i32
    %c0_i32_0 = arith.constant 0 : i32
    %2 = arith.cmpi ne, %1, %c0_i32_0 : i32
    scf.if %2 {
      %cst_29 = arith.constant 0.000000e+00 : f32
      %30 = vector.broadcast %cst_29 : f32 to vector<1x1x1x128xf32>
      %c0_30 = arith.constant 0 : index
      %c0_31 = arith.constant 0 : index
      %c0_32 = arith.constant 0 : index
      %c0_33 = arith.constant 0 : index
      %31 = vector.load %arg7[%c0_30, %c0_31, %c0_32, %c0_33] : memref<1x1x1x128xf32, #tpu.memory_space<vmem>>, vector<1x1x1x128xf32>
      tpu.vector_store %arg7[%c0_30, %c0_31, %c0_32, %c0_33], %30 {strides = array<i32>} : memref<1x1x1x128xf32, #tpu.memory_space<vmem>>, vector<1x1x1x128xf32>,
      %cst_34 = arith.constant 0xFF800000 : f32
      %32 = vector.broadcast %cst_34 : f32 to vector<1x1x1x128xf32>
      %c0_35 = arith.constant 0 : index
      %c0_36 = arith.constant 0 : index
      %c0_37 = arith.constant 0 : index
      %c0_38 = arith.constant 0 : index
      %33 = vector.load %arg8[%c0_35, %c0_36, %c0_37, %c0_38] : memref<1x1x1x128xf32, #tpu.memory_space<vmem>>, vector<1x1x1x128xf32>
      tpu.vector_store %arg8[%c0_35, %c0_36, %c0_37, %c0_38], %32 {strides = array<i32>} : memref<1x1x1x128xf32, #tpu.memory_space<vmem>>, vector<1x1x1x128xf32>,
    } else {
    }
    %c0 = arith.constant 0 : index
    %c0_1 = arith.constant 0 : index
    %c0_2 = arith.constant 0 : index
    %3 = vector.load %arg3[%c0, %c0_1, %c0_2] : memref<1x512x128xf32, #tpu.memory_space<vmem>>, vector<1x512x128xf32>
    %4 = vector.shape_cast %3 : vector<1x512x128xf32> to vector<512x128xf32>
    %5 = arith.truncf %4 : vector<512x128xf32> to vector<512x128xbf16>
    %c0_3 = arith.constant 0 : index
    %c0_4 = arith.constant 0 : index
    %6 = vector.load %arg5[%c0_3, %c0_4] : memref<128x128xbf16, #tpu.memory_space<vmem>>, vector<128x128xbf16>
    %cst = arith.constant dense<0.000000e+00> : vector<512x128xf32>
    %7 = tpu.matmul %5, %6, %cst {dimension_numbers = #tpu.dot_dimension_numbers<[1], [0], [0], [1], [0, 0, 1, 1], [], []>} : vector<512x128xbf16>, vector<128x128xbf16>, vector<512x128xf32> -> vector<512x128xf32>
    %c0_5 = arith.constant 0 : index
    %c0_6 = arith.constant 0 : index
    %c0_7 = arith.constant 0 : index
    %8 = vector.load %arg4[%c0_5, %c0_6, %c0_7] : memref<1x512x128xf32, #tpu.memory_space<vmem>>, vector<1x512x128xf32>
    %9 = vector.shape_cast %8 : vector<1x512x128xf32> to vector<512x128xf32>
    %10 = arith.truncf %9 : vector<512x128xf32> to vector<512x128xbf16>
    %c0_8 = arith.constant 0 : index
    %c0_9 = arith.constant 0 : index
    %11 = vector.load %arg6[%c0_8, %c0_9] : memref<128x128xbf16, #tpu.memory_space<vmem>>, vector<128x128xbf16>
    %cst_10 = arith.constant dense<0.000000e+00> : vector<512x128xf32>
    %12 = tpu.matmul %10, %11, %cst_10 {dimension_numbers = #tpu.dot_dimension_numbers<[1], [0], [0], [1], [0, 0, 1, 1], [], []>} : vector<512x128xbf16>, vector<128x128xbf16>, vector<512x128xf32> -> vector<512x128xf32>
    %13 = arith.addf %7, %12 : vector<512x128xf32>
    %c0_11 = arith.constant 0 : index
    %c0_12 = arith.constant 0 : index
    %c0_13 = arith.constant 0 : index
    %c0_14 = arith.constant 0 : index
    %14 = vector.load %arg7[%c0_11, %c0_12, %c0_13, %c0_14] : memref<1x1x1x128xf32, #tpu.memory_space<vmem>>, vector<1x1x1x128xf32>
    %15 = vector.shape_cast %14 : vector<1x1x1x128xf32> to vector<1x128xf32>
    %cst_15 = arith.constant dense<0.000000e+00> : vector<128xf32>
    %16 = vector.multi_reduction <add>, %13, %cst_15 [0] : vector<512x128xf32> to vector<128xf32>
    %17 = vector.shape_cast %16 : vector<128xf32> to vector<1x128xf32>
    %18 = arith.addf %15, %17 : vector<1x128xf32>
    %c0_16 = arith.constant 0 : index
    %c0_17 = arith.constant 0 : index
    %c0_18 = arith.constant 0 : index
    %c0_19 = arith.constant 0 : index
    %19 = vector.load %arg7[%c0_16, %c0_17, %c0_18, %c0_19] : memref<1x1x1x128xf32, #tpu.memory_space<vmem>>, vector<1x1x1x128xf32>
    %20 = vector.shape_cast %19 : vector<1x1x1x128xf32> to vector<1x128xf32>
    %21 = vector.shape_cast %18 : vector<1x128xf32> to vector<1x1x1x128xf32>
    tpu.vector_store %arg7[%c0_16, %c0_17, %c0_18, %c0_19], %21 {strides = array<i32>} : memref<1x1x1x128xf32, #tpu.memory_space<vmem>>, vector<1x1x1x128xf32>,
    %c0_20 = arith.constant 0 : index
    %c0_21 = arith.constant 0 : index
    %c0_22 = arith.constant 0 : index
    %c0_23 = arith.constant 0 : index
    %22 = vector.load %arg8[%c0_20, %c0_21, %c0_22, %c0_23] : memref<1x1x1x128xf32, #tpu.memory_space<vmem>>, vector<1x1x1x128xf32>
    %23 = vector.shape_cast %22 : vector<1x1x1x128xf32> to vector<1x128xf32>
    %cst_24 = arith.constant dense<0xFF800000> : vector<128xf32>
    %24 = vector.multi_reduction <maximumf>, %13, %cst_24 [0] : vector<512x128xf32> to vector<128xf32>
    %25 = vector.shape_cast %24 : vector<128xf32> to vector<1x128xf32>
    %26 = arith.maximumf %23, %25 : vector<1x128xf32>
    %c0_25 = arith.constant 0 : index
    %c0_26 = arith.constant 0 : index
    %c0_27 = arith.constant 0 : index
    %c0_28 = arith.constant 0 : index
    %27 = vector.load %arg8[%c0_25, %c0_26, %c0_27, %c0_28] : memref<1x1x1x128xf32, #tpu.memory_space<vmem>>, vector<1x1x1x128xf32>
    %28 = vector.shape_cast %27 : vector<1x1x1x128xf32> to vector<1x128xf32>
    %29 = vector.shape_cast %26 : vector<1x128xf32> to vector<1x1x1x128xf32>
    tpu.vector_store %arg8[%c0_25, %c0_26, %c0_27, %c0_28], %29 {strides = array<i32>} : memref<1x1x1x128xf32, #tpu.memory_space<vmem>>, vector<1x1x1x128xf32>,
    return
  }
  func.func @transform_0(%arg0: i32, %arg1: i32, %arg2: i32) -> (i32, i32, i32) {
    %c1_i32 = arith.constant 1 : i32
    %0 = arith.muli %arg1, %c1_i32 : i32
    %1 = arith.addi %0, %arg2 : i32
    %c0_i32 = arith.constant 0 : i32
    %c0_i32_0 = arith.constant 0 : i32
    return %arg0, %1, %c0_i32 : i32, i32, i32
  }
  func.func @transform_1(%arg0: i32, %arg1: i32, %arg2: i32) -> (i32, i32, i32) {
    %c1_i32 = arith.constant 1 : i32
    %0 = arith.muli %arg1, %c1_i32 : i32
    %1 = arith.addi %0, %arg2 : i32
    %c0_i32 = arith.constant 0 : i32
    %c0_i32_0 = arith.constant 0 : i32
    return %arg0, %1, %c0_i32 : i32, i32, i32
  }
  func.func @transform_2(%arg0: i32, %arg1: i32, %arg2: i32) -> (i32, i32) {
    %c0_i32 = arith.constant 0 : i32
    %c0_i32_0 = arith.constant 0 : i32
    %c0_i32_1 = arith.constant 0 : i32
    return %c0_i32, %c0_i32_0 : i32, i32
  }
  func.func @transform_3(%arg0: i32, %arg1: i32, %arg2: i32) -> (i32, i32) {
    %c0_i32 = arith.constant 0 : i32
    %c0_i32_0 = arith.constant 0 : i32
    %c0_i32_1 = arith.constant 0 : i32
    return %c0_i32, %c0_i32_0 : i32, i32
  }
  func.func @transform_4(%arg0: i32, %arg1: i32, %arg2: i32) -> (i32, i32, i32, i32) {
    %c0_i32 = arith.constant 0 : i32
    %c0_i32_0 = arith.constant 0 : i32
    %c0_i32_1 = arith.constant 0 : i32
    return %arg0, %arg1, %c0_i32, %c0_i32_0 : i32, i32, i32, i32
  }
  func.func @transform_5(%arg0: i32, %arg1: i32, %arg2: i32) -> (i32, i32, i32, i32) {
    %c0_i32 = arith.constant 0 : i32
    %c0_i32_0 = arith.constant 0 : i32
    %c0_i32_1 = arith.constant 0 : i32
    return %arg0, %arg1, %c0_i32, %c0_i32_0 : i32, i32, i32, i32
  }
}

module attributes {stable_mosaic.version = 11 : i64} {
  func.func @fusion2_kernel(%arg0: i32, %arg1: i32, %arg2: memref<1x512x128xf32, #tpu.memory_space<vmem>>, %arg3: memref<1x512x128xf32, #tpu.memory_space<vmem>>, %arg4: memref<1x128x128xbf16, #tpu.memory_space<vmem>>, %arg5: memref<1x128x128xbf16, #tpu.memory_space<vmem>>, %arg6: memref<1x128xf32, #tpu.memory_space<vmem>>, %arg7: memref<1x512x128xf32, #tpu.memory_space<vmem>>) attributes {dimension_semantics = [#tpu.dimension_semantics<parallel>, #tpu.dimension_semantics<parallel>], iteration_bounds = array<i64: 2, 2>, scalar_prefetch = 0 : i64, scratch_operands = 0 : i64, tpu.core_type = #tpu.core_type<tc>, window_params = [{transform_indices = @transform_0, window_bounds = array<i64: 1, 512, 128>}, {transform_indices = @transform_1, window_bounds = array<i64: 1, 512, 128>}, {transform_indices = @transform_2, window_bounds = array<i64: 1, 128, 128>}, {transform_indices = @transform_3, window_bounds = array<i64: 1, 128, 128>}, {pipeline_mode = #tpu.pipeline_mode<synchronous>, transform_indices = @transform_4, window_bounds = array<i64: 1, 128>}, {transform_indices = @transform_5, window_bounds = array<i64: 1, 512, 128>}]} {
    %c0 = arith.constant 0 : index
    %c0_0 = arith.constant 0 : index
    %c0_1 = arith.constant 0 : index
    %0 = vector.load %arg2[%c0, %c0_0, %c0_1] : memref<1x512x128xf32, #tpu.memory_space<vmem>>, vector<1x512x128xf32>
    %1 = vector.shape_cast %0 : vector<1x512x128xf32> to vector<512x128xf32>
    %2 = arith.truncf %1 : vector<512x128xf32> to vector<512x128xbf16>
    %c0_2 = arith.constant 0 : index
    %c0_3 = arith.constant 0 : index
    %c0_4 = arith.constant 0 : index
    %3 = vector.load %arg4[%c0_2, %c0_3, %c0_4] : memref<1x128x128xbf16, #tpu.memory_space<vmem>>, vector<1x128x128xbf16>
    %4 = vector.shape_cast %3 : vector<1x128x128xbf16> to vector<128x128xbf16>
    %cst = arith.constant dense<0.000000e+00> : vector<512x128xf32>
    %5 = tpu.matmul %2, %4, %cst {dimension_numbers = #tpu.dot_dimension_numbers<[1], [0], [0], [1], [0, 0, 1, 1], [], []>} : vector<512x128xbf16>, vector<128x128xbf16>, vector<512x128xf32> -> vector<512x128xf32>
    %c0_5 = arith.constant 0 : index
    %c0_6 = arith.constant 0 : index
    %c0_7 = arith.constant 0 : index
    %6 = vector.load %arg3[%c0_5, %c0_6, %c0_7] : memref<1x512x128xf32, #tpu.memory_space<vmem>>, vector<1x512x128xf32>
    %7 = vector.shape_cast %6 : vector<1x512x128xf32> to vector<512x128xf32>
    %8 = arith.truncf %7 : vector<512x128xf32> to vector<512x128xbf16>
    %c0_8 = arith.constant 0 : index
    %c0_9 = arith.constant 0 : index
    %c0_10 = arith.constant 0 : index
    %9 = vector.load %arg5[%c0_8, %c0_9, %c0_10] : memref<1x128x128xbf16, #tpu.memory_space<vmem>>, vector<1x128x128xbf16>
    %10 = vector.shape_cast %9 : vector<1x128x128xbf16> to vector<128x128xbf16>
    %cst_11 = arith.constant dense<0.000000e+00> : vector<512x128xf32>
    %11 = tpu.matmul %8, %10, %cst_11 {dimension_numbers = #tpu.dot_dimension_numbers<[1], [0], [0], [1], [0, 0, 1, 1], [], []>} : vector<512x128xbf16>, vector<128x128xbf16>, vector<512x128xf32> -> vector<512x128xf32>
    %12 = arith.addf %5, %11 : vector<512x128xf32>
    %c0_12 = arith.constant 0 : index
    %c0_13 = arith.constant 0 : index
    %13 = vector.load %arg6[%c0_12, %c0_13] : memref<1x128xf32, #tpu.memory_space<vmem>>, vector<1x128xf32>
    %14 = vector.broadcast %13 : vector<1x128xf32> to vector<512x128xf32>
    %15 = arith.addf %12, %14 : vector<512x128xf32>
    %c0_14 = arith.constant 0 : index
    %c0_15 = arith.constant 0 : index
    %c0_16 = arith.constant 0 : index
    %16 = vector.load %arg7[%c0_14, %c0_15, %c0_16] : memref<1x512x128xf32, #tpu.memory_space<vmem>>, vector<1x512x128xf32>
    %17 = vector.shape_cast %16 : vector<1x512x128xf32> to vector<512x128xf32>
    %18 = vector.shape_cast %15 : vector<512x128xf32> to vector<1x512x128xf32>
    tpu.vector_store %arg7[%c0_14, %c0_15, %c0_16], %18 {strides = array<i32>} : memref<1x512x128xf32, #tpu.memory_space<vmem>>, vector<1x512x128xf32>,
    return
  }
  func.func @transform_0(%arg0: i32, %arg1: i32) -> (i32, i32, i32) {
    %c0_i32 = arith.constant 0 : i32
    %c0_i32_0 = arith.constant 0 : i32
    return %arg0, %arg1, %c0_i32 : i32, i32, i32
  }
  func.func @transform_1(%arg0: i32, %arg1: i32) -> (i32, i32, i32) {
    %c0_i32 = arith.constant 0 : i32
    %c0_i32_0 = arith.constant 0 : i32
    return %arg0, %arg1, %c0_i32 : i32, i32, i32
  }
  func.func @transform_2(%arg0: i32, %arg1: i32) -> (i32, i32, i32) {
    %c0_i32 = arith.constant 0 : i32
    %c0_i32_0 = arith.constant 0 : i32
    %c0_i32_1 = arith.constant 0 : i32
    return %arg0, %c0_i32, %c0_i32_0 : i32, i32, i32
  }
  func.func @transform_3(%arg0: i32, %arg1: i32) -> (i32, i32, i32) {
    %c0_i32 = arith.constant 0 : i32
    %c0_i32_0 = arith.constant 0 : i32
    %c0_i32_1 = arith.constant 0 : i32
    return %arg0, %c0_i32, %c0_i32_0 : i32, i32, i32
  }
  func.func @transform_4(%arg0: i32, %arg1: i32) -> (i32, i32) {
    %c0_i32 = arith.constant 0 : i32
    %c0_i32_0 = arith.constant 0 : i32
    %c0_i32_1 = arith.constant 0 : i32
    return %c0_i32, %c0_i32_0 : i32, i32
  }
  func.func @transform_5(%arg0: i32, %arg1: i32) -> (i32, i32, i32) {
    %c0_i32 = arith.constant 0 : i32
    %c0_i32_0 = arith.constant 0 : i32
    return %arg0, %arg1, %c0_i32 : i32, i32, i32
  }
}

</mosaic_0001>

<llo_original>
// kernel: sagate_pallas.2
$region0: #{sagate_pallas.2}
  #allocation0 [shape = 'u32[]', space=smem, size = 0x4, offset = 0x4, fixed_abs, tag = 'smem constant byte address 0x4 - core index']
  #allocation1 [shape = 'u32[144,128]{1,0:T(1,128)}', space=vmem, size = 0x12000, scoped, tag = 'internal scratch']
  %s0 = inlined_call_operand.hbm [shape: f32[2,1024,128], index: 0, kind: input, shape index: {}]
  %s1 = inlined_call_operand.hbm [shape: f32[2,1024,128], index: 1, kind: input, shape index: {}]
  %s2 = inlined_call_operand.vmem [shape: bf16[128,128], index: 2, kind: input, shape index: {}]
  %s3 = inlined_call_operand.vmem [shape: bf16[128,128], index: 3, kind: input, shape index: {}]
  %s4 = inlined_call_operand.vmem [shape: f32[2,2,1,128], index: 4, kind: output, shape index: {0}]
  %s5 = inlined_call_operand.vmem [shape: f32[2,2,1,128], index: 5, kind: output, shape index: {1}]
  %6 = xla_tuple %s4, %s5
  %s7 = sld [smem:[#allocation0]]
  $region69: #{sagate_pallas.2} parent=0
    _
  %s9 = ssub.s32 1, %s7
  %s10 = scalar_select 0, %s9, %s7
  $region1: #{sagate_pallas.2} parent=0
    #allocation2 [shape = 'u8[524288]{0}', space=vmem, size = 0x80000, scoped, tag = 'input window, operand 0']
    #allocation3 [shape = 's32[2]{0}', space=sflag, size = 0x8, scoped, tag = 'scoped memory for sagate_pallas.2']
    #allocation4 [shape = 'u8[524288]{0}', space=vmem, size = 0x80000, scoped, tag = 'input window, operand 1']
    #allocation5 [shape = 's32[2]{0}', space=sflag, size = 0x8, scoped, tag = 'scoped memory for sagate_pallas.2']
    %11 = vsyncpa [#allocation3], 0
    %s12 = scalar_lea.sflag [#allocation3], 1
    %13 = vsyncpa %s12, 0
    %14 = vsyncpa [#allocation5], 0
    %s15 = scalar_lea.sflag [#allocation5], 1
    %16 = vsyncpa %s15, 0
    loop: start=0, step=1, limit=6
    $region2: #{sagate_pallas.2} parent=1 // loop_pre_header
      _
    $region3: #{sagate_pallas.2} parent=1 // loop_header
      %s18 = sphi 0, %s22
      %p19 = scmp.ge.s32.totalorder %s18, 6
      %s25 = sphi 0, %s44
      %s26 = sphi 0, %s40
      %s27 = sphi 0, %s36
      %s28 = sphi 0, %s25
      %s29 = sphi 0, %s26
      %s30 = sphi 0, %s27
      %s31 = sphi 0, %s28
      %s32 = sphi 0, %s29
      %s33 = sphi 0, %s30
      %s51 = sphi 0, %s53
      %s54 = sphi 0, %s51
      %s55 = sphi 0, %s54
      %s71 = sphi 0, %s55
      %s81 = sphi 0, %s83
      %s84 = sphi 0, %s81
      %s85 = sphi 0, %s84
      %s101 = sphi 0, %s85
      %s105 = sphi 0, %s105
      %s107 = sphi 0, %s105
      %s108 = sphi 0, %s107
      %s122 = sphi 0, %s108
      %s126 = sphi 0, %s126
      %s128 = sphi 0, %s126
      %s129 = sphi 0, %s128
      %s143 = sphi 0, %s129
      %s151 = sphi 0, %s153
      %s154 = sphi 0, %s151
      %s155 = sphi 0, %s154
      %s171 = sphi 0, %s155
      %s179 = sphi 0, %s181
      %s182 = sphi 0, %s179
      %s183 = sphi 0, %s182
      %s199 = sphi 0, %s183
    $region4: #{sagate_pallas.2} parent=1 // loop_header_branch
      %21 = sbr.rel (%p19) target = $region8
    $region5: #{sagate_pallas.2} parent=1 // loop_body
      %s23 = ssub.s32 %s18, 1
      %s24 = ssub.s32 %s18, 2
      %s34 = sadd.s32 1, %s27
      %p35 = scmp.ge.s32.totalorder %s34, 1
      %s36 = scalar_select %p35, 0, %s34
      %s37 = sadd.s32 1, %s26
      %s38 = scalar_select %p35, %s37, %s26
      %p39 = scmp.ge.s32.totalorder %s38, 2
      %s40 = scalar_select %p39, 0, %s38
      %s41 = sadd.s32 1, %s25
      %s42 = scalar_select %p39, %s41, %s25
      %p43 = scmp.ge.s32.totalorder %s42, 2
      %s44 = scalar_select %p43, 0, %s42
      %s45 = sadd.s32 %s26, %s27
      %s46 = sadd.s32 %s40, %s36
      %s47 = ssub.s32 %s25, %s44
      %s48 = ssub.s32 %s45, %s46
      %s49 = sor.u32 %s47, %s48
      %p50 = scmp.eq.s32.totalorder %s49, 0
      %s52 = sadd.s32 %s51, 1
      %s53 = scalar_select %p50, %s51, %s52
      %p56 = pneg %p50
      %p57 = scmp.eq.s32.totalorder %s18, 3
      %p58 = por %p56, %p57
      %p59 = scmp.ne.s32.totalorder %s51, %s54
      %p60 = scmp.eq.s32.totalorder %s18, 0
      %p61 = por %p59, %p60
      %p62 = scmp.ne.s32.totalorder %s51, %s54
      %p63 = scmp.eq.s32.totalorder %s23, 3
      %p64 = por %p62, %p63
      %p65 = scmp.ne.s32.totalorder %s54, %s55
      %p66 = scmp.eq.s32.totalorder %s23, 0
      %p67 = por %p65, %p66
      %p68 = scmp.ne.s32.totalorder %s54, %s55
      %p69 = scmp.eq.s32.totalorder %s24, 3
      %p70 = por %p68, %p69
      %p72 = scmp.ne.s32.totalorder %s55, %s71
      %p73 = scmp.eq.s32.totalorder %s24, 0
      %p74 = por %p72, %p73
      %s75 = sadd.s32 %s26, %s27
      %s76 = sadd.s32 %s40, %s36
      %s77 = ssub.s32 %s25, %s44
      %s78 = ssub.s32 %s75, %s76
      %s79 = sor.u32 %s77, %s78
      %p80 = scmp.eq.s32.totalorder %s79, 0
      %s82 = sadd.s32 %s81, 1
      %s83 = scalar_select %p80, %s81, %s82
      %p86 = pneg %p80
      %p87 = scmp.eq.s32.totalorder %s18, 3
      %p88 = por %p86, %p87
      %p89 = scmp.ne.s32.totalorder %s81, %s84
      %p90 = scmp.eq.s32.totalorder %s18, 0
      %p91 = por %p89, %p90
      %p92 = scmp.ne.s32.totalorder %s81, %s84
      %p93 = scmp.eq.s32.totalorder %s23, 3
      %p94 = por %p92, %p93
      %p95 = scmp.ne.s32.totalorder %s84, %s85
      %p96 = scmp.eq.s32.totalorder %s23, 0
      %p97 = por %p95, %p96
      %p98 = scmp.ne.s32.totalorder %s84, %s85
      %p99 = scmp.eq.s32.totalorder %s24, 3
      %p100 = por %p98, %p99
      %p102 = scmp.ne.s32.totalorder %s85, %s101
      %p103 = scmp.eq.s32.totalorder %s24, 0
      %p104 = por %p102, %p103
      %s106 = sadd.s32 %s105, 1
      %p109 = scmp.eq.s32.totalorder %s18, 3
      %p110 = scmp.ne.s32.totalorder %s105, %s107
      %p111 = scmp.eq.s32.totalorder %s18, 0
      %p112 = por %p110, %p111
      %p113 = scmp.ne.s32.totalorder %s105, %s107
      %p114 = scmp.eq.s32.totalorder %s23, 3
      %p115 = por %p113, %p114
      %p116 = scmp.ne.s32.totalorder %s107, %s108
      %p117 = scmp.eq.s32.totalorder %s23, 0
      %p118 = por %p116, %p117
      %p119 = scmp.ne.s32.totalorder %s107, %s108
      %p120 = scmp.eq.s32.totalorder %s24, 3
      %p121 = por %p119, %p120
      %p123 = scmp.ne.s32.totalorder %s108, %s122
      %p124 = scmp.eq.s32.totalorder %s24, 0
      %p125 = por %p123, %p124
      %s127 = sadd.s32 %s126, 1
      %p130 = scmp.eq.s32.totalorder %s18, 3
      %p131 = scmp.ne.s32.totalorder %s126, %s128
      %p132 = scmp.eq.s32.totalorder %s18, 0
      %p133 = por %p131, %p132
      %p134 = scmp.ne.s32.totalorder %s126, %s128
      %p135 = scmp.eq.s32.totalorder %s23, 3
      %p136 = por %p134, %p135
      %p137 = scmp.ne.s32.totalorder %s128, %s129
      %p138 = scmp.eq.s32.totalorder %s23, 0
      %p139 = por %p137, %p138
      %p140 = scmp.ne.s32.totalorder %s128, %s129
      %p141 = scmp.eq.s32.totalorder %s24, 3
      %p142 = por %p140, %p141
      %p144 = scmp.ne.s32.totalorder %s129, %s143
      %p145 = scmp.eq.s32.totalorder %s24, 0
      %p146 = por %p144, %p145
      %s147 = ssub.s32 %s25, %s44
      %s148 = ssub.s32 %s26, %s40
      %s149 = sor.u32 %s147, %s148
      %p150 = scmp.eq.s32.totalorder %s149, 0
      %s152 = sadd.s32 %s151, 1
      %s153 = scalar_select %p150, %s151, %s152
      %p156 = pneg %p150
      %p157 = scmp.eq.s32.totalorder %s18, 3
      %p158 = por %p156, %p157
      %p159 = scmp.ne.s32.totalorder %s151, %s154
      %p160 = scmp.eq.s32.totalorder %s18, 0
      %p161 = por %p159, %p160
      %p162 = scmp.ne.s32.totalorder %s151, %s154
      %p163 = scmp.eq.s32.totalorder %s23, 3
      %p164 = por %p162, %p163
      %p165 = scmp.ne.s32.totalorder %s154, %s155
      %p166 = scmp.eq.s32.totalorder %s23, 0
      %p167 = por %p165, %p166
      %p168 = scmp.ne.s32.totalorder %s154, %s155
      %p169 = scmp.eq.s32.totalorder %s24, 3
      %p170 = por %p168, %p169
      %p172 = scmp.ne.s32.totalorder %s155, %s171
      %p173 = scmp.eq.s32.totalorder %s24, 0
      %p174 = por %p172, %p173
      %s175 = ssub.s32 %s25, %s44
      %s176 = ssub.s32 %s26, %s40
      %s177 = sor.u32 %s175, %s176
      %p178 = scmp.eq.s32.totalorder %s177, 0
      %s180 = sadd.s32 %s179, 1
      %s181 = scalar_select %p178, %s179, %s180
      %p184 = pneg %p178
      %p185 = scmp.eq.s32.totalorder %s18, 3
      %p186 = por %p184, %p185
      %p187 = scmp.ne.s32.totalorder %s179, %s182
      %p188 = scmp.eq.s32.totalorder %s18, 0
      %p189 = por %p187, %p188
      %p190 = scmp.ne.s32.totalorder %s179, %s182
      %p191 = scmp.eq.s32.totalorder %s23, 3
      %p192 = por %p190, %p191
      %p193 = scmp.ne.s32.totalorder %s182, %s183
      %p194 = scmp.eq.s32.totalorder %s23, 0
      %p195 = por %p193, %p194
      %p196 = scmp.ne.s32.totalorder %s182, %s183
      %p197 = scmp.eq.s32.totalorder %s24, 3
      %p198 = por %p196, %p197
      %p200 = scmp.ne.s32.totalorder %s183, %s199
      %p201 = scmp.eq.s32.totalorder %s24, 0
      %p202 = por %p200, %p201
      %p203 = scmp.le.s32.totalorder 1, %s18
      %p204 = scmp.lt.s32.totalorder %s18, 5
      %p205 = pnand %p203, %p204
      %p206 = pneg %p205
      // Predicated region
      $region9: #{sagate_pallas.2} parent=5 // pred_check
        _
      $region10: #{sagate_pallas.2} parent=5 // pred_check_branch
        %208 = sbr.rel (%p205) target = $region12
      $region11: #{sagate_pallas.2} parent=5 // pred_region
        %s209 = ssub.s32 %s18, 1
        // Predicated region
        $region13: #{sagate_pallas.2} parent=11 // pred_check
          %p210 = pneg %p118
        $region14: #{sagate_pallas.2} parent=11 // pred_check_branch
          %212 = sbr.rel (%p210) target = $region16
        $region15: #{sagate_pallas.2} parent=11 // pred_region
          _
        $region16: #{sagate_pallas.2} parent=11 // pred_fallthru
          _
        // Predicated region
        $region17: #{sagate_pallas.2} parent=11 // pred_check
          %p213 = pneg %p139
        $region18: #{sagate_pallas.2} parent=11 // pred_check_branch
          %215 = sbr.rel (%p213) target = $region20
        $region19: #{sagate_pallas.2} parent=11 // pred_region
          _
        $region20: #{sagate_pallas.2} parent=11 // pred_fallthru
          _
      $region12: #{sagate_pallas.2} parent=5 // pred_fallthru
        _
      %p216 = scmp.lt.s32.totalorder %s18, 4
      // Predicated region
      $region21: #{sagate_pallas.2} parent=5 // pred_check
        %p217 = pneg %p216
      $region22: #{sagate_pallas.2} parent=5 // pred_check_branch
        %219 = sbr.rel (%p217) target = $region24
      $region23: #{sagate_pallas.2} parent=5 // pred_region
        // Predicated region
        $region25: #{sagate_pallas.2} parent=23 // pred_check
          %p220 = pneg %p61
        $region26: #{sagate_pallas.2} parent=23 // pred_check_branch
          %222 = sbr.rel (%p220) target = $region28
        $region27: #{sagate_pallas.2} parent=23 // pred_region
          %s223 = sand.u32 %s51, 1
          %s224 = scalar_lea.sflag [#allocation3], %s223
          %s225 = sand.u32 %s51, 1
          %s226 = smul.addr %s225, 512
          %s227 = scalar_lea.vmem [#allocation2], %s226
          %s228 = sadd.s32 %s26, %s27
          %s229 = smul.u32 64, %s228
          %s231 = ssub.s32 8192, 8192
          %232 = vsyncadd %s224, %s231
          %s233 = smul.addr %s25, 128
          %s234 = sadd.s32 %s229, %s233
          %s235 = smul.addr %s234, 128
          %s236 = scalar_lea.hbm %s0, %s235
          %s237 = sshll.u32 %s227, 4
          %s238 = int_to_ptr.vmem [resolvable:$true] %s237
          %243 = dma.hbm_to_vmem [thread:$0]  %s236, 8192, %s238, %s224, 128, 128, 8
        $region28: #{sagate_pallas.2} parent=23 // pred_fallthru
          _
        // Predicated region
        $region29: #{sagate_pallas.2} parent=23 // pred_check
          %p244 = pneg %p91
        $region30: #{sagate_pallas.2} parent=23 // pred_check_branch
          %246 = sbr.rel (%p244) target = $region32
        $region31: #{sagate_pallas.2} parent=23 // pred_region
          %s247 = sand.u32 %s81, 1
          %s248 = scalar_lea.sflag [#allocation5], %s247
          %s249 = sand.u32 %s81, 1
          %s250 = smul.addr %s249, 512
          %s251 = scalar_lea.vmem [#allocation4], %s250
          %s252 = sadd.s32 %s26, %s27
          %s253 = smul.u32 64, %s252
          %s255 = ssub.s32 8192, 8192
          %256 = vsyncadd %s248, %s255
          %s257 = smul.addr %s25, 128
          %s258 = sadd.s32 %s253, %s257
          %s259 = smul.addr %s258, 128
          %s260 = scalar_lea.hbm %s1, %s259
          %s261 = sshll.u32 %s251, 4
          %s262 = int_to_ptr.vmem [resolvable:$true] %s261
          %267 = dma.hbm_to_vmem [thread:$0]  %s260, 8192, %s262, %s248, 128, 128, 8
        $region32: #{sagate_pallas.2} parent=23 // pred_fallthru
          _
      $region24: #{sagate_pallas.2} parent=5 // pred_fallthru
        _
      %p268 = scmp.le.s32.totalorder 1, %s18
      %p269 = scmp.lt.s32.totalorder %s18, 5
      %p270 = pnand %p268, %p269
      %p271 = pneg %p270
      // Predicated region
      $region33: #{sagate_pallas.2} parent=5 // pred_check
        _
      $region34: #{sagate_pallas.2} parent=5 // pred_check_branch
        %273 = sbr.rel (%p270) target = $region36
      $region35: #{sagate_pallas.2} parent=5 // pred_region
        %s274 = ssub.s32 %s18, 1
        %s275 = sand.u32 %s54, 1
        %s276 = scalar_lea.sflag [#allocation3], %s275
        %s277 = sand.u32 %s54, 1
        %s278 = smul.addr %s277, 512
        %s279 = scalar_lea.vmem [#allocation2], %s278
        // Predicated region
        $region37: #{sagate_pallas.2} parent=35 // pred_check
          %p280 = pneg %p67
        $region38: #{sagate_pallas.2} parent=35 // pred_check_branch
          %282 = sbr.rel (%p280) target = $region40
        $region39: #{sagate_pallas.2} parent=35 // pred_region
          %283 = dma.done %s276, 8192
        $region40: #{sagate_pallas.2} parent=35 // pred_fallthru
          _
        %s284 = sand.u32 %s84, 1
        %s285 = scalar_lea.sflag [#allocation5], %s284
        %s286 = sand.u32 %s84, 1
        %s287 = smul.addr %s286, 512
        %s288 = scalar_lea.vmem [#allocation4], %s287
        // Predicated region
        $region41: #{sagate_pallas.2} parent=35 // pred_check
          %p289 = pneg %p97
        $region42: #{sagate_pallas.2} parent=35 // pred_check_branch
          %291 = sbr.rel (%p289) target = $region44
        $region43: #{sagate_pallas.2} parent=35 // pred_region
          %292 = dma.done %s285, 8192
        $region44: #{sagate_pallas.2} parent=35 // pred_fallthru
          _
        %s293 = sand.u32 %s54, 1
        %s294 = scalar_lea.sflag [#allocation3], %s293
        %s295 = sand.u32 %s54, 1
        %s296 = smul.addr %s295, 512
        %s297 = scalar_lea.vmem [#allocation2], %s296
        %p298 = pneg %p67
        %p299 = pneg %p64
        %s300 = sand.u32 %s84, 1
        %s301 = scalar_lea.sflag [#allocation5], %s300
        %s302 = sand.u32 %s84, 1
        %s303 = smul.addr %s302, 512
        %s304 = scalar_lea.vmem [#allocation4], %s303
        %p305 = pneg %p97
        %p306 = pneg %p94
        %p307 = pneg %p118
        %p308 = pneg %p115
        %p309 = pneg %p139
        %p310 = pneg %p136
        %p311 = pneg %p167
        %p312 = pneg %p164
        %p313 = scmp.lt.s32.totalorder %s28, 1
        %s314 = scalar_select %p313, %s28, 1
        %p315 = scmp.lt.s32.totalorder %s29, 1
        %s316 = scalar_select %p315, %s29, 1
        %s317 = smul.addr %s314, 2
        %s318 = sadd.s32 %s316, %s317
        %s319 = scalar_lea.vmem %s4, %s318
        %p320 = pneg %p195
        %p321 = pneg %p192
        %p322 = scmp.lt.s32.totalorder %s28, 1
        %s323 = scalar_select %p322, %s28, 1
        %p324 = scmp.lt.s32.totalorder %s29, 1
        %s325 = scalar_select %p324, %s29, 1
        %s326 = smul.addr %s323, 2
        %s327 = sadd.s32 %s325, %s326
        %s328 = scalar_lea.vmem %s5, %s327
        %s329 = sadd.s32 %s29, %s30
        %s330 = smul.u32 64, %s329
        %s331 = sadd.s32 %s29, %s30
        %s332 = smul.u32 64, %s331
        %p333 = scmp.lt.s32.totalorder %s28, 1
        %s334 = scalar_select %p333, %s28, 1
        %p335 = scmp.lt.s32.totalorder %s29, 1
        %s336 = scalar_select %p335, %s29, 1
        %s337 = smul.addr %s334, 2
        %s338 = sadd.s32 %s336, %s337
        %s339 = scalar_lea.vmem %s4, %s338
        %p340 = scmp.lt.s32.totalorder %s28, 1
        %s341 = scalar_select %p340, %s28, 1
        %p342 = scmp.lt.s32.totalorder %s29, 1
        %s343 = scalar_select %p342, %s29, 1
        %s344 = smul.addr %s341, 2
        %s345 = sadd.s32 %s343, %s344
        %s346 = scalar_lea.vmem %s5, %s345
        %p348 = scmp.eq.s32.totalorder %s30, 0
        // Predicated region
        $region45: #{sagate_pallas.2} parent=35 // pred_check
          %p349 = pneg %p348
        $region46: #{sagate_pallas.2} parent=35 // pred_check_branch
          %351 = sbr.rel (%p349) target = $region48
        $region47: #{sagate_pallas.2} parent=35 // pred_region
          %352 = vst [vmem:[%s339] sm:$0x1] 0.0
          %353 = vst [vmem:[%s346] sm:$0x1] -inf
        $region48: #{sagate_pallas.2} parent=35 // pred_fallthru
          _
        %v354 = vld [vmem:[%s279] sm:$0xff]
        %v355 = vld [vmem:[%s279 + $0x8] sm:$0xff]
        %v356 = vld [vmem:[%s279 + $0x10] sm:$0xff]
        %v357 = vld [vmem:[%s279 + $0x18] sm:$0xff]
        %v358 = vld [vmem:[%s279 + $0x20] sm:$0xff]
        %v359 = vld [vmem:[%s279 + $0x28] sm:$0xff]
        %v360 = vld [vmem:[%s279 + $0x30] sm:$0xff]
        %v361 = vld [vmem:[%s279 + $0x38] sm:$0xff]
        %v362 = vld [vmem:[%s279 + $0x40] sm:$0xff]
        %v363 = vld [vmem:[%s279 + $0x48] sm:$0xff]
        %v364 = vld [vmem:[%s279 + $0x50] sm:$0xff]
        %v365 = vld [vmem:[%s279 + $0x58] sm:$0xff]
        %v366 = vld [vmem:[%s279 + $0x60] sm:$0xff]
        %v367 = vld [vmem:[%s279 + $0x68] sm:$0xff]
        %v368 = vld [vmem:[%s279 + $0x70] sm:$0xff]
        %v369 = vld [vmem:[%s279 + $0x78] sm:$0xff]
        %v370 = vld [vmem:[%s279 + $0x80] sm:$0xff]
        %v371 = vld [vmem:[%s279 + $0x88] sm:$0xff]
        %v372 = vld [vmem:[%s279 + $0x90] sm:$0xff]
        %v373 = vld [vmem:[%s279 + $0x98] sm:$0xff]
        %v374 = vld [vmem:[%s279 + $0xa0] sm:$0xff]
        %v375 = vld [vmem:[%s279 + $0xa8] sm:$0xff]
        %v376 = vld [vmem:[%s279 + $0xb0] sm:$0xff]
        %v377 = vld [vmem:[%s279 + $0xb8] sm:$0xff]
        %v378 = vld [vmem:[%s279 + $0xc0] sm:$0xff]
        %v379 = vld [vmem:[%s279 + $0xc8] sm:$0xff]
        %v380 = vld [vmem:[%s279 + $0xd0] sm:$0xff]
        %v381 = vld [vmem:[%s279 + $0xd8] sm:$0xff]
        %v382 = vld [vmem:[%s279 + $0xe0] sm:$0xff]
        %v383 = vld [vmem:[%s279 + $0xe8] sm:$0xff]
        %v384 = vld [vmem:[%s279 + $0xf0] sm:$0xff]
        %v385 = vld [vmem:[%s279 + $0xf8] sm:$0xff]
        %v386 = vld [vmem:[%s279 + $0x100] sm:$0xff]
        %v387 = vld [vmem:[%s279 + $0x108] sm:$0xff]
        %v388 = vld [vmem:[%s279 + $0x110] sm:$0xff]
        %v389 = vld [vmem:[%s279 + $0x118] sm:$0xff]
        %v390 = vld [vmem:[%s279 + $0x120] sm:$0xff]
        %v391 = vld [vmem:[%s279 + $0x128] sm:$0xff]
        %v392 = vld [vmem:[%s279 + $0x130] sm:$0xff]
        %v393 = vld [vmem:[%s279 + $0x138] sm:$0xff]
        %v394 = vld [vmem:[%s279 + $0x140] sm:$0xff]
        %v395 = vld [vmem:[%s279 + $0x148] sm:$0xff]
        %v396 = vld [vmem:[%s279 + $0x150] sm:$0xff]
        %v397 = vld [vmem:[%s279 + $0x158] sm:$0xff]
        %v398 = vld [vmem:[%s279 + $0x160] sm:$0xff]
        %v399 = vld [vmem:[%s279 + $0x168] sm:$0xff]
        %v400 = vld [vmem:[%s279 + $0x170] sm:$0xff]
        %v401 = vld [vmem:[%s279 + $0x178] sm:$0xff]
        %v402 = vld [vmem:[%s279 + $0x180] sm:$0xff]
        %v403 = vld [vmem:[%s279 + $0x188] sm:$0xff]
        %v404 = vld [vmem:[%s279 + $0x190] sm:$0xff]
        %v405 = vld [vmem:[%s279 + $0x198] sm:$0xff]
        %v406 = vld [vmem:[%s279 + $0x1a0] sm:$0xff]
        %v407 = vld [vmem:[%s279 + $0x1a8] sm:$0xff]
        %v408 = vld [vmem:[%s279 + $0x1b0] sm:$0xff]
        %v409 = vld [vmem:[%s279 + $0x1b8] sm:$0xff]
        %v410 = vld [vmem:[%s279 + $0x1c0] sm:$0xff]
        %v411 = vld [vmem:[%s279 + $0x1c8] sm:$0xff]
        %v412 = vld [vmem:[%s279 + $0x1d0] sm:$0xff]
        %v413 = vld [vmem:[%s279 + $0x1d8] sm:$0xff]
        %v414 = vld [vmem:[%s279 + $0x1e0] sm:$0xff]
        %v415 = vld [vmem:[%s279 + $0x1e8] sm:$0xff]
        %v416 = vld [vmem:[%s279 + $0x1f0] sm:$0xff]
        %v417 = vld [vmem:[%s279 + $0x1f8] sm:$0xff]
        %v418 = vpack.c.bf16 %v355, %v354
        %v419 = vpack.c.bf16 %v357, %v356
        %v420 = vpack.c.bf16 %v359, %v358
        %v421 = vpack.c.bf16 %v361, %v360
        %v422 = vpack.c.bf16 %v363, %v362
        %v423 = vpack.c.bf16 %v365, %v364
        %v424 = vpack.c.bf16 %v367, %v366
        %v425 = vpack.c.bf16 %v369, %v368
        %v426 = vpack.c.bf16 %v371, %v370
        %v427 = vpack.c.bf16 %v373, %v372
        %v428 = vpack.c.bf16 %v375, %v374
        %v429 = vpack.c.bf16 %v377, %v376
        %v430 = vpack.c.bf16 %v379, %v378
        %v431 = vpack.c.bf16 %v381, %v380
        %v432 = vpack.c.bf16 %v383, %v382
        %v433 = vpack.c.bf16 %v385, %v384
        %v434 = vpack.c.bf16 %v387, %v386
        %v435 = vpack.c.bf16 %v389, %v388
        %v436 = vpack.c.bf16 %v391, %v390
        %v437 = vpack.c.bf16 %v393, %v392
        %v438 = vpack.c.bf16 %v395, %v394
        %v439 = vpack.c.bf16 %v397, %v396
        %v440 = vpack.c.bf16 %v399, %v398
        %v441 = vpack.c.bf16 %v401, %v400
        %v442 = vpack.c.bf16 %v403, %v402
        %v443 = vpack.c.bf16 %v405, %v404
        %v444 = vpack.c.bf16 %v407, %v406
        %v445 = vpack.c.bf16 %v409, %v408
        %v446 = vpack.c.bf16 %v411, %v410
        %v447 = vpack.c.bf16 %v413, %v412
        %v448 = vpack.c.bf16 %v415, %v414
        %v449 = vpack.c.bf16 %v417, %v416
        %v450 = vld [vmem:[%s2] sm:$0xf]
        %v451 = vld [vmem:[%s2 + $0x4] sm:$0xf]
        %v452 = vld [vmem:[%s2 + $0x8] sm:$0xf]
        %v453 = vld [vmem:[%s2 + $0xc] sm:$0xf]
        %v454 = vld [vmem:[%s2 + $0x10] sm:$0xf]
        %v455 = vld [vmem:[%s2 + $0x14] sm:$0xf]
        %v456 = vld [vmem:[%s2 + $0x18] sm:$0xf]
        %v457 = vld [vmem:[%s2 + $0x1c] sm:$0xf]
        %v458 = vld [vmem:[%s2 + $0x20] sm:$0xf]
        %v459 = vld [vmem:[%s2 + $0x24] sm:$0xf]
        %v460 = vld [vmem:[%s2 + $0x28] sm:$0xf]
        %v461 = vld [vmem:[%s2 + $0x2c] sm:$0xf]
        %v462 = vld [vmem:[%s2 + $0x30] sm:$0xf]
        %v463 = vld [vmem:[%s2 + $0x34] sm:$0xf]
        %v464 = vld [vmem:[%s2 + $0x38] sm:$0xf]
        %v465 = vld [vmem:[%s2 + $0x3c] sm:$0xf]
        %v466 = vld [vmem:[%s288] sm:$0xff]
        %v467 = vld [vmem:[%s288 + $0x8] sm:$0xff]
        %v468 = vld [vmem:[%s288 + $0x10] sm:$0xff]
        %v469 = vld [vmem:[%s288 + $0x18] sm:$0xff]
        %v470 = vld [vmem:[%s288 + $0x20] sm:$0xff]
        %v471 = vld [vmem:[%s288 + $0x28] sm:$0xff]
        %v472 = vld [vmem:[%s288 + $0x30] sm:$0xff]
        %v473 = vld [vmem:[%s288 + $0x38] sm:$0xff]
        %v474 = vld [vmem:[%s288 + $0x40] sm:$0xff]
        %v475 = vld [vmem:[%s288 + $0x48] sm:$0xff]
        %v476 = vld [vmem:[%s288 + $0x50] sm:$0xff]
        %v477 = vld [vmem:[%s288 + $0x58] sm:$0xff]
        %v478 = vld [vmem:[%s288 + $0x60] sm:$0xff]
        %v479 = vld [vmem:[%s288 + $0x68] sm:$0xff]
        %v480 = vld [vmem:[%s288 + $0x70] sm:$0xff]
        %v481 = vld [vmem:[%s288 + $0x78] sm:$0xff]
        %v482 = vld [vmem:[%s288 + $0x80] sm:$0xff]
        %v483 = vld [vmem:[%s288 + $0x88] sm:$0xff]
        %v484 = vld [vmem:[%s288 + $0x90] sm:$0xff]
        %v485 = vld [vmem:[%s288 + $0x98] sm:$0xff]
        %v486 = vld [vmem:[%s288 + $0xa0] sm:$0xff]
        %v487 = vld [vmem:[%s288 + $0xa8] sm:$0xff]
        %v488 = vld [vmem:[%s288 + $0xb0] sm:$0xff]
        %v489 = vld [vmem:[%s288 + $0xb8] sm:$0xff]
        %v490 = vld [vmem:[%s288 + $0xc0] sm:$0xff]
        %v491 = vld [vmem:[%s288 + $0xc8] sm:$0xff]
        %v492 = vld [vmem:[%s288 + $0xd0] sm:$0xff]
        %v493 = vld [vmem:[%s288 + $0xd8] sm:$0xff]
        %v494 = vld [vmem:[%s288 + $0xe0] sm:$0xff]
        %v495 = vld [vmem:[%s288 + $0xe8] sm:$0xff]
        %v496 = vld [vmem:[%s288 + $0xf0] sm:$0xff]
        %v497 = vld [vmem:[%s288 + $0xf8] sm:$0xff]
        %v498 = vld [vmem:[%s288 + $0x100] sm:$0xff]
        %v499 = vld [vmem:[%s288 + $0x108] sm:$0xff]
        %v500 = vld [vmem:[%s288 + $0x110] sm:$0xff]
        %v501 = vld [vmem:[%s288 + $0x118] sm:$0xff]
        %v502 = vld [vmem:[%s288 + $0x120] sm:$0xff]
        %v503 = vld [vmem:[%s288 + $0x128] sm:$0xff]
        %v504 = vld [vmem:[%s288 + $0x130] sm:$0xff]
        %v505 = vld [vmem:[%s288 + $0x138] sm:$0xff]
        %v506 = vld [vmem:[%s288 + $0x140] sm:$0xff]
        %v507 = vld [vmem:[%s288 + $0x148] sm:$0xff]
        %v508 = vld [vmem:[%s288 + $0x150] sm:$0xff]
        %v509 = vld [vmem:[%s288 + $0x158] sm:$0xff]
        %v510 = vld [vmem:[%s288 + $0x160] sm:$0xff]
        %v511 = vld [vmem:[%s288 + $0x168] sm:$0xff]
        %v512 = vld [vmem:[%s288 + $0x170] sm:$0xff]
        %v513 = vld [vmem:[%s288 + $0x178] sm:$0xff]
        %v514 = vld [vmem:[%s288 + $0x180] sm:$0xff]
        %v515 = vld [vmem:[%s288 + $0x188] sm:$0xff]
        %v516 = vld [vmem:[%s288 + $0x190] sm:$0xff]
        %v517 = vld [vmem:[%s288 + $0x198] sm:$0xff]
        %v518 = vld [vmem:[%s288 + $0x1a0] sm:$0xff]
        %v519 = vld [vmem:[%s288 + $0x1a8] sm:$0xff]
        %v520 = vld [vmem:[%s288 + $0x1b0] sm:$0xff]
        %v521 = vld [vmem:[%s288 + $0x1b8] sm:$0xff]
        %v522 = vld [vmem:[%s288 + $0x1c0] sm:$0xff]
        %v523 = vld [vmem:[%s288 + $0x1c8] sm:$0xff]
        %v524 = vld [vmem:[%s288 + $0x1d0] sm:$0xff]
        %v525 = vld [vmem:[%s288 + $0x1d8] sm:$0xff]
        %v526 = vld [vmem:[%s288 + $0x1e0] sm:$0xff]
        %v527 = vld [vmem:[%s288 + $0x1e8] sm:$0xff]
        %v528 = vld [vmem:[%s288 + $0x1f0] sm:$0xff]
        %v529 = vld [vmem:[%s288 + $0x1f8] sm:$0xff]
        %v530 = vpack.c.bf16 %v467, %v466
        %v531 = vpack.c.bf16 %v469, %v468
        %v532 = vpack.c.bf16 %v471, %v470
        %v533 = vpack.c.bf16 %v473, %v472
        %v534 = vpack.c.bf16 %v475, %v474
        %v535 = vpack.c.bf16 %v477, %v476
        %v536 = vpack.c.bf16 %v479, %v478
        %v537 = vpack.c.bf16 %v481, %v480
        %v538 = vpack.c.bf16 %v483, %v482
        %v539 = vpack.c.bf16 %v485, %v484
        %v540 = vpack.c.bf16 %v487, %v486
        %v541 = vpack.c.bf16 %v489, %v488
        %v542 = vpack.c.bf16 %v491, %v490
        %v543 = vpack.c.bf16 %v493, %v492
        %v544 = vpack.c.bf16 %v495, %v494
        %v545 = vpack.c.bf16 %v497, %v496
        %v546 = vpack.c.bf16 %v499, %v498
        %v547 = vpack.c.bf16 %v501, %v500
        %v548 = vpack.c.bf16 %v503, %v502
        %v549 = vpack.c.bf16 %v505, %v504
        %v550 = vpack.c.bf16 %v507, %v506
        %v551 = vpack.c.bf16 %v509, %v508
        %v552 = vpack.c.bf16 %v511, %v510
        %v553 = vpack.c.bf16 %v513, %v512
        %v554 = vpack.c.bf16 %v515, %v514
        %v555 = vpack.c.bf16 %v517, %v516
        %v556 = vpack.c.bf16 %v519, %v518
        %v557 = vpack.c.bf16 %v521, %v520
        %v558 = vpack.c.bf16 %v523, %v522
        %v559 = vpack.c.bf16 %v525, %v524
        %v560 = vpack.c.bf16 %v527, %v526
        %v561 = vpack.c.bf16 %v529, %v528
        %v562 = vld [vmem:[%s3] sm:$0xf]
        %v563 = vld [vmem:[%s3 + $0x4] sm:$0xf]
        %v564 = vld [vmem:[%s3 + $0x8] sm:$0xf]
        %v565 = vld [vmem:[%s3 + $0xc] sm:$0xf]
        %v566 = vld [vmem:[%s3 + $0x10] sm:$0xf]
        %v567 = vld [vmem:[%s3 + $0x14] sm:$0xf]
        %v568 = vld [vmem:[%s3 + $0x18] sm:$0xf]
        %v569 = vld [vmem:[%s3 + $0x1c] sm:$0xf]
        %v570 = vld [vmem:[%s3 + $0x20] sm:$0xf]
        %v571 = vld [vmem:[%s3 + $0x24] sm:$0xf]
        %v572 = vld [vmem:[%s3 + $0x28] sm:$0xf]
        %v573 = vld [vmem:[%s3 + $0x2c] sm:$0xf]
        %v574 = vld [vmem:[%s3 + $0x30] sm:$0xf]
        %v575 = vld [vmem:[%s3 + $0x34] sm:$0xf]
        %v576 = vld [vmem:[%s3 + $0x38] sm:$0xf]
        %v577 = vld [vmem:[%s3 + $0x3c] sm:$0xf]
        %v594 = vunpack.c.l.b16 %v562
        %v595 = vunpack.c.l.b16 %v563
        %v596 = vunpack.c.l.b16 %v564
        %v597 = vunpack.c.l.b16 %v565
        %v598 = vunpack.c.l.b16 %v566
        %v599 = vunpack.c.l.b16 %v567
        %v600 = vunpack.c.l.b16 %v568
        %v601 = vunpack.c.l.b16 %v569
        %v602 = vunpack.c.l.b16 %v570
        %v603 = vunpack.c.l.b16 %v571
        %v604 = vunpack.c.l.b16 %v572
        %v605 = vunpack.c.l.b16 %v573
        %v606 = vunpack.c.l.b16 %v574
        %v607 = vunpack.c.l.b16 %v575
        %v608 = vunpack.c.l.b16 %v576
        %v609 = vunpack.c.l.b16 %v577
        %v610 = vpack.c.b16 %v595, %v594
        %v611 = vpack.c.b16 %v597, %v596
        %v612 = vpack.c.b16 %v599, %v598
        %v613 = vpack.c.b16 %v601, %v600
        %v614 = vpack.c.b16 %v603, %v602
        %v615 = vpack.c.b16 %v605, %v604
        %v616 = vpack.c.b16 %v607, %v606
        %v617 = vpack.c.b16 %v609, %v608
        %626 = vmatprep.subr.bf16.mxu0 0
        %627 = vmatpush1.bf16.msra.mxu0 %v610
        %628 = vmatprep.subr.bf16.mxu0 0
        %629 = vmatpush1.bf16.msra.mxu0 %v611
        %630 = vmatprep.subr.bf16.mxu0 0
        %631 = vmatpush1.bf16.msra.mxu0 %v612
        %632 = vmatprep.subr.bf16.mxu0 0
        %633 = vmatpush1.bf16.msra.mxu0 %v613
        %634 = vmatprep.subr.bf16.mxu0 0
        %635 = vmatpush1.bf16.msra.mxu0 %v614
        %636 = vmatprep.subr.bf16.mxu0 0
        %637 = vmatpush1.bf16.msra.mxu0 %v615
        %638 = vmatprep.subr.bf16.mxu0 0
        %639 = vmatpush1.bf16.msra.mxu0 %v616
        %640 = vmatprep.subr.bf16.mxu0 0
        %641 = vmatpush1.bf16.msra.mxu0 %v617
        %642 = vmatprep.subr.bf16.mxu0 0
        %643 = vmatpush1.bf16.msra.mxu0 0
        %644 = vmatprep.subr.bf16.mxu0 0
        %645 = vmatpush1.bf16.msra.mxu0 0
        %646 = vmatprep.subr.bf16.mxu0 0
        %647 = vmatpush1.bf16.msra.mxu0 0
        %648 = vmatprep.subr.bf16.mxu0 0
        %649 = vmatpush1.bf16.msra.mxu0 0
        %650 = vmatprep.subr.bf16.mxu0 0
        %651 = vmatpush1.bf16.msra.mxu0 0
        %652 = vmatprep.subr.bf16.mxu0 0
        %653 = vmatpush1.bf16.msra.mxu0 0
        %654 = vmatprep.subr.bf16.mxu0 0
        %655 = vmatpush1.bf16.msra.mxu0 0
        %656 = vmatprep.subr.bf16.mxu0 0
        %657 = vmatpush1.bf16.msra.mxu0 0
        %658 = vmatprep.mubr.bf16.mxu0 0
        %659 = vmatmul.mubr.bf16.gmra.mrb[0].mxu0 %v530
        %v660 = vpop.f32.mrb[0].mxu0
        %v661 = vadd.f32 0.0, %v660
        %v662 = vpop.f32.mrb[0].mxu0
        %v663 = vpop.f32.mrb[0].mxu0
        %v664 = vadd.f32 0.0, %v663
        %v665 = vpop.f32.mrb[0].mxu0
        %666 = vmatprep.mubr.bf16.mxu0 0
        %667 = vmatmul.mubr.bf16.gmra.mrb[0].mxu0 %v531
        %v668 = vpop.f32.mrb[0].mxu0
        %v669 = vadd.f32 0.0, %v668
        %v670 = vpop.f32.mrb[0].mxu0
        %v671 = vpop.f32.mrb[0].mxu0
        %v672 = vadd.f32 0.0, %v671
        %v673 = vpop.f32.mrb[0].mxu0
        %674 = vmatprep.mubr.bf16.mxu0 0
        %675 = vmatmul.mubr.bf16.gmra.mrb[0].mxu0 %v532
        %v676 = vpop.f32.mrb[0].mxu0
        %v677 = vadd.f32 0.0, %v676
        %v678 = vpop.f32.mrb[0].mxu0
        %v679 = vpop.f32.mrb[0].mxu0
        %v680 = vadd.f32 0.0, %v679
        %v681 = vpop.f32.mrb[0].mxu0
        %682 = vmatprep.mubr.bf16.mxu0 0
        %683 = vmatmul.mubr.bf16.gmra.mrb[0].mxu0 %v533
        %v684 = vpop.f32.mrb[0].mxu0
        %v685 = vadd.f32 0.0, %v684
        %v686 = vpop.f32.mrb[0].mxu0
        %v687 = vpop.f32.mrb[0].mxu0
        %v688 = vadd.f32 0.0, %v687
        %v689 = vpop.f32.mrb[0].mxu0
        %690 = vmatprep.mubr.bf16.mxu0 0
        %691 = vmatmul.mubr.bf16.gmra.mrb[0].mxu0 %v534
        %v692 = vpop.f32.mrb[0].mxu0
        %v693 = vadd.f32 0.0, %v692
        %v694 = vpop.f32.mrb[0].mxu0
        %v695 = vpop.f32.mrb[0].mxu0
        %v696 = vadd.f32 0.0, %v695
        %v697 = vpop.f32.mrb[0].mxu0
        %698 = vmatprep.mubr.bf16.mxu0 0
        %699 = vmatmul.mubr.bf16.gmra.mrb[0].mxu0 %v535
        %v700 = vpop.f32.mrb[0].mxu0
        %v701 = vadd.f32 0.0, %v700
        %v702 = vpop.f32.mrb[0].mxu0
        %v703 = vpop.f32.mrb[0].mxu0
        %v704 = vadd.f32 0.0, %v703
        %v705 = vpop.f32.mrb[0].mxu0
        %706 = vmatprep.mubr.bf16.mxu0 0
        %707 = vmatmul.mubr.bf16.gmra.mrb[0].mxu0 %v536
        %v708 = vpop.f32.mrb[0].mxu0
        %v709 = vadd.f32 0.0, %v708
        %v710 = vpop.f32.mrb[0].mxu0
        %v711 = vpop.f32.mrb[0].mxu0
        %v712 = vadd.f32 0.0, %v711
        %v713 = vpop.f32.mrb[0].mxu0
        %714 = vmatprep.mubr.bf16.mxu0 0
        %715 = vmatmul.mubr.bf16.gmra.mrb[0].mxu0 %v537
        %v716 = vpop.f32.mrb[0].mxu0
        %v717 = vadd.f32 0.0, %v716
        %v718 = vpop.f32.mrb[0].mxu0
        %v719 = vpop.f32.mrb[0].mxu0
        %v720 = vadd.f32 0.0, %v719
        %v721 = vpop.f32.mrb[0].mxu0
        %722 = vmatprep.mubr.bf16.mxu0 0
        %723 = vmatmul.mubr.bf16.gmra.mrb[0].mxu0 %v538
        %v724 = vpop.f32.mrb[0].mxu0
        %v725 = vadd.f32 0.0, %v724
        %v726 = vpop.f32.mrb[0].mxu0
        %v727 = vpop.f32.mrb[0].mxu0
        %v728 = vadd.f32 0.0, %v727
        %v729 = vpop.f32.mrb[0].mxu0
        %730 = vmatprep.mubr.bf16.mxu0 0
        %731 = vmatmul.mubr.bf16.gmra.mrb[0].mxu0 %v539
        %v732 = vpop.f32.mrb[0].mxu0
        %v733 = vadd.f32 0.0, %v732
        %v734 = vpop.f32.mrb[0].mxu0
        %v735 = vpop.f32.mrb[0].mxu0
        %v736 = vadd.f32 0.0, %v735
        %v737 = vpop.f32.mrb[0].mxu0
        %738 = vmatprep.mubr.bf16.mxu0 0
        %739 = vmatmul.mubr.bf16.gmra.mrb[0].mxu0 %v540
        %v740 = vpop.f32.mrb[0].mxu0
        %v741 = vadd.f32 0.0, %v740
        %v742 = vpop.f32.mrb[0].mxu0
        %v743 = vpop.f32.mrb[0].mxu0
        %v744 = vadd.f32 0.0, %v743
        %v745 = vpop.f32.mrb[0].mxu0
        %746 = vmatprep.mubr.bf16.mxu0 0
        %747 = vmatmul.mubr.bf16.gmra.mrb[0].mxu0 %v541
        %v748 = vpop.f32.mrb[0].mxu0
        %v749 = vadd.f32 0.0, %v748
        %v750 = vpop.f32.mrb[0].mxu0
        %v751 = vpop.f32.mrb[0].mxu0
        %v752 = vadd.f32 0.0, %v751
        %v753 = vpop.f32.mrb[0].mxu0
        %754 = vmatprep.mubr.bf16.mxu0 0
        %755 = vmatmul.mubr.bf16.gmra.mrb[0].mxu0 %v542
        %v756 = vpop.f32.mrb[0].mxu0
        %v757 = vadd.f32 0.0, %v756
        %v758 = vpop.f32.mrb[0].mxu0
        %v759 = vpop.f32.mrb[0].mxu0
        %v760 = vadd.f32 0.0, %v759
        %v761 = vpop.f32.mrb[0].mxu0
        %762 = vmatprep.mubr.bf16.mxu0 0
        %763 = vmatmul.mubr.bf16.gmra.mrb[0].mxu0 %v543
        %v764 = vpop.f32.mrb[0].mxu0
        %v765 = vadd.f32 0.0, %v764
        %v766 = vpop.f32.mrb[0].mxu0
        %v767 = vpop.f32.mrb[0].mxu0
        %v768 = vadd.f32 0.0, %v767
        %v769 = vpop.f32.mrb[0].mxu0
        %770 = vmatprep.mubr.bf16.mxu0 0
        %771 = vmatmul.mubr.bf16.gmra.mrb[0].mxu0 %v544
        %v772 = vpop.f32.mrb[0].mxu0
        %v773 = vadd.f32 0.0, %v772
        %v774 = vpop.f32.mrb[0].mxu0
        %v775 = vpop.f32.mrb[0].mxu0
        %v776 = vadd.f32 0.0, %v775
        %v777 = vpop.f32.mrb[0].mxu0
        %778 = vmatprep.mubr.bf16.mxu0 0
        %779 = vmatmul.mubr.bf16.gmra.mrb[0].mxu0 %v545
        %v780 = vpop.f32.mrb[0].mxu0
        %v781 = vadd.f32 0.0, %v780
        %v782 = vpop.f32.mrb[0].mxu0
        %v783 = vpop.f32.mrb[0].mxu0
        %v784 = vadd.f32 0.0, %v783
        %v785 = vpop.f32.mrb[0].mxu0
        %786 = vmatprep.mubr.bf16.mxu0 0
        %787 = vmatmul.mubr.bf16.gmra.mrb[0].mxu0 %v546
        %v788 = vpop.f32.mrb[0].mxu0
        %v789 = vadd.f32 0.0, %v788
        %v790 = vpop.f32.mrb[0].mxu0
        %v791 = vpop.f32.mrb[0].mxu0
        %v792 = vadd.f32 0.0, %v791
        %v793 = vpop.f32.mrb[0].mxu0
        %794 = vmatprep.mubr.bf16.mxu0 0
        %795 = vmatmul.mubr.bf16.gmra.mrb[0].mxu0 %v547
        %v796 = vpop.f32.mrb[0].mxu0
        %v797 = vadd.f32 0.0, %v796
        %v798 = vpop.f32.mrb[0].mxu0
        %v799 = vpop.f32.mrb[0].mxu0
        %v800 = vadd.f32 0.0, %v799
        %v801 = vpop.f32.mrb[0].mxu0
        %802 = vmatprep.mubr.bf16.mxu0 0
        %803 = vmatmul.mubr.bf16.gmra.mrb[0].mxu0 %v548
        %v804 = vpop.f32.mrb[0].mxu0
        %v805 = vadd.f32 0.0, %v804
        %v806 = vpop.f32.mrb[0].mxu0
        %v807 = vpop.f32.mrb[0].mxu0
        %v808 = vadd.f32 0.0, %v807
        %v809 = vpop.f32.mrb[0].mxu0
        %810 = vmatprep.mubr.bf16.mxu0 0
        %811 = vmatmul.mubr.bf16.gmra.mrb[0].mxu0 %v549
        %v812 = vpop.f32.mrb[0].mxu0
        %v813 = vadd.f32 0.0, %v812
        %v814 = vpop.f32.mrb[0].mxu0
        %v815 = vpop.f32.mrb[0].mxu0
        %v816 = vadd.f32 0.0, %v815
        %v817 = vpop.f32.mrb[0].mxu0
        %818 = vmatprep.mubr.bf16.mxu0 0
        %819 = vmatmul.mubr.bf16.gmra.mrb[0].mxu0 %v550
        %v820 = vpop.f32.mrb[0].mxu0
        %v821 = vadd.f32 0.0, %v820
        %v822 = vpop.f32.mrb[0].mxu0
        %v823 = vpop.f32.mrb[0].mxu0
        %v824 = vadd.f32 0.0, %v823
        %v825 = vpop.f32.mrb[0].mxu0
        %826 = vmatprep.mubr.bf16.mxu0 0
        %827 = vmatmul.mubr.bf16.gmra.mrb[0].mxu0 %v551
        %v828 = vpop.f32.mrb[0].mxu0
        %v829 = vadd.f32 0.0, %v828
        %v830 = vpop.f32.mrb[0].mxu0
        %v831 = vpop.f32.mrb[0].mxu0
        %v832 = vadd.f32 0.0, %v831
        %v833 = vpop.f32.mrb[0].mxu0
        %834 = vmatprep.mubr.bf16.mxu0 0
        %835 = vmatmul.mubr.bf16.gmra.mrb[0].mxu0 %v552
        %v836 = vpop.f32.mrb[0].mxu0
        %v837 = vadd.f32 0.0, %v836
        %v838 = vpop.f32.mrb[0].mxu0
        %v839 = vpop.f32.mrb[0].mxu0
        %v840 = vadd.f32 0.0, %v839
        %v841 = vpop.f32.mrb[0].mxu0
        %842 = vmatprep.mubr.bf16.mxu0 0
        %843 = vmatmul.mubr.bf16.gmra.mrb[0].mxu0 %v553
        %v844 = vpop.f32.mrb[0].mxu0
        %v845 = vadd.f32 0.0, %v844
        %v846 = vpop.f32.mrb[0].mxu0
        %v847 = vpop.f32.mrb[0].mxu0
        %v848 = vadd.f32 0.0, %v847
        %v849 = vpop.f32.mrb[0].mxu0
        %850 = vmatprep.mubr.bf16.mxu0 0
        %851 = vmatmul.mubr.bf16.gmra.mrb[0].mxu0 %v554
        %v852 = vpop.f32.mrb[0].mxu0
        %v853 = vadd.f32 0.0, %v852
        %v854 = vpop.f32.mrb[0].mxu0
        %v855 = vpop.f32.mrb[0].mxu0
        %v856 = vadd.f32 0.0, %v855
        %v857 = vpop.f32.mrb[0].mxu0
        %858 = vmatprep.mubr.bf16.mxu0 0
        %859 = vmatmul.mubr.bf16.gmra.mrb[0].mxu0 %v555
        %v860 = vpop.f32.mrb[0].mxu0
        %v861 = vadd.f32 0.0, %v860
        %v862 = vpop.f32.mrb[0].mxu0
        %v863 = vpop.f32.mrb[0].mxu0
        %v864 = vadd.f32 0.0, %v863
        %v865 = vpop.f32.mrb[0].mxu0
        %866 = vmatprep.mubr.bf16.mxu0 0
        %867 = vmatmul.mubr.bf16.gmra.mrb[0].mxu0 %v556
        %v868 = vpop.f32.mrb[0].mxu0
        %v869 = vadd.f32 0.0, %v868
        %v870 = vpop.f32.mrb[0].mxu0
        %v871 = vpop.f32.mrb[0].mxu0
        %v872 = vadd.f32 0.0, %v871
        %v873 = vpop.f32.mrb[0].mxu0
        %874 = vmatprep.mubr.bf16.mxu0 0
        %875 = vmatmul.mubr.bf16.gmra.mrb[0].mxu0 %v557
        %v876 = vpop.f32.mrb[0].mxu0
        %v877 = vadd.f32 0.0, %v876
        %v878 = vpop.f32.mrb[0].mxu0
        %v879 = vpop.f32.mrb[0].mxu0
        %v880 = vadd.f32 0.0, %v879
        %v881 = vpop.f32.mrb[0].mxu0
        %882 = vmatprep.mubr.bf16.mxu0 0
        %883 = vmatmul.mubr.bf16.gmra.mrb[0].mxu0 %v558
        %v884 = vpop.f32.mrb[0].mxu0
        %v885 = vadd.f32 0.0, %v884
        %v886 = vpop.f32.mrb[0].mxu0
        %v887 = vpop.f32.mrb[0].mxu0
        %v888 = vadd.f32 0.0, %v887
        %v889 = vpop.f32.mrb[0].mxu0
        %890 = vmatprep.mubr.bf16.mxu0 0
        %891 = vmatmul.mubr.bf16.gmra.mrb[0].mxu0 %v559
        %v892 = vpop.f32.mrb[0].mxu0
        %v893 = vadd.f32 0.0, %v892
        %v894 = vpop.f32.mrb[0].mxu0
        %v895 = vpop.f32.mrb[0].mxu0
        %v896 = vadd.f32 0.0, %v895
        %v897 = vpop.f32.mrb[0].mxu0
        %898 = vmatprep.mubr.bf16.mxu0 0
        %899 = vmatmul.mubr.bf16.gmra.mrb[0].mxu0 %v560
        %v900 = vpop.f32.mrb[0].mxu0
        %v901 = vadd.f32 0.0, %v900
        %v902 = vpop.f32.mrb[0].mxu0
        %v903 = vpop.f32.mrb[0].mxu0
        %v904 = vadd.f32 0.0, %v903
        %v905 = vpop.f32.mrb[0].mxu0
        %906 = vmatprep.mubr.bf16.mxu0 0
        %907 = vmatmul.mubr.bf16.gmra.mrb[0].mxu0 %v561
        %v908 = vpop.f32.mrb[0].mxu0
        %v909 = vadd.f32 0.0, %v908
        %v910 = vpop.f32.mrb[0].mxu0
        %v911 = vpop.f32.mrb[0].mxu0
        %v912 = vadd.f32 0.0, %v911
        %v913 = vpop.f32.mrb[0].mxu0
        %914 = vdwg.mxu0
        %v931 = vunpack.c.l.b16 %v450
        %v932 = vunpack.c.l.b16 %v451
        %v933 = vunpack.c.l.b16 %v452
        %v934 = vunpack.c.l.b16 %v453
        %v935 = vunpack.c.l.b16 %v454
        %v936 = vunpack.c.l.b16 %v455
        %v937 = vunpack.c.l.b16 %v456
        %v938 = vunpack.c.l.b16 %v457
        %v939 = vunpack.c.l.b16 %v458
        %v940 = vunpack.c.l.b16 %v459
        %v941 = vunpack.c.l.b16 %v460
        %v942 = vunpack.c.l.b16 %v461
        %v943 = vunpack.c.l.b16 %v462
        %v944 = vunpack.c.l.b16 %v463
        %v945 = vunpack.c.l.b16 %v464
        %v946 = vunpack.c.l.b16 %v465
        %v947 = vpack.c.b16 %v932, %v931
        %v948 = vpack.c.b16 %v934, %v933
        %v949 = vpack.c.b16 %v936, %v935
        %v950 = vpack.c.b16 %v938, %v937
        %v951 = vpack.c.b16 %v940, %v939
        %v952 = vpack.c.b16 %v942, %v941
        %v953 = vpack.c.b16 %v944, %v943
        %v954 = vpack.c.b16 %v946, %v945
        %963 = vmatprep.subr.bf16.mxu0 0
        %964 = vmatpush1.bf16.msra.mxu0 %v947
        %965 = vmatprep.subr.bf16.mxu0 0
        %966 = vmatpush1.bf16.msra.mxu0 %v948
        %967 = vmatprep.subr.bf16.mxu0 0
        %968 = vmatpush1.bf16.msra.mxu0 %v949
        %969 = vmatprep.subr.bf16.mxu0 0
        %970 = vmatpush1.bf16.msra.mxu0 %v950
        %971 = vmatprep.subr.bf16.mxu0 0
        %972 = vmatpush1.bf16.msra.mxu0 %v951
        %973 = vmatprep.subr.bf16.mxu0 0
        %974 = vmatpush1.bf16.msra.mxu0 %v952
        %975 = vmatprep.subr.bf16.mxu0 0
        %976 = vmatpush1.bf16.msra.mxu0 %v953
        %977 = vmatprep.subr.bf16.mxu0 0
        %978 = vmatpush1.bf16.msra.mxu0 %v954
        %979 = vmatprep.subr.bf16.mxu0 0
        %980 = vmatpush1.bf16.msra.mxu0 0
        %981 = vmatprep.subr.bf16.mxu0 0
        %982 = vmatpush1.bf16.msra.mxu0 0
        %983 = vmatprep.subr.bf16.mxu0 0
        %984 = vmatpush1.bf16.msra.mxu0 0
        %985 = vmatprep.subr.bf16.mxu0 0
        %986 = vmatpush1.bf16.msra.mxu0 0
        %987 = vmatprep.subr.bf16.mxu0 0
        %988 = vmatpush1.bf16.msra.mxu0 0
        %989 = vmatprep.subr.bf16.mxu0 0
        %990 = vmatpush1.bf16.msra.mxu0 0
        %991 = vmatprep.subr.bf16.mxu0 0
        %992 = vmatpush1.bf16.msra.mxu0 0
        %993 = vmatprep.subr.bf16.mxu0 0
        %994 = vmatpush1.bf16.msra.mxu0 0
        %995 = vmatprep.mubr.bf16.mxu0 0
        %996 = vmatmul.mubr.bf16.gmra.mrb[0].mxu0 %v418
        %v997 = vpop.f32.mrb[0].mxu0
        %v998 = vadd.f32 %v661, %v997
        %v999 = vpop.f32.mrb[0].mxu0
        %v1000 = vpop.f32.mrb[0].mxu0
        %v1001 = vadd.f32 %v664, %v1000
        %v1002 = vpop.f32.mrb[0].mxu0
        %1003 = vmatprep.mubr.bf16.mxu0 0
        %1004 = vmatmul.mubr.bf16.gmra.mrb[0].mxu0 %v419
        %v1005 = vpop.f32.mrb[0].mxu0
        %v1006 = vadd.f32 %v669, %v1005
        %v1007 = vpop.f32.mrb[0].mxu0
        %v1008 = vpop.f32.mrb[0].mxu0
        %v1009 = vadd.f32 %v672, %v1008
        %v1010 = vpop.f32.mrb[0].mxu0
        %1011 = vmatprep.mubr.bf16.mxu0 0
        %1012 = vmatmul.mubr.bf16.gmra.mrb[0].mxu0 %v420
        %v1013 = vpop.f32.mrb[0].mxu0
        %v1014 = vadd.f32 %v677, %v1013
        %v1015 = vpop.f32.mrb[0].mxu0
        %v1016 = vpop.f32.mrb[0].mxu0
        %v1017 = vadd.f32 %v680, %v1016
        %v1018 = vpop.f32.mrb[0].mxu0
        %1019 = vmatprep.mubr.bf16.mxu0 0
        %1020 = vmatmul.mubr.bf16.gmra.mrb[0].mxu0 %v421
        %v1021 = vpop.f32.mrb[0].mxu0
        %v1022 = vadd.f32 %v685, %v1021
        %v1023 = vpop.f32.mrb[0].mxu0
        %v1024 = vpop.f32.mrb[0].mxu0
        %v1025 = vadd.f32 %v688, %v1024
        %v1026 = vpop.f32.mrb[0].mxu0
        %1027 = vmatprep.mubr.bf16.mxu0 0
        %1028 = vmatmul.mubr.bf16.gmra.mrb[0].mxu0 %v422
        %v1029 = vpop.f32.mrb[0].mxu0
        %v1030 = vadd.f32 %v693, %v1029
        %v1031 = vpop.f32.mrb[0].mxu0
        %v1032 = vpop.f32.mrb[0].mxu0
        %v1033 = vadd.f32 %v696, %v1032
        %v1034 = vpop.f32.mrb[0].mxu0
        %1035 = vmatprep.mubr.bf16.mxu0 0
        %1036 = vmatmul.mubr.bf16.gmra.mrb[0].mxu0 %v423
        %v1037 = vpop.f32.mrb[0].mxu0
        %v1038 = vadd.f32 %v701, %v1037
        %v1039 = vpop.f32.mrb[0].mxu0
        %v1040 = vpop.f32.mrb[0].mxu0
        %v1041 = vadd.f32 %v704, %v1040
        %v1042 = vpop.f32.mrb[0].mxu0
        %1043 = vmatprep.mubr.bf16.mxu0 0
        %1044 = vmatmul.mubr.bf16.gmra.mrb[0].mxu0 %v424
        %v1045 = vpop.f32.mrb[0].mxu0
        %v1046 = vadd.f32 %v709, %v1045
        %v1047 = vpop.f32.mrb[0].mxu0
        %v1048 = vpop.f32.mrb[0].mxu0
        %v1049 = vadd.f32 %v712, %v1048
        %v1050 = vpop.f32.mrb[0].mxu0
        %1051 = vmatprep.mubr.bf16.mxu0 0
        %1052 = vmatmul.mubr.bf16.gmra.mrb[0].mxu0 %v425
        %v1053 = vpop.f32.mrb[0].mxu0
        %v1054 = vadd.f32 %v717, %v1053
        %v1055 = vpop.f32.mrb[0].mxu0
        %v1056 = vpop.f32.mrb[0].mxu0
        %v1057 = vadd.f32 %v720, %v1056
        %v1058 = vpop.f32.mrb[0].mxu0
        %1059 = vmatprep.mubr.bf16.mxu0 0
        %1060 = vmatmul.mubr.bf16.gmra.mrb[0].mxu0 %v426
        %v1061 = vpop.f32.mrb[0].mxu0
        %v1062 = vadd.f32 %v725, %v1061
        %v1063 = vpop.f32.mrb[0].mxu0
        %v1064 = vpop.f32.mrb[0].mxu0
        %v1065 = vadd.f32 %v728, %v1064
        %v1066 = vpop.f32.mrb[0].mxu0
        %1067 = vmatprep.mubr.bf16.mxu0 0
        %1068 = vmatmul.mubr.bf16.gmra.mrb[0].mxu0 %v427
        %v1069 = vpop.f32.mrb[0].mxu0
        %v1070 = vadd.f32 %v733, %v1069
        %v1071 = vpop.f32.mrb[0].mxu0
        %v1072 = vpop.f32.mrb[0].mxu0
        %v1073 = vadd.f32 %v736, %v1072
        %v1074 = vpop.f32.mrb[0].mxu0
        %1075 = vmatprep.mubr.bf16.mxu0 0
        %1076 = vmatmul.mubr.bf16.gmra.mrb[0].mxu0 %v428
        %v1077 = vpop.f32.mrb[0].mxu0
        %v1078 = vadd.f32 %v741, %v1077
        %v1079 = vpop.f32.mrb[0].mxu0
        %v1080 = vpop.f32.mrb[0].mxu0
        %v1081 = vadd.f32 %v744, %v1080
        %v1082 = vpop.f32.mrb[0].mxu0
        %1083 = vmatprep.mubr.bf16.mxu0 0
        %1084 = vmatmul.mubr.bf16.gmra.mrb[0].mxu0 %v429
        %v1085 = vpop.f32.mrb[0].mxu0
        %v1086 = vadd.f32 %v749, %v1085
        %v1087 = vpop.f32.mrb[0].mxu0
        %v1088 = vpop.f32.mrb[0].mxu0
        %v1089 = vadd.f32 %v752, %v1088
        %v1090 = vpop.f32.mrb[0].mxu0
        %1091 = vmatprep.mubr.bf16.mxu0 0
        %1092 = vmatmul.mubr.bf16.gmra.mrb[0].mxu0 %v430
        %v1093 = vpop.f32.mrb[0].mxu0
        %v1094 = vadd.f32 %v757, %v1093
        %v1095 = vpop.f32.mrb[0].mxu0
        %v1096 = vpop.f32.mrb[0].mxu0
        %v1097 = vadd.f32 %v760, %v1096
        %v1098 = vpop.f32.mrb[0].mxu0
        %1099 = vmatprep.mubr.bf16.mxu0 0
        %1100 = vmatmul.mubr.bf16.gmra.mrb[0].mxu0 %v431
        %v1101 = vpop.f32.mrb[0].mxu0
        %v1102 = vadd.f32 %v765, %v1101
        %v1103 = vpop.f32.mrb[0].mxu0
        %v1104 = vpop.f32.mrb[0].mxu0
        %v1105 = vadd.f32 %v768, %v1104
        %v1106 = vpop.f32.mrb[0].mxu0
        %1107 = vmatprep.mubr.bf16.mxu0 0
        %1108 = vmatmul.mubr.bf16.gmra.mrb[0].mxu0 %v432
        %v1109 = vpop.f32.mrb[0].mxu0
        %v1110 = vadd.f32 %v773, %v1109
        %v1111 = vpop.f32.mrb[0].mxu0
        %v1112 = vpop.f32.mrb[0].mxu0
        %v1113 = vadd.f32 %v776, %v1112
        %v1114 = vpop.f32.mrb[0].mxu0
        %1115 = vmatprep.mubr.bf16.mxu0 0
        %1116 = vmatmul.mubr.bf16.gmra.mrb[0].mxu0 %v433
        %v1117 = vpop.f32.mrb[0].mxu0
        %v1118 = vadd.f32 %v781, %v1117
        %v1119 = vpop.f32.mrb[0].mxu0
        %v1120 = vpop.f32.mrb[0].mxu0
        %v1121 = vadd.f32 %v784, %v1120
        %v1122 = vpop.f32.mrb[0].mxu0
        %1123 = vmatprep.mubr.bf16.mxu0 0
        %1124 = vmatmul.mubr.bf16.gmra.mrb[0].mxu0 %v434
        %v1125 = vpop.f32.mrb[0].mxu0
        %v1126 = vadd.f32 %v789, %v1125
        %v1127 = vpop.f32.mrb[0].mxu0
        %v1128 = vpop.f32.mrb[0].mxu0
        %v1129 = vadd.f32 %v792, %v1128
        %v1130 = vpop.f32.mrb[0].mxu0
        %1131 = vmatprep.mubr.bf16.mxu0 0
        %1132 = vmatmul.mubr.bf16.gmra.mrb[0].mxu0 %v435
        %v1133 = vpop.f32.mrb[0].mxu0
        %v1134 = vadd.f32 %v797, %v1133
        %v1135 = vpop.f32.mrb[0].mxu0
        %v1136 = vpop.f32.mrb[0].mxu0
        %v1137 = vadd.f32 %v800, %v1136
        %v1138 = vpop.f32.mrb[0].mxu0
        %1139 = vmatprep.mubr.bf16.mxu0 0
        %1140 = vmatmul.mubr.bf16.gmra.mrb[0].mxu0 %v436
        %v1141 = vpop.f32.mrb[0].mxu0
        %v1142 = vadd.f32 %v805, %v1141
        %v1143 = vpop.f32.mrb[0].mxu0
        %v1144 = vpop.f32.mrb[0].mxu0
        %v1145 = vadd.f32 %v808, %v1144
        %v1146 = vpop.f32.mrb[0].mxu0
        %1147 = vmatprep.mubr.bf16.mxu0 0
        %1148 = vmatmul.mubr.bf16.gmra.mrb[0].mxu0 %v437
        %v1149 = vpop.f32.mrb[0].mxu0
        %v1150 = vadd.f32 %v813, %v1149
        %v1151 = vpop.f32.mrb[0].mxu0
        %v1152 = vpop.f32.mrb[0].mxu0
        %v1153 = vadd.f32 %v816, %v1152
        %v1154 = vpop.f32.mrb[0].mxu0
        %1155 = vmatprep.mubr.bf16.mxu0 0
        %1156 = vmatmul.mubr.bf16.gmra.mrb[0].mxu0 %v438
        %v1157 = vpop.f32.mrb[0].mxu0
        %v1158 = vadd.f32 %v821, %v1157
        %v1159 = vpop.f32.mrb[0].mxu0
        %v1160 = vpop.f32.mrb[0].mxu0
        %v1161 = vadd.f32 %v824, %v1160
        %v1162 = vpop.f32.mrb[0].mxu0
        %1163 = vmatprep.mubr.bf16.mxu0 0
        %1164 = vmatmul.mubr.bf16.gmra.mrb[0].mxu0 %v439
        %v1165 = vpop.f32.mrb[0].mxu0
        %v1166 = vadd.f32 %v829, %v1165
        %v1167 = vpop.f32.mrb[0].mxu0
        %v1168 = vpop.f32.mrb[0].mxu0
        %v1169 = vadd.f32 %v832, %v1168
        %v1170 = vpop.f32.mrb[0].mxu0
        %1171 = vmatprep.mubr.bf16.mxu0 0
        %1172 = vmatmul.mubr.bf16.gmra.mrb[0].mxu0 %v440
        %v1173 = vpop.f32.mrb[0].mxu0
        %v1174 = vadd.f32 %v837, %v1173
        %v1175 = vpop.f32.mrb[0].mxu0
        %v1176 = vpop.f32.mrb[0].mxu0
        %v1177 = vadd.f32 %v840, %v1176
        %v1178 = vpop.f32.mrb[0].mxu0
        %1179 = vmatprep.mubr.bf16.mxu0 0
        %1180 = vmatmul.mubr.bf16.gmra.mrb[0].mxu0 %v441
        %v1181 = vpop.f32.mrb[0].mxu0
        %v1182 = vadd.f32 %v845, %v1181
        %v1183 = vpop.f32.mrb[0].mxu0
        %v1184 = vpop.f32.mrb[0].mxu0
        %v1185 = vadd.f32 %v848, %v1184
        %v1186 = vpop.f32.mrb[0].mxu0
        %1187 = vmatprep.mubr.bf16.mxu0 0
        %1188 = vmatmul.mubr.bf16.gmra.mrb[0].mxu0 %v442
        %v1189 = vpop.f32.mrb[0].mxu0
        %v1190 = vadd.f32 %v853, %v1189
        %v1191 = vpop.f32.mrb[0].mxu0
        %v1192 = vpop.f32.mrb[0].mxu0
        %v1193 = vadd.f32 %v856, %v1192
        %v1194 = vpop.f32.mrb[0].mxu0
        %1195 = vmatprep.mubr.bf16.mxu0 0
        %1196 = vmatmul.mubr.bf16.gmra.mrb[0].mxu0 %v443
        %v1197 = vpop.f32.mrb[0].mxu0
        %v1198 = vadd.f32 %v861, %v1197
        %v1199 = vpop.f32.mrb[0].mxu0
        %v1200 = vpop.f32.mrb[0].mxu0
        %v1201 = vadd.f32 %v864, %v1200
        %v1202 = vpop.f32.mrb[0].mxu0
        %1203 = vmatprep.mubr.bf16.mxu0 0
        %1204 = vmatmul.mubr.bf16.gmra.mrb[0].mxu0 %v444
        %v1205 = vpop.f32.mrb[0].mxu0
        %v1206 = vadd.f32 %v869, %v1205
        %v1207 = vpop.f32.mrb[0].mxu0
        %v1208 = vpop.f32.mrb[0].mxu0
        %v1209 = vadd.f32 %v872, %v1208
        %v1210 = vpop.f32.mrb[0].mxu0
        %1211 = vmatprep.mubr.bf16.mxu0 0
        %1212 = vmatmul.mubr.bf16.gmra.mrb[0].mxu0 %v445
        %v1213 = vpop.f32.mrb[0].mxu0
        %v1214 = vadd.f32 %v877, %v1213
        %v1215 = vpop.f32.mrb[0].mxu0
        %v1216 = vpop.f32.mrb[0].mxu0
        %v1217 = vadd.f32 %v880, %v1216
        %v1218 = vpop.f32.mrb[0].mxu0
        %1219 = vmatprep.mubr.bf16.mxu0 0
        %1220 = vmatmul.mubr.bf16.gmra.mrb[0].mxu0 %v446
        %v1221 = vpop.f32.mrb[0].mxu0
        %v1222 = vadd.f32 %v885, %v1221
        %v1223 = vpop.f32.mrb[0].mxu0
        %v1224 = vpop.f32.mrb[0].mxu0
        %v1225 = vadd.f32 %v888, %v1224
        %v1226 = vpop.f32.mrb[0].mxu0
        %1227 = vmatprep.mubr.bf16.mxu0 0
        %1228 = vmatmul.mubr.bf16.gmra.mrb[0].mxu0 %v447
        %v1229 = vpop.f32.mrb[0].mxu0
        %v1230 = vadd.f32 %v893, %v1229
        %v1231 = vpop.f32.mrb[0].mxu0
        %v1232 = vpop.f32.mrb[0].mxu0
        %v1233 = vadd.f32 %v896, %v1232
        %v1234 = vpop.f32.mrb[0].mxu0
        %1235 = vmatprep.mubr.bf16.mxu0 0
        %1236 = vmatmul.mubr.bf16.gmra.mrb[0].mxu0 %v448
        %v1237 = vpop.f32.mrb[0].mxu0
        %v1238 = vadd.f32 %v901, %v1237
        %v1239 = vpop.f32.mrb[0].mxu0
        %v1240 = vpop.f32.mrb[0].mxu0
        %v1241 = vadd.f32 %v904, %v1240
        %v1242 = vpop.f32.mrb[0].mxu0
        %1243 = vmatprep.mubr.bf16.mxu0 0
        %1244 = vmatmul.mubr.bf16.gmra.mrb[0].mxu0 %v449
        %v1245 = vpop.f32.mrb[0].mxu0
        %v1246 = vadd.f32 %v909, %v1245
        %v1247 = vpop.f32.mrb[0].mxu0
        %v1248 = vpop.f32.mrb[0].mxu0
        %v1249 = vadd.f32 %v912, %v1248
        %v1250 = vpop.f32.mrb[0].mxu0
        %1251 = vdwg.mxu0
        %v1252 = vld [vmem:[%s339] sm:$0x1]
        %v1253 = vadd.f32 %v998, %v1001
        %v1254 = vadd.f32 %v1253, %v1006
        %v1255 = vadd.f32 %v1254, %v1009
        %v1256 = vadd.f32 %v1255, %v1014
        %v1257 = vadd.f32 %v1256, %v1017
        %v1258 = vadd.f32 %v1257, %v1022
        %v1259 = vadd.f32 %v1258, %v1025
        %v1260 = vadd.f32 %v1259, %v1030
        %v1261 = vadd.f32 %v1260, %v1033
        %v1262 = vadd.f32 %v1261, %v1038
        %v1263 = vadd.f32 %v1262, %v1041
        %v1264 = vadd.f32 %v1263, %v1046
        %v1265 = vadd.f32 %v1264, %v1049
        %v1266 = vadd.f32 %v1265, %v1054
        %v1267 = vadd.f32 %v1266, %v1057
        %v1268 = vadd.f32 %v1267, %v1062
        %v1269 = vadd.f32 %v1268, %v1065
        %v1270 = vadd.f32 %v1269, %v1070
        %v1271 = vadd.f32 %v1270, %v1073
        %v1272 = vadd.f32 %v1271, %v1078
        %v1273 = vadd.f32 %v1272, %v1081
        %v1274 = vadd.f32 %v1273, %v1086
        %v1275 = vadd.f32 %v1274, %v1089
        %v1276 = vadd.f32 %v1275, %v1094
        %v1277 = vadd.f32 %v1276, %v1097
        %v1278 = vadd.f32 %v1277, %v1102
        %v1279 = vadd.f32 %v1278, %v1105
        %v1280 = vadd.f32 %v1279, %v1110
        %v1281 = vadd.f32 %v1280, %v1113
        %v1282 = vadd.f32 %v1281, %v1118
        %v1283 = vadd.f32 %v1282, %v1121
        %v1284 = vadd.f32 %v1283, %v1126
        %v1285 = vadd.f32 %v1284, %v1129
        %v1286 = vadd.f32 %v1285, %v1134
        %v1287 = vadd.f32 %v1286, %v1137
        %v1288 = vadd.f32 %v1287, %v1142
        %v1289 = vadd.f32 %v1288, %v1145
        %v1290 = vadd.f32 %v1289, %v1150
        %v1291 = vadd.f32 %v1290, %v1153
        %v1292 = vadd.f32 %v1291, %v1158
        %v1293 = vadd.f32 %v1292, %v1161
        %v1294 = vadd.f32 %v1293, %v1166
        %v1295 = vadd.f32 %v1294, %v1169
        %v1296 = vadd.f32 %v1295, %v1174
        %v1297 = vadd.f32 %v1296, %v1177
        %v1298 = vadd.f32 %v1297, %v1182
        %v1299 = vadd.f32 %v1298, %v1185
        %v1300 = vadd.f32 %v1299, %v1190
        %v1301 = vadd.f32 %v1300, %v1193
        %v1302 = vadd.f32 %v1301, %v1198
        %v1303 = vadd.f32 %v1302, %v1201
        %v1304 = vadd.f32 %v1303, %v1206
        %v1305 = vadd.f32 %v1304, %v1209
        %v1306 = vadd.f32 %v1305, %v1214
        %v1307 = vadd.f32 %v1306, %v1217
        %v1308 = vadd.f32 %v1307, %v1222
        %v1309 = vadd.f32 %v1308, %v1225
        %v1310 = vadd.f32 %v1309, %v1230
        %v1311 = vadd.f32 %v1310, %v1233
        %v1312 = vadd.f32 %v1311, %v1238
        %v1313 = vadd.f32 %v1312, %v1241
        %v1314 = vadd.f32 %v1313, %v1246
        %v1315 = vadd.f32 %v1314, %v1249
        %v1316 = vrot.slane %v1315, 4
        %v1317 = vadd.f32 %v1315, %v1316
        %v1318 = vrot.slane %v1317, 2
        %v1319 = vadd.f32 %v1317, %v1318
        %v1320 = vrot.slane %v1319, 1
        %v1321 = vadd.f32 %v1319, %v1320
        %v1322 = vadd.f32 %v1252, %v1321
        %1323 = vst [vmem:[%s339] sm:$0x1] %v1322
        %v1324 = vld [vmem:[%s346] sm:$0x1]
        %v1325 = vmax.f32 %v998, %v1014
        %v1326 = vmax.f32 %v1001, %v1017
        %v1327 = vmax.f32 %v1006, %v1022
        %v1328 = vmax.f32 %v1009, %v1025
        %v1329 = vmax.f32 %v1325, %v1030
        %v1330 = vmax.f32 %v1326, %v1033
        %v1331 = vmax.f32 %v1327, %v1038
        %v1332 = vmax.f32 %v1328, %v1041
        %v1333 = vmax.f32 %v1329, %v1046
        %v1334 = vmax.f32 %v1330, %v1049
        %v1335 = vmax.f32 %v1331, %v1054
        %v1336 = vmax.f32 %v1332, %v1057
        %v1337 = vmax.f32 %v1333, %v1062
        %v1338 = vmax.f32 %v1334, %v1065
        %v1339 = vmax.f32 %v1335, %v1070
        %v1340 = vmax.f32 %v1336, %v1073
        %v1341 = vmax.f32 %v1337, %v1078
        %v1342 = vmax.f32 %v1338, %v1081
        %v1343 = vmax.f32 %v1339, %v1086
        %v1344 = vmax.f32 %v1340, %v1089
        %v1345 = vmax.f32 %v1341, %v1094
        %v1346 = vmax.f32 %v1342, %v1097
        %v1347 = vmax.f32 %v1343, %v1102
        %v1348 = vmax.f32 %v1344, %v1105
        %v1349 = vmax.f32 %v1345, %v1110
        %v1350 = vmax.f32 %v1346, %v1113
        %v1351 = vmax.f32 %v1347, %v1118
        %v1352 = vmax.f32 %v1348, %v1121
        %v1353 = vmax.f32 %v1349, %v1126
        %v1354 = vmax.f32 %v1350, %v1129
        %v1355 = vmax.f32 %v1351, %v1134
        %v1356 = vmax.f32 %v1352, %v1137
        %v1357 = vmax.f32 %v1353, %v1142
        %v1358 = vmax.f32 %v1354, %v1145
        %v1359 = vmax.f32 %v1355, %v1150
        %v1360 = vmax.f32 %v1356, %v1153
        %v1361 = vmax.f32 %v1357, %v1158
        %v1362 = vmax.f32 %v1358, %v1161
        %v1363 = vmax.f32 %v1359, %v1166
        %v1364 = vmax.f32 %v1360, %v1169
        %v1365 = vmax.f32 %v1361, %v1174
        %v1366 = vmax.f32 %v1362, %v1177
        %v1367 = vmax.f32 %v1363, %v1182
        %v1368 = vmax.f32 %v1364, %v1185
        %v1369 = vmax.f32 %v1365, %v1190
        %v1370 = vmax.f32 %v1366, %v1193
        %v1371 = vmax.f32 %v1367, %v1198
        %v1372 = vmax.f32 %v1368, %v1201
        %v1373 = vmax.f32 %v1369, %v1206
        %v1374 = vmax.f32 %v1370, %v1209
        %v1375 = vmax.f32 %v1371, %v1214
        %v1376 = vmax.f32 %v1372, %v1217
        %v1377 = vmax.f32 %v1373, %v1222
        %v1378 = vmax.f32 %v1374, %v1225
        %v1379 = vmax.f32 %v1375, %v1230
        %v1380 = vmax.f32 %v1376, %v1233
        %v1381 = vmax.f32 %v1377, %v1238
        %v1382 = vmax.f32 %v1378, %v1241
        %v1383 = vmax.f32 %v1379, %v1246
        %v1384 = vmax.f32 %v1380, %v1249
        %v1385 = vmax.f32 %v1381, %v1382
        %v1386 = vmax.f32 %v1383, %v1384
        %v1387 = vmax.f32 %v1385, %v1386
        %v1388 = vrot.slane %v1387, 4
        %v1389 = vmax.f32 %v1387, %v1388
        %v1390 = vrot.slane %v1389, 2
        %v1391 = vmax.f32 %v1389, %v1390
        %v1392 = vrot.slane %v1391, 1
        %v1393 = vmax.f32 %v1391, %v1392
        %v1394 = vmax.f32 %v1324, %v1393
        %1395 = vst [vmem:[%s346] sm:$0x1] %v1394
        %p1396 = scmp.lt.s32.totalorder %s28, 1
        %s1397 = scalar_select %p1396, %s28, 1
        %p1398 = scmp.lt.s32.totalorder %s29, 1
        %s1399 = scalar_select %p1398, %s29, 1
        %s1400 = smul.addr %s1397, 2
        %s1401 = sadd.s32 %s1399, %s1400
        %s1402 = scalar_lea.vmem %s4, %s1401
        %p1403 = scmp.lt.s32.totalorder %s28, 1
        %s1404 = scalar_select %p1403, %s28, 1
        %p1405 = scmp.lt.s32.totalorder %s29, 1
        %s1406 = scalar_select %p1405, %s29, 1
        %s1407 = smul.addr %s1404, 2
        %s1408 = sadd.s32 %s1406, %s1407
        %s1409 = scalar_lea.vmem %s5, %s1408
        // Predicated region
        $region49: #{sagate_pallas.2} parent=35 // pred_check
          %p1410 = pneg %p164
        $region50: #{sagate_pallas.2} parent=35 // pred_check_branch
          %1412 = sbr.rel (%p1410) target = $region52
        $region51: #{sagate_pallas.2} parent=35 // pred_region
          _
        $region52: #{sagate_pallas.2} parent=35 // pred_fallthru
          _
        // Predicated region
        $region53: #{sagate_pallas.2} parent=35 // pred_check
          %p1413 = pneg %p192
        $region54: #{sagate_pallas.2} parent=35 // pred_check_branch
          %1415 = sbr.rel (%p1413) target = $region56
        $region55: #{sagate_pallas.2} parent=35 // pred_region
          _
        $region56: #{sagate_pallas.2} parent=35 // pred_fallthru
          _
      $region36: #{sagate_pallas.2} parent=5 // pred_fallthru
        _
      %p1416 = scmp.le.s32.totalorder 2, %s18
      // Predicated region
      $region57: #{sagate_pallas.2} parent=5 // pred_check
        %p1417 = pneg %p1416
      $region58: #{sagate_pallas.2} parent=5 // pred_check_branch
        %1419 = sbr.rel (%p1417) target = $region60
      $region59: #{sagate_pallas.2} parent=5 // pred_region
        %s1420 = ssub.s32 %s18, 2
        // Predicated region
        $region61: #{sagate_pallas.2} parent=59 // pred_check
          %p1421 = pneg %p170
        $region62: #{sagate_pallas.2} parent=59 // pred_check_branch
          %1423 = sbr.rel (%p1421) target = $region64
        $region63: #{sagate_pallas.2} parent=59 // pred_region
          %p1424 = scmp.lt.s32.totalorder %s31, 1
          %s1425 = scalar_select %p1424, %s31, 1
          %p1426 = scmp.lt.s32.totalorder %s32, 1
          %s1427 = scalar_select %p1426, %s32, 1
          %s1428 = smul.addr %s1425, 2
          %s1429 = sadd.s32 %s1427, %s1428
          %s1430 = scalar_lea.vmem %s4, %s1429
        $region64: #{sagate_pallas.2} parent=59 // pred_fallthru
          _
        // Predicated region
        $region65: #{sagate_pallas.2} parent=59 // pred_check
          %p1431 = pneg %p198
        $region66: #{sagate_pallas.2} parent=59 // pred_check_branch
          %1433 = sbr.rel (%p1431) target = $region68
        $region67: #{sagate_pallas.2} parent=59 // pred_region
          %p1434 = scmp.lt.s32.totalorder %s31, 1
          %s1435 = scalar_select %p1434, %s31, 1
          %p1436 = scmp.lt.s32.totalorder %s32, 1
          %s1437 = scalar_select %p1436, %s32, 1
          %s1438 = smul.addr %s1435, 2
          %s1439 = sadd.s32 %s1437, %s1438
          %s1440 = scalar_lea.vmem %s5, %s1439
        $region68: #{sagate_pallas.2} parent=59 // pred_fallthru
          _
      $region60: #{sagate_pallas.2} parent=5 // pred_fallthru
        _
    $region6: #{sagate_pallas.2} parent=1 // loop_footer
      %s22 = sadd.s32 1, %s18
    $region7: #{sagate_pallas.2} parent=1 // loop_footer_branch
      %17 = sbr.rel target = $region3
    $region8: #{sagate_pallas.2} parent=1 // loop_exit
      _
    %1441 = vsyncpa [#allocation3], 1
    %s1442 = scalar_lea.sflag [#allocation3], 1
    %1443 = vsyncpa %s1442, 1
    %1444 = vsyncpa [#allocation5], 1
    %s1445 = scalar_lea.sflag [#allocation5], 1
    %1446 = vsyncpa %s1445, 1

// kernel: sagate_pallas.3
$region0: #{sagate_pallas.3}
  #allocation0 [shape = 'u32[]', space=smem, size = 0x4, offset = 0x4, fixed_abs, tag = 'smem constant byte address 0x4 - core index']
  #allocation1 [shape = 'u32[144,128]{1,0:T(1,128)}', space=vmem, size = 0x12000, scoped, tag = 'internal scratch']
  %s0 = inlined_call_operand.vmem [shape: f32[2,1024,128], index: 0, kind: input, shape index: {}]
  %s1 = inlined_call_operand.vmem [shape: f32[2,1024,128], index: 1, kind: input, shape index: {}]
  %s2 = inlined_call_operand.vmem [shape: bf16[2,128,128], index: 2, kind: input, shape index: {}]
  %s3 = inlined_call_operand.vmem [shape: bf16[2,128,128], index: 3, kind: input, shape index: {}]
  %s4 = inlined_call_operand.vmem [shape: f32[1,128], index: 4, kind: input, shape index: {}]
  %s5 = inlined_call_operand.hbm [shape: f32[2,1024,128], index: 5, kind: output, shape index: {}]
  %s6 = sld [smem:[#allocation0]]
  $region53: #{sagate_pallas.3} parent=0
    _
  %s8 = ssub.s32 1, %s6
  %s9 = scalar_select 0, %s8, %s6
  $region1: #{sagate_pallas.3} parent=0
    #allocation2 [shape = 'u8[524288]{0}', space=vmem, size = 0x80000, scoped, tag = 'output window, operand 0']
    #allocation3 [shape = 's32[2]{0}', space=sflag, size = 0x8, scoped, tag = 'scoped memory for sagate_pallas.3']
    %10 = vsyncpa [#allocation3], 0
    %s11 = scalar_lea.sflag [#allocation3], 1
    %12 = vsyncpa %s11, 0
    loop: start=0, step=1, limit=6
    $region2: #{sagate_pallas.3} parent=1 // loop_pre_header
      _
    $region3: #{sagate_pallas.3} parent=1 // loop_header
      %s14 = sphi 0, %s18
      %p15 = scmp.ge.s32.totalorder %s14, 6
      %s21 = sphi 0, %s33
      %s22 = sphi 0, %s29
      %s23 = sphi 0, %s21
      %s24 = sphi 0, %s22
      %s25 = sphi 0, %s23
      %s26 = sphi 0, %s24
      %s38 = sphi 0, %s40
      %s41 = sphi 0, %s38
      %s42 = sphi 0, %s41
      %s58 = sphi 0, %s42
      %s66 = sphi 0, %s68
      %s69 = sphi 0, %s66
      %s70 = sphi 0, %s69
      %s86 = sphi 0, %s70
      %s92 = sphi 0, %s94
      %s95 = sphi 0, %s92
      %s96 = sphi 0, %s95
      %s112 = sphi 0, %s96
      %s118 = sphi 0, %s120
      %s121 = sphi 0, %s118
      %s122 = sphi 0, %s121
      %s138 = sphi 0, %s122
      %s142 = sphi 0, %s142
      %s144 = sphi 0, %s142
      %s145 = sphi 0, %s144
      %s159 = sphi 0, %s145
      %s167 = sphi 0, %s169
      %s170 = sphi 0, %s167
      %s171 = sphi 0, %s170
      %s187 = sphi 0, %s171
    $region4: #{sagate_pallas.3} parent=1 // loop_header_branch
      %17 = sbr.rel (%p15) target = $region8
    $region5: #{sagate_pallas.3} parent=1 // loop_body
      %s19 = ssub.s32 %s14, 1
      %s20 = ssub.s32 %s14, 2
      %s27 = sadd.s32 1, %s22
      %p28 = scmp.ge.s32.totalorder %s27, 2
      %s29 = scalar_select %p28, 0, %s27
      %s30 = sadd.s32 1, %s21
      %s31 = scalar_select %p28, %s30, %s21
      %p32 = scmp.ge.s32.totalorder %s31, 2
      %s33 = scalar_select %p32, 0, %s31
      %s34 = ssub.s32 %s21, %s33
      %s35 = ssub.s32 %s22, %s29
      %s36 = sor.u32 %s34, %s35
      %p37 = scmp.eq.s32.totalorder %s36, 0
      %s39 = sadd.s32 %s38, 1
      %s40 = scalar_select %p37, %s38, %s39
      %p43 = pneg %p37
      %p44 = scmp.eq.s32.totalorder %s14, 3
      %p45 = por %p43, %p44
      %p46 = scmp.ne.s32.totalorder %s38, %s41
      %p47 = scmp.eq.s32.totalorder %s14, 0
      %p48 = por %p46, %p47
      %p49 = scmp.ne.s32.totalorder %s38, %s41
      %p50 = scmp.eq.s32.totalorder %s19, 3
      %p51 = por %p49, %p50
      %p52 = scmp.ne.s32.totalorder %s41, %s42
      %p53 = scmp.eq.s32.totalorder %s19, 0
      %p54 = por %p52, %p53
      %p55 = scmp.ne.s32.totalorder %s41, %s42
      %p56 = scmp.eq.s32.totalorder %s20, 3
      %p57 = por %p55, %p56
      %p59 = scmp.ne.s32.totalorder %s42, %s58
      %p60 = scmp.eq.s32.totalorder %s20, 0
      %p61 = por %p59, %p60
      %s62 = ssub.s32 %s21, %s33
      %s63 = ssub.s32 %s22, %s29
      %s64 = sor.u32 %s62, %s63
      %p65 = scmp.eq.s32.totalorder %s64, 0
      %s67 = sadd.s32 %s66, 1
      %s68 = scalar_select %p65, %s66, %s67
      %p71 = pneg %p65
      %p72 = scmp.eq.s32.totalorder %s14, 3
      %p73 = por %p71, %p72
      %p74 = scmp.ne.s32.totalorder %s66, %s69
      %p75 = scmp.eq.s32.totalorder %s14, 0
      %p76 = por %p74, %p75
      %p77 = scmp.ne.s32.totalorder %s66, %s69
      %p78 = scmp.eq.s32.totalorder %s19, 3
      %p79 = por %p77, %p78
      %p80 = scmp.ne.s32.totalorder %s69, %s70
      %p81 = scmp.eq.s32.totalorder %s19, 0
      %p82 = por %p80, %p81
      %p83 = scmp.ne.s32.totalorder %s69, %s70
      %p84 = scmp.eq.s32.totalorder %s20, 3
      %p85 = por %p83, %p84
      %p87 = scmp.ne.s32.totalorder %s70, %s86
      %p88 = scmp.eq.s32.totalorder %s20, 0
      %p89 = por %p87, %p88
      %s90 = ssub.s32 %s21, %s33
      %p91 = scmp.eq.s32.totalorder %s90, 0
      %s93 = sadd.s32 %s92, 1
      %s94 = scalar_select %p91, %s92, %s93
      %p97 = pneg %p91
      %p98 = scmp.eq.s32.totalorder %s14, 3
      %p99 = por %p97, %p98
      %p100 = scmp.ne.s32.totalorder %s92, %s95
      %p101 = scmp.eq.s32.totalorder %s14, 0
      %p102 = por %p100, %p101
      %p103 = scmp.ne.s32.totalorder %s92, %s95
      %p104 = scmp.eq.s32.totalorder %s19, 3
      %p105 = por %p103, %p104
      %p106 = scmp.ne.s32.totalorder %s95, %s96
      %p107 = scmp.eq.s32.totalorder %s19, 0
      %p108 = por %p106, %p107
      %p109 = scmp.ne.s32.totalorder %s95, %s96
      %p110 = scmp.eq.s32.totalorder %s20, 3
      %p111 = por %p109, %p110
      %p113 = scmp.ne.s32.totalorder %s96, %s112
      %p114 = scmp.eq.s32.totalorder %s20, 0
      %p115 = por %p113, %p114
      %s116 = ssub.s32 %s21, %s33
      %p117 = scmp.eq.s32.totalorder %s116, 0
      %s119 = sadd.s32 %s118, 1
      %s120 = scalar_select %p117, %s118, %s119
      %p123 = pneg %p117
      %p124 = scmp.eq.s32.totalorder %s14, 3
      %p125 = por %p123, %p124
      %p126 = scmp.ne.s32.totalorder %s118, %s121
      %p127 = scmp.eq.s32.totalorder %s14, 0
      %p128 = por %p126, %p127
      %p129 = scmp.ne.s32.totalorder %s118, %s121
      %p130 = scmp.eq.s32.totalorder %s19, 3
      %p131 = por %p129, %p130
      %p132 = scmp.ne.s32.totalorder %s121, %s122
      %p133 = scmp.eq.s32.totalorder %s19, 0
      %p134 = por %p132, %p133
      %p135 = scmp.ne.s32.totalorder %s121, %s122
      %p136 = scmp.eq.s32.totalorder %s20, 3
      %p137 = por %p135, %p136
      %p139 = scmp.ne.s32.totalorder %s122, %s138
      %p140 = scmp.eq.s32.totalorder %s20, 0
      %p141 = por %p139, %p140
      %s143 = sadd.s32 %s142, 1
      %p146 = scmp.eq.s32.totalorder %s14, 3
      %p147 = scmp.ne.s32.totalorder %s142, %s144
      %p148 = scmp.eq.s32.totalorder %s14, 0
      %p149 = por %p147, %p148
      %p150 = scmp.ne.s32.totalorder %s142, %s144
      %p151 = scmp.eq.s32.totalorder %s19, 3
      %p152 = por %p150, %p151
      %p153 = scmp.ne.s32.totalorder %s144, %s145
      %p154 = scmp.eq.s32.totalorder %s19, 0
      %p155 = por %p153, %p154
      %p156 = scmp.ne.s32.totalorder %s144, %s145
      %p157 = scmp.eq.s32.totalorder %s20, 3
      %p158 = por %p156, %p157
      %p160 = scmp.ne.s32.totalorder %s145, %s159
      %p161 = scmp.eq.s32.totalorder %s20, 0
      %p162 = por %p160, %p161
      %s163 = ssub.s32 %s21, %s33
      %s164 = ssub.s32 %s22, %s29
      %s165 = sor.u32 %s163, %s164
      %p166 = scmp.eq.s32.totalorder %s165, 0
      %s168 = sadd.s32 %s167, 1
      %s169 = scalar_select %p166, %s167, %s168
      %p172 = pneg %p166
      %p173 = scmp.eq.s32.totalorder %s14, 3
      %p174 = por %p172, %p173
      %p175 = scmp.ne.s32.totalorder %s167, %s170
      %p176 = scmp.eq.s32.totalorder %s14, 0
      %p177 = por %p175, %p176
      %p178 = scmp.ne.s32.totalorder %s167, %s170
      %p179 = scmp.eq.s32.totalorder %s19, 3
      %p180 = por %p178, %p179
      %p181 = scmp.ne.s32.totalorder %s170, %s171
      %p182 = scmp.eq.s32.totalorder %s19, 0
      %p183 = por %p181, %p182
      %p184 = scmp.ne.s32.totalorder %s170, %s171
      %p185 = scmp.eq.s32.totalorder %s20, 3
      %p186 = por %p184, %p185
      %p188 = scmp.ne.s32.totalorder %s171, %s187
      %p189 = scmp.eq.s32.totalorder %s20, 0
      %p190 = por %p188, %p189
      %p191 = scmp.le.s32.totalorder 1, %s14
      %p192 = scmp.lt.s32.totalorder %s14, 5
      %p193 = pnand %p191, %p192
      %p194 = pneg %p193
      // Predicated region
      $region9: #{sagate_pallas.3} parent=5 // pred_check
        _
      $region10: #{sagate_pallas.3} parent=5 // pred_check_branch
        %196 = sbr.rel (%p193) target = $region12
      $region11: #{sagate_pallas.3} parent=5 // pred_region
        %s197 = ssub.s32 %s14, 1
        // Predicated region
        $region13: #{sagate_pallas.3} parent=11 // pred_check
          %p198 = pneg %p155
        $region14: #{sagate_pallas.3} parent=11 // pred_check_branch
          %200 = sbr.rel (%p198) target = $region16
        $region15: #{sagate_pallas.3} parent=11 // pred_region
          _
        $region16: #{sagate_pallas.3} parent=11 // pred_fallthru
          _
      $region12: #{sagate_pallas.3} parent=5 // pred_fallthru
        _
      %p201 = scmp.lt.s32.totalorder %s14, 4
      // Predicated region
      $region17: #{sagate_pallas.3} parent=5 // pred_check
        %p202 = pneg %p201
      $region18: #{sagate_pallas.3} parent=5 // pred_check_branch
        %204 = sbr.rel (%p202) target = $region20
      $region19: #{sagate_pallas.3} parent=5 // pred_region
        // Predicated region
        $region21: #{sagate_pallas.3} parent=19 // pred_check
          %p205 = pneg %p48
        $region22: #{sagate_pallas.3} parent=19 // pred_check_branch
          %207 = sbr.rel (%p205) target = $region24
        $region23: #{sagate_pallas.3} parent=19 // pred_region
          %s208 = smul.u32 64, %s22
          %p209 = scmp.lt.s32.totalorder %s21, 1
          %s210 = scalar_select %p209, %s21, 1
          %p211 = scmp.lt.s32.totalorder %s208, 127
          %s212 = scalar_select %p211, %s208, 127
          %s213 = smul.addr %s210, 128
          %s214 = sadd.s32 %s212, %s213
          %s215 = smul.addr %s214, 8
          %s216 = scalar_lea.vmem %s0, %s215
          %s217 = smul.u32 64, %s22
        $region24: #{sagate_pallas.3} parent=19 // pred_fallthru
          _
        // Predicated region
        $region25: #{sagate_pallas.3} parent=19 // pred_check
          %p218 = pneg %p76
        $region26: #{sagate_pallas.3} parent=19 // pred_check_branch
          %220 = sbr.rel (%p218) target = $region28
        $region27: #{sagate_pallas.3} parent=19 // pred_region
          %s221 = smul.u32 64, %s22
          %p222 = scmp.lt.s32.totalorder %s21, 1
          %s223 = scalar_select %p222, %s21, 1
          %p224 = scmp.lt.s32.totalorder %s221, 127
          %s225 = scalar_select %p224, %s221, 127
          %s226 = smul.addr %s223, 128
          %s227 = sadd.s32 %s225, %s226
          %s228 = smul.addr %s227, 8
          %s229 = scalar_lea.vmem %s1, %s228
          %s230 = smul.u32 64, %s22
        $region28: #{sagate_pallas.3} parent=19 // pred_fallthru
          _
        // Predicated region
        $region29: #{sagate_pallas.3} parent=19 // pred_check
          %p231 = pneg %p102
        $region30: #{sagate_pallas.3} parent=19 // pred_check_branch
          %233 = sbr.rel (%p231) target = $region32
        $region31: #{sagate_pallas.3} parent=19 // pred_region
          %p234 = scmp.lt.s32.totalorder %s21, 1
          %s235 = scalar_select %p234, %s21, 1
          %s236 = smul.addr %s235, 16
          %s237 = smul.addr %s236, 4
          %s238 = scalar_lea.vmem %s2, %s237
        $region32: #{sagate_pallas.3} parent=19 // pred_fallthru
          _
        // Predicated region
        $region33: #{sagate_pallas.3} parent=19 // pred_check
          %p239 = pneg %p128
        $region34: #{sagate_pallas.3} parent=19 // pred_check_branch
          %241 = sbr.rel (%p239) target = $region36
        $region35: #{sagate_pallas.3} parent=19 // pred_region
          %p242 = scmp.lt.s32.totalorder %s21, 1
          %s243 = scalar_select %p242, %s21, 1
          %s244 = smul.addr %s243, 16
          %s245 = smul.addr %s244, 4
          %s246 = scalar_lea.vmem %s3, %s245
        $region36: #{sagate_pallas.3} parent=19 // pred_fallthru
          _
      $region20: #{sagate_pallas.3} parent=5 // pred_fallthru
        _
      %p247 = scmp.le.s32.totalorder 1, %s14
      %p248 = scmp.lt.s32.totalorder %s14, 5
      %p249 = pnand %p247, %p248
      %p250 = pneg %p249
      // Predicated region
      $region37: #{sagate_pallas.3} parent=5 // pred_check
        _
      $region38: #{sagate_pallas.3} parent=5 // pred_check_branch
        %252 = sbr.rel (%p249) target = $region40
      $region39: #{sagate_pallas.3} parent=5 // pred_region
        %s253 = ssub.s32 %s14, 1
        %s254 = smul.u32 64, %s24
        %p255 = scmp.lt.s32.totalorder %s23, 1
        %s256 = scalar_select %p255, %s23, 1
        %p257 = scmp.lt.s32.totalorder %s254, 127
        %s258 = scalar_select %p257, %s254, 127
        %s259 = smul.addr %s256, 128
        %s260 = sadd.s32 %s258, %s259
        %s261 = smul.addr %s260, 8
        %s262 = scalar_lea.vmem %s0, %s261
        %p263 = pneg %p54
        %p264 = pneg %p51
        %s265 = smul.u32 64, %s24
        %p266 = scmp.lt.s32.totalorder %s23, 1
        %s267 = scalar_select %p266, %s23, 1
        %p268 = scmp.lt.s32.totalorder %s265, 127
        %s269 = scalar_select %p268, %s265, 127
        %s270 = smul.addr %s267, 128
        %s271 = sadd.s32 %s269, %s270
        %s272 = smul.addr %s271, 8
        %s273 = scalar_lea.vmem %s1, %s272
        %p274 = pneg %p82
        %p275 = pneg %p79
        %p276 = scmp.lt.s32.totalorder %s23, 1
        %s277 = scalar_select %p276, %s23, 1
        %s278 = smul.addr %s277, 16
        %s279 = smul.addr %s278, 4
        %s280 = scalar_lea.vmem %s2, %s279
        %p281 = pneg %p108
        %p282 = pneg %p105
        %p283 = scmp.lt.s32.totalorder %s23, 1
        %s284 = scalar_select %p283, %s23, 1
        %s285 = smul.addr %s284, 16
        %s286 = smul.addr %s285, 4
        %s287 = scalar_lea.vmem %s3, %s286
        %p288 = pneg %p134
        %p289 = pneg %p131
        %p290 = pneg %p155
        %p291 = pneg %p152
        %p292 = pneg %p183
        %p293 = pneg %p180
        %s294 = sand.u32 %s170, 1
        %s295 = scalar_lea.sflag [#allocation3], %s294
        %s296 = sand.u32 %s170, 1
        %s297 = smul.addr %s296, 512
        %s298 = scalar_lea.vmem [#allocation2], %s297
        %s299 = smul.u32 64, %s24
        %p300 = scmp.lt.s32.totalorder %s23, 1
        %s301 = scalar_select %p300, %s23, 1
        %p302 = scmp.lt.s32.totalorder %s299, 127
        %s303 = scalar_select %p302, %s299, 127
        %s304 = smul.addr %s301, 128
        %s305 = sadd.s32 %s303, %s304
        %s306 = smul.addr %s305, 8
        %s307 = scalar_lea.vmem %s0, %s306
        %s308 = smul.u32 64, %s24
        %s309 = smul.u32 64, %s24
        %p310 = scmp.lt.s32.totalorder %s23, 1
        %s311 = scalar_select %p310, %s23, 1
        %p312 = scmp.lt.s32.totalorder %s309, 127
        %s313 = scalar_select %p312, %s309, 127
        %s314 = smul.addr %s311, 128
        %s315 = sadd.s32 %s313, %s314
        %s316 = smul.addr %s315, 8
        %s317 = scalar_lea.vmem %s1, %s316
        %s318 = smul.u32 64, %s24
        %p319 = scmp.lt.s32.totalorder %s23, 1
        %s320 = scalar_select %p319, %s23, 1
        %s321 = smul.addr %s320, 16
        %s322 = smul.addr %s321, 4
        %s323 = scalar_lea.vmem %s2, %s322
        %p324 = scmp.lt.s32.totalorder %s23, 1
        %s325 = scalar_select %p324, %s23, 1
        %s326 = smul.addr %s325, 16
        %s327 = smul.addr %s326, 4
        %s328 = scalar_lea.vmem %s3, %s327
        %s329 = smul.u32 64, %s24
        %v331 = vld [vmem:[%s307] sm:$0xff]
        %v332 = vld [vmem:[%s307 + $0x8] sm:$0xff]
        %v333 = vld [vmem:[%s307 + $0x10] sm:$0xff]
        %v334 = vld [vmem:[%s307 + $0x18] sm:$0xff]
        %v335 = vld [vmem:[%s307 + $0x20] sm:$0xff]
        %v336 = vld [vmem:[%s307 + $0x28] sm:$0xff]
        %v337 = vld [vmem:[%s307 + $0x30] sm:$0xff]
        %v338 = vld [vmem:[%s307 + $0x38] sm:$0xff]
        %v339 = vld [vmem:[%s307 + $0x40] sm:$0xff]
        %v340 = vld [vmem:[%s307 + $0x48] sm:$0xff]
        %v341 = vld [vmem:[%s307 + $0x50] sm:$0xff]
        %v342 = vld [vmem:[%s307 + $0x58] sm:$0xff]
        %v343 = vld [vmem:[%s307 + $0x60] sm:$0xff]
        %v344 = vld [vmem:[%s307 + $0x68] sm:$0xff]
        %v345 = vld [vmem:[%s307 + $0x70] sm:$0xff]
        %v346 = vld [vmem:[%s307 + $0x78] sm:$0xff]
        %v347 = vld [vmem:[%s307 + $0x80] sm:$0xff]
        %v348 = vld [vmem:[%s307 + $0x88] sm:$0xff]
        %v349 = vld [vmem:[%s307 + $0x90] sm:$0xff]
        %v350 = vld [vmem:[%s307 + $0x98] sm:$0xff]
        %v351 = vld [vmem:[%s307 + $0xa0] sm:$0xff]
        %v352 = vld [vmem:[%s307 + $0xa8] sm:$0xff]
        %v353 = vld [vmem:[%s307 + $0xb0] sm:$0xff]
        %v354 = vld [vmem:[%s307 + $0xb8] sm:$0xff]
        %v355 = vld [vmem:[%s307 + $0xc0] sm:$0xff]
        %v356 = vld [vmem:[%s307 + $0xc8] sm:$0xff]
        %v357 = vld [vmem:[%s307 + $0xd0] sm:$0xff]
        %v358 = vld [vmem:[%s307 + $0xd8] sm:$0xff]
        %v359 = vld [vmem:[%s307 + $0xe0] sm:$0xff]
        %v360 = vld [vmem:[%s307 + $0xe8] sm:$0xff]
        %v361 = vld [vmem:[%s307 + $0xf0] sm:$0xff]
        %v362 = vld [vmem:[%s307 + $0xf8] sm:$0xff]
        %v363 = vld [vmem:[%s307 + $0x100] sm:$0xff]
        %v364 = vld [vmem:[%s307 + $0x108] sm:$0xff]
        %v365 = vld [vmem:[%s307 + $0x110] sm:$0xff]
        %v366 = vld [vmem:[%s307 + $0x118] sm:$0xff]
        %v367 = vld [vmem:[%s307 + $0x120] sm:$0xff]
        %v368 = vld [vmem:[%s307 + $0x128] sm:$0xff]
        %v369 = vld [vmem:[%s307 + $0x130] sm:$0xff]
        %v370 = vld [vmem:[%s307 + $0x138] sm:$0xff]
        %v371 = vld [vmem:[%s307 + $0x140] sm:$0xff]
        %v372 = vld [vmem:[%s307 + $0x148] sm:$0xff]
        %v373 = vld [vmem:[%s307 + $0x150] sm:$0xff]
        %v374 = vld [vmem:[%s307 + $0x158] sm:$0xff]
        %v375 = vld [vmem:[%s307 + $0x160] sm:$0xff]
        %v376 = vld [vmem:[%s307 + $0x168] sm:$0xff]
        %v377 = vld [vmem:[%s307 + $0x170] sm:$0xff]
        %v378 = vld [vmem:[%s307 + $0x178] sm:$0xff]
        %v379 = vld [vmem:[%s307 + $0x180] sm:$0xff]
        %v380 = vld [vmem:[%s307 + $0x188] sm:$0xff]
        %v381 = vld [vmem:[%s307 + $0x190] sm:$0xff]
        %v382 = vld [vmem:[%s307 + $0x198] sm:$0xff]
        %v383 = vld [vmem:[%s307 + $0x1a0] sm:$0xff]
        %v384 = vld [vmem:[%s307 + $0x1a8] sm:$0xff]
        %v385 = vld [vmem:[%s307 + $0x1b0] sm:$0xff]
        %v386 = vld [vmem:[%s307 + $0x1b8] sm:$0xff]
        %v387 = vld [vmem:[%s307 + $0x1c0] sm:$0xff]
        %v388 = vld [vmem:[%s307 + $0x1c8] sm:$0xff]
        %v389 = vld [vmem:[%s307 + $0x1d0] sm:$0xff]
        %v390 = vld [vmem:[%s307 + $0x1d8] sm:$0xff]
        %v391 = vld [vmem:[%s307 + $0x1e0] sm:$0xff]
        %v392 = vld [vmem:[%s307 + $0x1e8] sm:$0xff]
        %v393 = vld [vmem:[%s307 + $0x1f0] sm:$0xff]
        %v394 = vld [vmem:[%s307 + $0x1f8] sm:$0xff]
        %v395 = vpack.c.bf16 %v332, %v331
        %v396 = vpack.c.bf16 %v334, %v333
        %v397 = vpack.c.bf16 %v336, %v335
        %v398 = vpack.c.bf16 %v338, %v337
        %v399 = vpack.c.bf16 %v340, %v339
        %v400 = vpack.c.bf16 %v342, %v341
        %v401 = vpack.c.bf16 %v344, %v343
        %v402 = vpack.c.bf16 %v346, %v345
        %v403 = vpack.c.bf16 %v348, %v347
        %v404 = vpack.c.bf16 %v350, %v349
        %v405 = vpack.c.bf16 %v352, %v351
        %v406 = vpack.c.bf16 %v354, %v353
        %v407 = vpack.c.bf16 %v356, %v355
        %v408 = vpack.c.bf16 %v358, %v357
        %v409 = vpack.c.bf16 %v360, %v359
        %v410 = vpack.c.bf16 %v362, %v361
        %v411 = vpack.c.bf16 %v364, %v363
        %v412 = vpack.c.bf16 %v366, %v365
        %v413 = vpack.c.bf16 %v368, %v367
        %v414 = vpack.c.bf16 %v370, %v369
        %v415 = vpack.c.bf16 %v372, %v371
        %v416 = vpack.c.bf16 %v374, %v373
        %v417 = vpack.c.bf16 %v376, %v375
        %v418 = vpack.c.bf16 %v378, %v377
        %v419 = vpack.c.bf16 %v380, %v379
        %v420 = vpack.c.bf16 %v382, %v381
        %v421 = vpack.c.bf16 %v384, %v383
        %v422 = vpack.c.bf16 %v386, %v385
        %v423 = vpack.c.bf16 %v388, %v387
        %v424 = vpack.c.bf16 %v390, %v389
        %v425 = vpack.c.bf16 %v392, %v391
        %v426 = vpack.c.bf16 %v394, %v393
        %v427 = vld [vmem:[%s323] sm:$0xf]
        %v428 = vld [vmem:[%s323 + $0x4] sm:$0xf]
        %v429 = vld [vmem:[%s323 + $0x8] sm:$0xf]
        %v430 = vld [vmem:[%s323 + $0xc] sm:$0xf]
        %v431 = vld [vmem:[%s323 + $0x10] sm:$0xf]
        %v432 = vld [vmem:[%s323 + $0x14] sm:$0xf]
        %v433 = vld [vmem:[%s323 + $0x18] sm:$0xf]
        %v434 = vld [vmem:[%s323 + $0x1c] sm:$0xf]
        %v435 = vld [vmem:[%s323 + $0x20] sm:$0xf]
        %v436 = vld [vmem:[%s323 + $0x24] sm:$0xf]
        %v437 = vld [vmem:[%s323 + $0x28] sm:$0xf]
        %v438 = vld [vmem:[%s323 + $0x2c] sm:$0xf]
        %v439 = vld [vmem:[%s323 + $0x30] sm:$0xf]
        %v440 = vld [vmem:[%s323 + $0x34] sm:$0xf]
        %v441 = vld [vmem:[%s323 + $0x38] sm:$0xf]
        %v442 = vld [vmem:[%s323 + $0x3c] sm:$0xf]
        %v443 = vld [vmem:[%s317] sm:$0xff]
        %v444 = vld [vmem:[%s317 + $0x8] sm:$0xff]
        %v445 = vld [vmem:[%s317 + $0x10] sm:$0xff]
        %v446 = vld [vmem:[%s317 + $0x18] sm:$0xff]
        %v447 = vld [vmem:[%s317 + $0x20] sm:$0xff]
        %v448 = vld [vmem:[%s317 + $0x28] sm:$0xff]
        %v449 = vld [vmem:[%s317 + $0x30] sm:$0xff]
        %v450 = vld [vmem:[%s317 + $0x38] sm:$0xff]
        %v451 = vld [vmem:[%s317 + $0x40] sm:$0xff]
        %v452 = vld [vmem:[%s317 + $0x48] sm:$0xff]
        %v453 = vld [vmem:[%s317 + $0x50] sm:$0xff]
        %v454 = vld [vmem:[%s317 + $0x58] sm:$0xff]
        %v455 = vld [vmem:[%s317 + $0x60] sm:$0xff]
        %v456 = vld [vmem:[%s317 + $0x68] sm:$0xff]
        %v457 = vld [vmem:[%s317 + $0x70] sm:$0xff]
        %v458 = vld [vmem:[%s317 + $0x78] sm:$0xff]
        %v459 = vld [vmem:[%s317 + $0x80] sm:$0xff]
        %v460 = vld [vmem:[%s317 + $0x88] sm:$0xff]
        %v461 = vld [vmem:[%s317 + $0x90] sm:$0xff]
        %v462 = vld [vmem:[%s317 + $0x98] sm:$0xff]
        %v463 = vld [vmem:[%s317 + $0xa0] sm:$0xff]
        %v464 = vld [vmem:[%s317 + $0xa8] sm:$0xff]
        %v465 = vld [vmem:[%s317 + $0xb0] sm:$0xff]
        %v466 = vld [vmem:[%s317 + $0xb8] sm:$0xff]
        %v467 = vld [vmem:[%s317 + $0xc0] sm:$0xff]
        %v468 = vld [vmem:[%s317 + $0xc8] sm:$0xff]
        %v469 = vld [vmem:[%s317 + $0xd0] sm:$0xff]
        %v470 = vld [vmem:[%s317 + $0xd8] sm:$0xff]
        %v471 = vld [vmem:[%s317 + $0xe0] sm:$0xff]
        %v472 = vld [vmem:[%s317 + $0xe8] sm:$0xff]
        %v473 = vld [vmem:[%s317 + $0xf0] sm:$0xff]
        %v474 = vld [vmem:[%s317 + $0xf8] sm:$0xff]
        %v475 = vld [vmem:[%s317 + $0x100] sm:$0xff]
        %v476 = vld [vmem:[%s317 + $0x108] sm:$0xff]
        %v477 = vld [vmem:[%s317 + $0x110] sm:$0xff]
        %v478 = vld [vmem:[%s317 + $0x118] sm:$0xff]
        %v479 = vld [vmem:[%s317 + $0x120] sm:$0xff]
        %v480 = vld [vmem:[%s317 + $0x128] sm:$0xff]
        %v481 = vld [vmem:[%s317 + $0x130] sm:$0xff]
        %v482 = vld [vmem:[%s317 + $0x138] sm:$0xff]
        %v483 = vld [vmem:[%s317 + $0x140] sm:$0xff]
        %v484 = vld [vmem:[%s317 + $0x148] sm:$0xff]
        %v485 = vld [vmem:[%s317 + $0x150] sm:$0xff]
        %v486 = vld [vmem:[%s317 + $0x158] sm:$0xff]
        %v487 = vld [vmem:[%s317 + $0x160] sm:$0xff]
        %v488 = vld [vmem:[%s317 + $0x168] sm:$0xff]
        %v489 = vld [vmem:[%s317 + $0x170] sm:$0xff]
        %v490 = vld [vmem:[%s317 + $0x178] sm:$0xff]
        %v491 = vld [vmem:[%s317 + $0x180] sm:$0xff]
        %v492 = vld [vmem:[%s317 + $0x188] sm:$0xff]
        %v493 = vld [vmem:[%s317 + $0x190] sm:$0xff]
        %v494 = vld [vmem:[%s317 + $0x198] sm:$0xff]
        %v495 = vld [vmem:[%s317 + $0x1a0] sm:$0xff]
        %v496 = vld [vmem:[%s317 + $0x1a8] sm:$0xff]
        %v497 = vld [vmem:[%s317 + $0x1b0] sm:$0xff]
        %v498 = vld [vmem:[%s317 + $0x1b8] sm:$0xff]
        %v499 = vld [vmem:[%s317 + $0x1c0] sm:$0xff]
        %v500 = vld [vmem:[%s317 + $0x1c8] sm:$0xff]
        %v501 = vld [vmem:[%s317 + $0x1d0] sm:$0xff]
        %v502 = vld [vmem:[%s317 + $0x1d8] sm:$0xff]
        %v503 = vld [vmem:[%s317 + $0x1e0] sm:$0xff]
        %v504 = vld [vmem:[%s317 + $0x1e8] sm:$0xff]
        %v505 = vld [vmem:[%s317 + $0x1f0] sm:$0xff]
        %v506 = vld [vmem:[%s317 + $0x1f8] sm:$0xff]
        %v507 = vpack.c.bf16 %v444, %v443
        %v508 = vpack.c.bf16 %v446, %v445
        %v509 = vpack.c.bf16 %v448, %v447
        %v510 = vpack.c.bf16 %v450, %v449
        %v511 = vpack.c.bf16 %v452, %v451
        %v512 = vpack.c.bf16 %v454, %v453
        %v513 = vpack.c.bf16 %v456, %v455
        %v514 = vpack.c.bf16 %v458, %v457
        %v515 = vpack.c.bf16 %v460, %v459
        %v516 = vpack.c.bf16 %v462, %v461
        %v517 = vpack.c.bf16 %v464, %v463
        %v518 = vpack.c.bf16 %v466, %v465
        %v519 = vpack.c.bf16 %v468, %v467
        %v520 = vpack.c.bf16 %v470, %v469
        %v521 = vpack.c.bf16 %v472, %v471
        %v522 = vpack.c.bf16 %v474, %v473
        %v523 = vpack.c.bf16 %v476, %v475
        %v524 = vpack.c.bf16 %v478, %v477
        %v525 = vpack.c.bf16 %v480, %v479
        %v526 = vpack.c.bf16 %v482, %v481
        %v527 = vpack.c.bf16 %v484, %v483
        %v528 = vpack.c.bf16 %v486, %v485
        %v529 = vpack.c.bf16 %v488, %v487
        %v530 = vpack.c.bf16 %v490, %v489
        %v531 = vpack.c.bf16 %v492, %v491
        %v532 = vpack.c.bf16 %v494, %v493
        %v533 = vpack.c.bf16 %v496, %v495
        %v534 = vpack.c.bf16 %v498, %v497
        %v535 = vpack.c.bf16 %v500, %v499
        %v536 = vpack.c.bf16 %v502, %v501
        %v537 = vpack.c.bf16 %v504, %v503
        %v538 = vpack.c.bf16 %v506, %v505
        %v539 = vld [vmem:[%s328] sm:$0xf]
        %v540 = vld [vmem:[%s328 + $0x4] sm:$0xf]
        %v541 = vld [vmem:[%s328 + $0x8] sm:$0xf]
        %v542 = vld [vmem:[%s328 + $0xc] sm:$0xf]
        %v543 = vld [vmem:[%s328 + $0x10] sm:$0xf]
        %v544 = vld [vmem:[%s328 + $0x14] sm:$0xf]
        %v545 = vld [vmem:[%s328 + $0x18] sm:$0xf]
        %v546 = vld [vmem:[%s328 + $0x1c] sm:$0xf]
        %v547 = vld [vmem:[%s328 + $0x20] sm:$0xf]
        %v548 = vld [vmem:[%s328 + $0x24] sm:$0xf]
        %v549 = vld [vmem:[%s328 + $0x28] sm:$0xf]
        %v550 = vld [vmem:[%s328 + $0x2c] sm:$0xf]
        %v551 = vld [vmem:[%s328 + $0x30] sm:$0xf]
        %v552 = vld [vmem:[%s328 + $0x34] sm:$0xf]
        %v553 = vld [vmem:[%s328 + $0x38] sm:$0xf]
        %v554 = vld [vmem:[%s328 + $0x3c] sm:$0xf]
        %v571 = vunpack.c.l.b16 %v539
        %v572 = vunpack.c.l.b16 %v540
        %v573 = vunpack.c.l.b16 %v541
        %v574 = vunpack.c.l.b16 %v542
        %v575 = vunpack.c.l.b16 %v543
        %v576 = vunpack.c.l.b16 %v544
        %v577 = vunpack.c.l.b16 %v545
        %v578 = vunpack.c.l.b16 %v546
        %v579 = vunpack.c.l.b16 %v547
        %v580 = vunpack.c.l.b16 %v548
        %v581 = vunpack.c.l.b16 %v549
        %v582 = vunpack.c.l.b16 %v550
        %v583 = vunpack.c.l.b16 %v551
        %v584 = vunpack.c.l.b16 %v552
        %v585 = vunpack.c.l.b16 %v553
        %v586 = vunpack.c.l.b16 %v554
        %v587 = vpack.c.b16 %v572, %v571
        %v588 = vpack.c.b16 %v574, %v573
        %v589 = vpack.c.b16 %v576, %v575
        %v590 = vpack.c.b16 %v578, %v577
        %v591 = vpack.c.b16 %v580, %v579
        %v592 = vpack.c.b16 %v582, %v581
        %v593 = vpack.c.b16 %v584, %v583
        %v594 = vpack.c.b16 %v586, %v585
        %603 = vmatprep.subr.bf16.mxu0 0
        %604 = vmatpush1.bf16.msra.mxu0 %v587
        %605 = vmatprep.subr.bf16.mxu0 0
        %606 = vmatpush1.bf16.msra.mxu0 %v588
        %607 = vmatprep.subr.bf16.mxu0 0
        %608 = vmatpush1.bf16.msra.mxu0 %v589
        %609 = vmatprep.subr.bf16.mxu0 0
        %610 = vmatpush1.bf16.msra.mxu0 %v590
        %611 = vmatprep.subr.bf16.mxu0 0
        %612 = vmatpush1.bf16.msra.mxu0 %v591
        %613 = vmatprep.subr.bf16.mxu0 0
        %614 = vmatpush1.bf16.msra.mxu0 %v592
        %615 = vmatprep.subr.bf16.mxu0 0
        %616 = vmatpush1.bf16.msra.mxu0 %v593
        %617 = vmatprep.subr.bf16.mxu0 0
        %618 = vmatpush1.bf16.msra.mxu0 %v594
        %619 = vmatprep.subr.bf16.mxu0 0
        %620 = vmatpush1.bf16.msra.mxu0 0
        %621 = vmatprep.subr.bf16.mxu0 0
        %622 = vmatpush1.bf16.msra.mxu0 0
        %623 = vmatprep.subr.bf16.mxu0 0
        %624 = vmatpush1.bf16.msra.mxu0 0
        %625 = vmatprep.subr.bf16.mxu0 0
        %626 = vmatpush1.bf16.msra.mxu0 0
        %627 = vmatprep.subr.bf16.mxu0 0
        %628 = vmatpush1.bf16.msra.mxu0 0
        %629 = vmatprep.subr.bf16.mxu0 0
        %630 = vmatpush1.bf16.msra.mxu0 0
        %631 = vmatprep.subr.bf16.mxu0 0
        %632 = vmatpush1.bf16.msra.mxu0 0
        %633 = vmatprep.subr.bf16.mxu0 0
        %634 = vmatpush1.bf16.msra.mxu0 0
        %635 = vmatprep.mubr.bf16.mxu0 0
        %636 = vmatmul.mubr.bf16.gmra.mrb[0].mxu0 %v507
        %v637 = vpop.f32.mrb[0].mxu0
        %v638 = vadd.f32 0.0, %v637
        %v639 = vpop.f32.mrb[0].mxu0
        %v640 = vpop.f32.mrb[0].mxu0
        %v641 = vadd.f32 0.0, %v640
        %v642 = vpop.f32.mrb[0].mxu0
        %643 = vmatprep.mubr.bf16.mxu0 0
        %644 = vmatmul.mubr.bf16.gmra.mrb[0].mxu0 %v508
        %v645 = vpop.f32.mrb[0].mxu0
        %v646 = vadd.f32 0.0, %v645
        %v647 = vpop.f32.mrb[0].mxu0
        %v648 = vpop.f32.mrb[0].mxu0
        %v649 = vadd.f32 0.0, %v648
        %v650 = vpop.f32.mrb[0].mxu0
        %651 = vmatprep.mubr.bf16.mxu0 0
        %652 = vmatmul.mubr.bf16.gmra.mrb[0].mxu0 %v509
        %v653 = vpop.f32.mrb[0].mxu0
        %v654 = vadd.f32 0.0, %v653
        %v655 = vpop.f32.mrb[0].mxu0
        %v656 = vpop.f32.mrb[0].mxu0
        %v657 = vadd.f32 0.0, %v656
        %v658 = vpop.f32.mrb[0].mxu0
        %659 = vmatprep.mubr.bf16.mxu0 0
        %660 = vmatmul.mubr.bf16.gmra.mrb[0].mxu0 %v510
        %v661 = vpop.f32.mrb[0].mxu0
        %v662 = vadd.f32 0.0, %v661
        %v663 = vpop.f32.mrb[0].mxu0
        %v664 = vpop.f32.mrb[0].mxu0
        %v665 = vadd.f32 0.0, %v664
        %v666 = vpop.f32.mrb[0].mxu0
        %667 = vmatprep.mubr.bf16.mxu0 0
        %668 = vmatmul.mubr.bf16.gmra.mrb[0].mxu0 %v511
        %v669 = vpop.f32.mrb[0].mxu0
        %v670 = vadd.f32 0.0, %v669
        %v671 = vpop.f32.mrb[0].mxu0
        %v672 = vpop.f32.mrb[0].mxu0
        %v673 = vadd.f32 0.0, %v672
        %v674 = vpop.f32.mrb[0].mxu0
        %675 = vmatprep.mubr.bf16.mxu0 0
        %676 = vmatmul.mubr.bf16.gmra.mrb[0].mxu0 %v512
        %v677 = vpop.f32.mrb[0].mxu0
        %v678 = vadd.f32 0.0, %v677
        %v679 = vpop.f32.mrb[0].mxu0
        %v680 = vpop.f32.mrb[0].mxu0
        %v681 = vadd.f32 0.0, %v680
        %v682 = vpop.f32.mrb[0].mxu0
        %683 = vmatprep.mubr.bf16.mxu0 0
        %684 = vmatmul.mubr.bf16.gmra.mrb[0].mxu0 %v513
        %v685 = vpop.f32.mrb[0].mxu0
        %v686 = vadd.f32 0.0, %v685
        %v687 = vpop.f32.mrb[0].mxu0
        %v688 = vpop.f32.mrb[0].mxu0
        %v689 = vadd.f32 0.0, %v688
        %v690 = vpop.f32.mrb[0].mxu0
        %691 = vmatprep.mubr.bf16.mxu0 0
        %692 = vmatmul.mubr.bf16.gmra.mrb[0].mxu0 %v514
        %v693 = vpop.f32.mrb[0].mxu0
        %v694 = vadd.f32 0.0, %v693
        %v695 = vpop.f32.mrb[0].mxu0
        %v696 = vpop.f32.mrb[0].mxu0
        %v697 = vadd.f32 0.0, %v696
        %v698 = vpop.f32.mrb[0].mxu0
        %699 = vmatprep.mubr.bf16.mxu0 0
        %700 = vmatmul.mubr.bf16.gmra.mrb[0].mxu0 %v515
        %v701 = vpop.f32.mrb[0].mxu0
        %v702 = vadd.f32 0.0, %v701
        %v703 = vpop.f32.mrb[0].mxu0
        %v704 = vpop.f32.mrb[0].mxu0
        %v705 = vadd.f32 0.0, %v704
        %v706 = vpop.f32.mrb[0].mxu0
        %707 = vmatprep.mubr.bf16.mxu0 0
        %708 = vmatmul.mubr.bf16.gmra.mrb[0].mxu0 %v516
        %v709 = vpop.f32.mrb[0].mxu0
        %v710 = vadd.f32 0.0, %v709
        %v711 = vpop.f32.mrb[0].mxu0
        %v712 = vpop.f32.mrb[0].mxu0
        %v713 = vadd.f32 0.0, %v712
        %v714 = vpop.f32.mrb[0].mxu0
        %715 = vmatprep.mubr.bf16.mxu0 0
        %716 = vmatmul.mubr.bf16.gmra.mrb[0].mxu0 %v517
        %v717 = vpop.f32.mrb[0].mxu0
        %v718 = vadd.f32 0.0, %v717
        %v719 = vpop.f32.mrb[0].mxu0
        %v720 = vpop.f32.mrb[0].mxu0
        %v721 = vadd.f32 0.0, %v720
        %v722 = vpop.f32.mrb[0].mxu0
        %723 = vmatprep.mubr.bf16.mxu0 0
        %724 = vmatmul.mubr.bf16.gmra.mrb[0].mxu0 %v518
        %v725 = vpop.f32.mrb[0].mxu0
        %v726 = vadd.f32 0.0, %v725
        %v727 = vpop.f32.mrb[0].mxu0
        %v728 = vpop.f32.mrb[0].mxu0
        %v729 = vadd.f32 0.0, %v728
        %v730 = vpop.f32.mrb[0].mxu0
        %731 = vmatprep.mubr.bf16.mxu0 0
        %732 = vmatmul.mubr.bf16.gmra.mrb[0].mxu0 %v519
        %v733 = vpop.f32.mrb[0].mxu0
        %v734 = vadd.f32 0.0, %v733
        %v735 = vpop.f32.mrb[0].mxu0
        %v736 = vpop.f32.mrb[0].mxu0
        %v737 = vadd.f32 0.0, %v736
        %v738 = vpop.f32.mrb[0].mxu0
        %739 = vmatprep.mubr.bf16.mxu0 0
        %740 = vmatmul.mubr.bf16.gmra.mrb[0].mxu0 %v520
        %v741 = vpop.f32.mrb[0].mxu0
        %v742 = vadd.f32 0.0, %v741
        %v743 = vpop.f32.mrb[0].mxu0
        %v744 = vpop.f32.mrb[0].mxu0
        %v745 = vadd.f32 0.0, %v744
        %v746 = vpop.f32.mrb[0].mxu0
        %747 = vmatprep.mubr.bf16.mxu0 0
        %748 = vmatmul.mubr.bf16.gmra.mrb[0].mxu0 %v521
        %v749 = vpop.f32.mrb[0].mxu0
        %v750 = vadd.f32 0.0, %v749
        %v751 = vpop.f32.mrb[0].mxu0
        %v752 = vpop.f32.mrb[0].mxu0
        %v753 = vadd.f32 0.0, %v752
        %v754 = vpop.f32.mrb[0].mxu0
        %755 = vmatprep.mubr.bf16.mxu0 0
        %756 = vmatmul.mubr.bf16.gmra.mrb[0].mxu0 %v522
        %v757 = vpop.f32.mrb[0].mxu0
        %v758 = vadd.f32 0.0, %v757
        %v759 = vpop.f32.mrb[0].mxu0
        %v760 = vpop.f32.mrb[0].mxu0
        %v761 = vadd.f32 0.0, %v760
        %v762 = vpop.f32.mrb[0].mxu0
        %763 = vmatprep.mubr.bf16.mxu0 0
        %764 = vmatmul.mubr.bf16.gmra.mrb[0].mxu0 %v523
        %v765 = vpop.f32.mrb[0].mxu0
        %v766 = vadd.f32 0.0, %v765
        %v767 = vpop.f32.mrb[0].mxu0
        %v768 = vpop.f32.mrb[0].mxu0
        %v769 = vadd.f32 0.0, %v768
        %v770 = vpop.f32.mrb[0].mxu0
        %771 = vmatprep.mubr.bf16.mxu0 0
        %772 = vmatmul.mubr.bf16.gmra.mrb[0].mxu0 %v524
        %v773 = vpop.f32.mrb[0].mxu0
        %v774 = vadd.f32 0.0, %v773
        %v775 = vpop.f32.mrb[0].mxu0
        %v776 = vpop.f32.mrb[0].mxu0
        %v777 = vadd.f32 0.0, %v776
        %v778 = vpop.f32.mrb[0].mxu0
        %779 = vmatprep.mubr.bf16.mxu0 0
        %780 = vmatmul.mubr.bf16.gmra.mrb[0].mxu0 %v525
        %v781 = vpop.f32.mrb[0].mxu0
        %v782 = vadd.f32 0.0, %v781
        %v783 = vpop.f32.mrb[0].mxu0
        %v784 = vpop.f32.mrb[0].mxu0
        %v785 = vadd.f32 0.0, %v784
        %v786 = vpop.f32.mrb[0].mxu0
        %787 = vmatprep.mubr.bf16.mxu0 0
        %788 = vmatmul.mubr.bf16.gmra.mrb[0].mxu0 %v526
        %v789 = vpop.f32.mrb[0].mxu0
        %v790 = vadd.f32 0.0, %v789
        %v791 = vpop.f32.mrb[0].mxu0
        %v792 = vpop.f32.mrb[0].mxu0
        %v793 = vadd.f32 0.0, %v792
        %v794 = vpop.f32.mrb[0].mxu0
        %795 = vmatprep.mubr.bf16.mxu0 0
        %796 = vmatmul.mubr.bf16.gmra.mrb[0].mxu0 %v527
        %v797 = vpop.f32.mrb[0].mxu0
        %v798 = vadd.f32 0.0, %v797
        %v799 = vpop.f32.mrb[0].mxu0
        %v800 = vpop.f32.mrb[0].mxu0
        %v801 = vadd.f32 0.0, %v800
        %v802 = vpop.f32.mrb[0].mxu0
        %803 = vmatprep.mubr.bf16.mxu0 0
        %804 = vmatmul.mubr.bf16.gmra.mrb[0].mxu0 %v528
        %v805 = vpop.f32.mrb[0].mxu0
        %v806 = vadd.f32 0.0, %v805
        %v807 = vpop.f32.mrb[0].mxu0
        %v808 = vpop.f32.mrb[0].mxu0
        %v809 = vadd.f32 0.0, %v808
        %v810 = vpop.f32.mrb[0].mxu0
        %811 = vmatprep.mubr.bf16.mxu0 0
        %812 = vmatmul.mubr.bf16.gmra.mrb[0].mxu0 %v529
        %v813 = vpop.f32.mrb[0].mxu0
        %v814 = vadd.f32 0.0, %v813
        %v815 = vpop.f32.mrb[0].mxu0
        %v816 = vpop.f32.mrb[0].mxu0
        %v817 = vadd.f32 0.0, %v816
        %v818 = vpop.f32.mrb[0].mxu0
        %819 = vmatprep.mubr.bf16.mxu0 0
        %820 = vmatmul.mubr.bf16.gmra.mrb[0].mxu0 %v530
        %v821 = vpop.f32.mrb[0].mxu0
        %v822 = vadd.f32 0.0, %v821
        %v823 = vpop.f32.mrb[0].mxu0
        %v824 = vpop.f32.mrb[0].mxu0
        %v825 = vadd.f32 0.0, %v824
        %v826 = vpop.f32.mrb[0].mxu0
        %827 = vmatprep.mubr.bf16.mxu0 0
        %828 = vmatmul.mubr.bf16.gmra.mrb[0].mxu0 %v531
        %v829 = vpop.f32.mrb[0].mxu0
        %v830 = vadd.f32 0.0, %v829
        %v831 = vpop.f32.mrb[0].mxu0
        %v832 = vpop.f32.mrb[0].mxu0
        %v833 = vadd.f32 0.0, %v832
        %v834 = vpop.f32.mrb[0].mxu0
        %835 = vmatprep.mubr.bf16.mxu0 0
        %836 = vmatmul.mubr.bf16.gmra.mrb[0].mxu0 %v532
        %v837 = vpop.f32.mrb[0].mxu0
        %v838 = vadd.f32 0.0, %v837
        %v839 = vpop.f32.mrb[0].mxu0
        %v840 = vpop.f32.mrb[0].mxu0
        %v841 = vadd.f32 0.0, %v840
        %v842 = vpop.f32.mrb[0].mxu0
        %843 = vmatprep.mubr.bf16.mxu0 0
        %844 = vmatmul.mubr.bf16.gmra.mrb[0].mxu0 %v533
        %v845 = vpop.f32.mrb[0].mxu0
        %v846 = vadd.f32 0.0, %v845
        %v847 = vpop.f32.mrb[0].mxu0
        %v848 = vpop.f32.mrb[0].mxu0
        %v849 = vadd.f32 0.0, %v848
        %v850 = vpop.f32.mrb[0].mxu0
        %851 = vmatprep.mubr.bf16.mxu0 0
        %852 = vmatmul.mubr.bf16.gmra.mrb[0].mxu0 %v534
        %v853 = vpop.f32.mrb[0].mxu0
        %v854 = vadd.f32 0.0, %v853
        %v855 = vpop.f32.mrb[0].mxu0
        %v856 = vpop.f32.mrb[0].mxu0
        %v857 = vadd.f32 0.0, %v856
        %v858 = vpop.f32.mrb[0].mxu0
        %859 = vmatprep.mubr.bf16.mxu0 0
        %860 = vmatmul.mubr.bf16.gmra.mrb[0].mxu0 %v535
        %v861 = vpop.f32.mrb[0].mxu0
        %v862 = vadd.f32 0.0, %v861
        %v863 = vpop.f32.mrb[0].mxu0
        %v864 = vpop.f32.mrb[0].mxu0
        %v865 = vadd.f32 0.0, %v864
        %v866 = vpop.f32.mrb[0].mxu0
        %867 = vmatprep.mubr.bf16.mxu0 0
        %868 = vmatmul.mubr.bf16.gmra.mrb[0].mxu0 %v536
        %v869 = vpop.f32.mrb[0].mxu0
        %v870 = vadd.f32 0.0, %v869
        %v871 = vpop.f32.mrb[0].mxu0
        %v872 = vpop.f32.mrb[0].mxu0
        %v873 = vadd.f32 0.0, %v872
        %v874 = vpop.f32.mrb[0].mxu0
        %875 = vmatprep.mubr.bf16.mxu0 0
        %876 = vmatmul.mubr.bf16.gmra.mrb[0].mxu0 %v537
        %v877 = vpop.f32.mrb[0].mxu0
        %v878 = vadd.f32 0.0, %v877
        %v879 = vpop.f32.mrb[0].mxu0
        %v880 = vpop.f32.mrb[0].mxu0
        %v881 = vadd.f32 0.0, %v880
        %v882 = vpop.f32.mrb[0].mxu0
        %883 = vmatprep.mubr.bf16.mxu0 0
        %884 = vmatmul.mubr.bf16.gmra.mrb[0].mxu0 %v538
        %v885 = vpop.f32.mrb[0].mxu0
        %v886 = vadd.f32 0.0, %v885
        %v887 = vpop.f32.mrb[0].mxu0
        %v888 = vpop.f32.mrb[0].mxu0
        %v889 = vadd.f32 0.0, %v888
        %v890 = vpop.f32.mrb[0].mxu0
        %891 = vdwg.mxu0
        %v908 = vunpack.c.l.b16 %v427
        %v909 = vunpack.c.l.b16 %v428
        %v910 = vunpack.c.l.b16 %v429
        %v911 = vunpack.c.l.b16 %v430
        %v912 = vunpack.c.l.b16 %v431
        %v913 = vunpack.c.l.b16 %v432
        %v914 = vunpack.c.l.b16 %v433
        %v915 = vunpack.c.l.b16 %v434
        %v916 = vunpack.c.l.b16 %v435
        %v917 = vunpack.c.l.b16 %v436
        %v918 = vunpack.c.l.b16 %v437
        %v919 = vunpack.c.l.b16 %v438
        %v920 = vunpack.c.l.b16 %v439
        %v921 = vunpack.c.l.b16 %v440
        %v922 = vunpack.c.l.b16 %v441
        %v923 = vunpack.c.l.b16 %v442
        %v924 = vpack.c.b16 %v909, %v908
        %v925 = vpack.c.b16 %v911, %v910
        %v926 = vpack.c.b16 %v913, %v912
        %v927 = vpack.c.b16 %v915, %v914
        %v928 = vpack.c.b16 %v917, %v916
        %v929 = vpack.c.b16 %v919, %v918
        %v930 = vpack.c.b16 %v921, %v920
        %v931 = vpack.c.b16 %v923, %v922
        %940 = vmatprep.subr.bf16.mxu0 0
        %941 = vmatpush1.bf16.msra.mxu0 %v924
        %942 = vmatprep.subr.bf16.mxu0 0
        %943 = vmatpush1.bf16.msra.mxu0 %v925
        %944 = vmatprep.subr.bf16.mxu0 0
        %945 = vmatpush1.bf16.msra.mxu0 %v926
        %946 = vmatprep.subr.bf16.mxu0 0
        %947 = vmatpush1.bf16.msra.mxu0 %v927
        %948 = vmatprep.subr.bf16.mxu0 0
        %949 = vmatpush1.bf16.msra.mxu0 %v928
        %950 = vmatprep.subr.bf16.mxu0 0
        %951 = vmatpush1.bf16.msra.mxu0 %v929
        %952 = vmatprep.subr.bf16.mxu0 0
        %953 = vmatpush1.bf16.msra.mxu0 %v930
        %954 = vmatprep.subr.bf16.mxu0 0
        %955 = vmatpush1.bf16.msra.mxu0 %v931
        %956 = vmatprep.subr.bf16.mxu0 0
        %957 = vmatpush1.bf16.msra.mxu0 0
        %958 = vmatprep.subr.bf16.mxu0 0
        %959 = vmatpush1.bf16.msra.mxu0 0
        %960 = vmatprep.subr.bf16.mxu0 0
        %961 = vmatpush1.bf16.msra.mxu0 0
        %962 = vmatprep.subr.bf16.mxu0 0
        %963 = vmatpush1.bf16.msra.mxu0 0
        %964 = vmatprep.subr.bf16.mxu0 0
        %965 = vmatpush1.bf16.msra.mxu0 0
        %966 = vmatprep.subr.bf16.mxu0 0
        %967 = vmatpush1.bf16.msra.mxu0 0
        %968 = vmatprep.subr.bf16.mxu0 0
        %969 = vmatpush1.bf16.msra.mxu0 0
        %970 = vmatprep.subr.bf16.mxu0 0
        %971 = vmatpush1.bf16.msra.mxu0 0
        %972 = vmatprep.mubr.bf16.mxu0 0
        %973 = vmatmul.mubr.bf16.gmra.mrb[0].mxu0 %v395
        %v974 = vpop.f32.mrb[0].mxu0
        %v975 = vadd.f32 %v638, %v974
        %v976 = vpop.f32.mrb[0].mxu0
        %v977 = vpop.f32.mrb[0].mxu0
        %v978 = vadd.f32 %v641, %v977
        %v979 = vpop.f32.mrb[0].mxu0
        %980 = vmatprep.mubr.bf16.mxu0 0
        %981 = vmatmul.mubr.bf16.gmra.mrb[0].mxu0 %v396
        %v982 = vpop.f32.mrb[0].mxu0
        %v983 = vadd.f32 %v646, %v982
        %v984 = vpop.f32.mrb[0].mxu0
        %v985 = vpop.f32.mrb[0].mxu0
        %v986 = vadd.f32 %v649, %v985
        %v987 = vpop.f32.mrb[0].mxu0
        %988 = vmatprep.mubr.bf16.mxu0 0
        %989 = vmatmul.mubr.bf16.gmra.mrb[0].mxu0 %v397
        %v990 = vpop.f32.mrb[0].mxu0
        %v991 = vadd.f32 %v654, %v990
        %v992 = vpop.f32.mrb[0].mxu0
        %v993 = vpop.f32.mrb[0].mxu0
        %v994 = vadd.f32 %v657, %v993
        %v995 = vpop.f32.mrb[0].mxu0
        %996 = vmatprep.mubr.bf16.mxu0 0
        %997 = vmatmul.mubr.bf16.gmra.mrb[0].mxu0 %v398
        %v998 = vpop.f32.mrb[0].mxu0
        %v999 = vadd.f32 %v662, %v998
        %v1000 = vpop.f32.mrb[0].mxu0
        %v1001 = vpop.f32.mrb[0].mxu0
        %v1002 = vadd.f32 %v665, %v1001
        %v1003 = vpop.f32.mrb[0].mxu0
        %1004 = vmatprep.mubr.bf16.mxu0 0
        %1005 = vmatmul.mubr.bf16.gmra.mrb[0].mxu0 %v399
        %v1006 = vpop.f32.mrb[0].mxu0
        %v1007 = vadd.f32 %v670, %v1006
        %v1008 = vpop.f32.mrb[0].mxu0
        %v1009 = vpop.f32.mrb[0].mxu0
        %v1010 = vadd.f32 %v673, %v1009
        %v1011 = vpop.f32.mrb[0].mxu0
        %1012 = vmatprep.mubr.bf16.mxu0 0
        %1013 = vmatmul.mubr.bf16.gmra.mrb[0].mxu0 %v400
        %v1014 = vpop.f32.mrb[0].mxu0
        %v1015 = vadd.f32 %v678, %v1014
        %v1016 = vpop.f32.mrb[0].mxu0
        %v1017 = vpop.f32.mrb[0].mxu0
        %v1018 = vadd.f32 %v681, %v1017
        %v1019 = vpop.f32.mrb[0].mxu0
        %1020 = vmatprep.mubr.bf16.mxu0 0
        %1021 = vmatmul.mubr.bf16.gmra.mrb[0].mxu0 %v401
        %v1022 = vpop.f32.mrb[0].mxu0
        %v1023 = vadd.f32 %v686, %v1022
        %v1024 = vpop.f32.mrb[0].mxu0
        %v1025 = vpop.f32.mrb[0].mxu0
        %v1026 = vadd.f32 %v689, %v1025
        %v1027 = vpop.f32.mrb[0].mxu0
        %1028 = vmatprep.mubr.bf16.mxu0 0
        %1029 = vmatmul.mubr.bf16.gmra.mrb[0].mxu0 %v402
        %v1030 = vpop.f32.mrb[0].mxu0
        %v1031 = vadd.f32 %v694, %v1030
        %v1032 = vpop.f32.mrb[0].mxu0
        %v1033 = vpop.f32.mrb[0].mxu0
        %v1034 = vadd.f32 %v697, %v1033
        %v1035 = vpop.f32.mrb[0].mxu0
        %1036 = vmatprep.mubr.bf16.mxu0 0
        %1037 = vmatmul.mubr.bf16.gmra.mrb[0].mxu0 %v403
        %v1038 = vpop.f32.mrb[0].mxu0
        %v1039 = vadd.f32 %v702, %v1038
        %v1040 = vpop.f32.mrb[0].mxu0
        %v1041 = vpop.f32.mrb[0].mxu0
        %v1042 = vadd.f32 %v705, %v1041
        %v1043 = vpop.f32.mrb[0].mxu0
        %1044 = vmatprep.mubr.bf16.mxu0 0
        %1045 = vmatmul.mubr.bf16.gmra.mrb[0].mxu0 %v404
        %v1046 = vpop.f32.mrb[0].mxu0
        %v1047 = vadd.f32 %v710, %v1046
        %v1048 = vpop.f32.mrb[0].mxu0
        %v1049 = vpop.f32.mrb[0].mxu0
        %v1050 = vadd.f32 %v713, %v1049
        %v1051 = vpop.f32.mrb[0].mxu0
        %1052 = vmatprep.mubr.bf16.mxu0 0
        %1053 = vmatmul.mubr.bf16.gmra.mrb[0].mxu0 %v405
        %v1054 = vpop.f32.mrb[0].mxu0
        %v1055 = vadd.f32 %v718, %v1054
        %v1056 = vpop.f32.mrb[0].mxu0
        %v1057 = vpop.f32.mrb[0].mxu0
        %v1058 = vadd.f32 %v721, %v1057
        %v1059 = vpop.f32.mrb[0].mxu0
        %1060 = vmatprep.mubr.bf16.mxu0 0
        %1061 = vmatmul.mubr.bf16.gmra.mrb[0].mxu0 %v406
        %v1062 = vpop.f32.mrb[0].mxu0
        %v1063 = vadd.f32 %v726, %v1062
        %v1064 = vpop.f32.mrb[0].mxu0
        %v1065 = vpop.f32.mrb[0].mxu0
        %v1066 = vadd.f32 %v729, %v1065
        %v1067 = vpop.f32.mrb[0].mxu0
        %1068 = vmatprep.mubr.bf16.mxu0 0
        %1069 = vmatmul.mubr.bf16.gmra.mrb[0].mxu0 %v407
        %v1070 = vpop.f32.mrb[0].mxu0
        %v1071 = vadd.f32 %v734, %v1070
        %v1072 = vpop.f32.mrb[0].mxu0
        %v1073 = vpop.f32.mrb[0].mxu0
        %v1074 = vadd.f32 %v737, %v1073
        %v1075 = vpop.f32.mrb[0].mxu0
        %1076 = vmatprep.mubr.bf16.mxu0 0
        %1077 = vmatmul.mubr.bf16.gmra.mrb[0].mxu0 %v408
        %v1078 = vpop.f32.mrb[0].mxu0
        %v1079 = vadd.f32 %v742, %v1078
        %v1080 = vpop.f32.mrb[0].mxu0
        %v1081 = vpop.f32.mrb[0].mxu0
        %v1082 = vadd.f32 %v745, %v1081
        %v1083 = vpop.f32.mrb[0].mxu0
        %1084 = vmatprep.mubr.bf16.mxu0 0
        %1085 = vmatmul.mubr.bf16.gmra.mrb[0].mxu0 %v409
        %v1086 = vpop.f32.mrb[0].mxu0
        %v1087 = vadd.f32 %v750, %v1086
        %v1088 = vpop.f32.mrb[0].mxu0
        %v1089 = vpop.f32.mrb[0].mxu0
        %v1090 = vadd.f32 %v753, %v1089
        %v1091 = vpop.f32.mrb[0].mxu0
        %1092 = vmatprep.mubr.bf16.mxu0 0
        %1093 = vmatmul.mubr.bf16.gmra.mrb[0].mxu0 %v410
        %v1094 = vpop.f32.mrb[0].mxu0
        %v1095 = vadd.f32 %v758, %v1094
        %v1096 = vpop.f32.mrb[0].mxu0
        %v1097 = vpop.f32.mrb[0].mxu0
        %v1098 = vadd.f32 %v761, %v1097
        %v1099 = vpop.f32.mrb[0].mxu0
        %1100 = vmatprep.mubr.bf16.mxu0 0
        %1101 = vmatmul.mubr.bf16.gmra.mrb[0].mxu0 %v411
        %v1102 = vpop.f32.mrb[0].mxu0
        %v1103 = vadd.f32 %v766, %v1102
        %v1104 = vpop.f32.mrb[0].mxu0
        %v1105 = vpop.f32.mrb[0].mxu0
        %v1106 = vadd.f32 %v769, %v1105
        %v1107 = vpop.f32.mrb[0].mxu0
        %1108 = vmatprep.mubr.bf16.mxu0 0
        %1109 = vmatmul.mubr.bf16.gmra.mrb[0].mxu0 %v412
        %v1110 = vpop.f32.mrb[0].mxu0
        %v1111 = vadd.f32 %v774, %v1110
        %v1112 = vpop.f32.mrb[0].mxu0
        %v1113 = vpop.f32.mrb[0].mxu0
        %v1114 = vadd.f32 %v777, %v1113
        %v1115 = vpop.f32.mrb[0].mxu0
        %1116 = vmatprep.mubr.bf16.mxu0 0
        %1117 = vmatmul.mubr.bf16.gmra.mrb[0].mxu0 %v413
        %v1118 = vpop.f32.mrb[0].mxu0
        %v1119 = vadd.f32 %v782, %v1118
        %v1120 = vpop.f32.mrb[0].mxu0
        %v1121 = vpop.f32.mrb[0].mxu0
        %v1122 = vadd.f32 %v785, %v1121
        %v1123 = vpop.f32.mrb[0].mxu0
        %1124 = vmatprep.mubr.bf16.mxu0 0
        %1125 = vmatmul.mubr.bf16.gmra.mrb[0].mxu0 %v414
        %v1126 = vpop.f32.mrb[0].mxu0
        %v1127 = vadd.f32 %v790, %v1126
        %v1128 = vpop.f32.mrb[0].mxu0
        %v1129 = vpop.f32.mrb[0].mxu0
        %v1130 = vadd.f32 %v793, %v1129
        %v1131 = vpop.f32.mrb[0].mxu0
        %1132 = vmatprep.mubr.bf16.mxu0 0
        %1133 = vmatmul.mubr.bf16.gmra.mrb[0].mxu0 %v415
        %v1134 = vpop.f32.mrb[0].mxu0
        %v1135 = vadd.f32 %v798, %v1134
        %v1136 = vpop.f32.mrb[0].mxu0
        %v1137 = vpop.f32.mrb[0].mxu0
        %v1138 = vadd.f32 %v801, %v1137
        %v1139 = vpop.f32.mrb[0].mxu0
        %1140 = vmatprep.mubr.bf16.mxu0 0
        %1141 = vmatmul.mubr.bf16.gmra.mrb[0].mxu0 %v416
        %v1142 = vpop.f32.mrb[0].mxu0
        %v1143 = vadd.f32 %v806, %v1142
        %v1144 = vpop.f32.mrb[0].mxu0
        %v1145 = vpop.f32.mrb[0].mxu0
        %v1146 = vadd.f32 %v809, %v1145
        %v1147 = vpop.f32.mrb[0].mxu0
        %1148 = vmatprep.mubr.bf16.mxu0 0
        %1149 = vmatmul.mubr.bf16.gmra.mrb[0].mxu0 %v417
        %v1150 = vpop.f32.mrb[0].mxu0
        %v1151 = vadd.f32 %v814, %v1150
        %v1152 = vpop.f32.mrb[0].mxu0
        %v1153 = vpop.f32.mrb[0].mxu0
        %v1154 = vadd.f32 %v817, %v1153
        %v1155 = vpop.f32.mrb[0].mxu0
        %1156 = vmatprep.mubr.bf16.mxu0 0
        %1157 = vmatmul.mubr.bf16.gmra.mrb[0].mxu0 %v418
        %v1158 = vpop.f32.mrb[0].mxu0
        %v1159 = vadd.f32 %v822, %v1158
        %v1160 = vpop.f32.mrb[0].mxu0
        %v1161 = vpop.f32.mrb[0].mxu0
        %v1162 = vadd.f32 %v825, %v1161
        %v1163 = vpop.f32.mrb[0].mxu0
        %1164 = vmatprep.mubr.bf16.mxu0 0
        %1165 = vmatmul.mubr.bf16.gmra.mrb[0].mxu0 %v419
        %v1166 = vpop.f32.mrb[0].mxu0
        %v1167 = vadd.f32 %v830, %v1166
        %v1168 = vpop.f32.mrb[0].mxu0
        %v1169 = vpop.f32.mrb[0].mxu0
        %v1170 = vadd.f32 %v833, %v1169
        %v1171 = vpop.f32.mrb[0].mxu0
        %1172 = vmatprep.mubr.bf16.mxu0 0
        %1173 = vmatmul.mubr.bf16.gmra.mrb[0].mxu0 %v420
        %v1174 = vpop.f32.mrb[0].mxu0
        %v1175 = vadd.f32 %v838, %v1174
        %v1176 = vpop.f32.mrb[0].mxu0
        %v1177 = vpop.f32.mrb[0].mxu0
        %v1178 = vadd.f32 %v841, %v1177
        %v1179 = vpop.f32.mrb[0].mxu0
        %1180 = vmatprep.mubr.bf16.mxu0 0
        %1181 = vmatmul.mubr.bf16.gmra.mrb[0].mxu0 %v421
        %v1182 = vpop.f32.mrb[0].mxu0
        %v1183 = vadd.f32 %v846, %v1182
        %v1184 = vpop.f32.mrb[0].mxu0
        %v1185 = vpop.f32.mrb[0].mxu0
        %v1186 = vadd.f32 %v849, %v1185
        %v1187 = vpop.f32.mrb[0].mxu0
        %1188 = vmatprep.mubr.bf16.mxu0 0
        %1189 = vmatmul.mubr.bf16.gmra.mrb[0].mxu0 %v422
        %v1190 = vpop.f32.mrb[0].mxu0
        %v1191 = vadd.f32 %v854, %v1190
        %v1192 = vpop.f32.mrb[0].mxu0
        %v1193 = vpop.f32.mrb[0].mxu0
        %v1194 = vadd.f32 %v857, %v1193
        %v1195 = vpop.f32.mrb[0].mxu0
        %1196 = vmatprep.mubr.bf16.mxu0 0
        %1197 = vmatmul.mubr.bf16.gmra.mrb[0].mxu0 %v423
        %v1198 = vpop.f32.mrb[0].mxu0
        %v1199 = vadd.f32 %v862, %v1198
        %v1200 = vpop.f32.mrb[0].mxu0
        %v1201 = vpop.f32.mrb[0].mxu0
        %v1202 = vadd.f32 %v865, %v1201
        %v1203 = vpop.f32.mrb[0].mxu0
        %1204 = vmatprep.mubr.bf16.mxu0 0
        %1205 = vmatmul.mubr.bf16.gmra.mrb[0].mxu0 %v424
        %v1206 = vpop.f32.mrb[0].mxu0
        %v1207 = vadd.f32 %v870, %v1206
        %v1208 = vpop.f32.mrb[0].mxu0
        %v1209 = vpop.f32.mrb[0].mxu0
        %v1210 = vadd.f32 %v873, %v1209
        %v1211 = vpop.f32.mrb[0].mxu0
        %1212 = vmatprep.mubr.bf16.mxu0 0
        %1213 = vmatmul.mubr.bf16.gmra.mrb[0].mxu0 %v425
        %v1214 = vpop.f32.mrb[0].mxu0
        %v1215 = vadd.f32 %v878, %v1214
        %v1216 = vpop.f32.mrb[0].mxu0
        %v1217 = vpop.f32.mrb[0].mxu0
        %v1218 = vadd.f32 %v881, %v1217
        %v1219 = vpop.f32.mrb[0].mxu0
        %1220 = vmatprep.mubr.bf16.mxu0 0
        %1221 = vmatmul.mubr.bf16.gmra.mrb[0].mxu0 %v426
        %v1222 = vpop.f32.mrb[0].mxu0
        %v1223 = vadd.f32 %v886, %v1222
        %v1224 = vpop.f32.mrb[0].mxu0
        %v1225 = vpop.f32.mrb[0].mxu0
        %v1226 = vadd.f32 %v889, %v1225
        %v1227 = vpop.f32.mrb[0].mxu0
        %1228 = vdwg.mxu0
        %v1229 = vld [vmem:[%s4] sm:$0x1]
        %v1231 = vlaneseq
        %v1232 = vshrl.u32 %v1231, 7
        %v1233 = vsub.s32 0, %v1232
        %v1234 = vrot.slane %v1229, %v1233
        %v1236 = vadd.f32 %v975, %v1234
        %v1237 = vadd.f32 %v978, %v1234
        %v1238 = vadd.f32 %v983, %v1234
        %v1239 = vadd.f32 %v986, %v1234
        %v1240 = vadd.f32 %v991, %v1234
        %v1241 = vadd.f32 %v994, %v1234
        %v1242 = vadd.f32 %v999, %v1234
        %v1243 = vadd.f32 %v1002, %v1234
        %v1244 = vadd.f32 %v1007, %v1234
        %v1245 = vadd.f32 %v1010, %v1234
        %v1246 = vadd.f32 %v1015, %v1234
        %v1247 = vadd.f32 %v1018, %v1234
        %v1248 = vadd.f32 %v1023, %v1234
        %v1249 = vadd.f32 %v1026, %v1234
        %v1250 = vadd.f32 %v1031, %v1234
        %v1251 = vadd.f32 %v1034, %v1234
        %v1252 = vadd.f32 %v1039, %v1234
        %v1253 = vadd.f32 %v1042, %v1234
        %v1254 = vadd.f32 %v1047, %v1234
        %v1255 = vadd.f32 %v1050, %v1234
        %v1256 = vadd.f32 %v1055, %v1234
        %v1257 = vadd.f32 %v1058, %v1234
        %v1258 = vadd.f32 %v1063, %v1234
        %v1259 = vadd.f32 %v1066, %v1234
        %v1260 = vadd.f32 %v1071, %v1234
        %v1261 = vadd.f32 %v1074, %v1234
        %v1262 = vadd.f32 %v1079, %v1234
        %v1263 = vadd.f32 %v1082, %v1234
        %v1264 = vadd.f32 %v1087, %v1234
        %v1265 = vadd.f32 %v1090, %v1234
        %v1266 = vadd.f32 %v1095, %v1234
        %v1267 = vadd.f32 %v1098, %v1234
        %v1268 = vadd.f32 %v1103, %v1234
        %v1269 = vadd.f32 %v1106, %v1234
        %v1270 = vadd.f32 %v1111, %v1234
        %v1271 = vadd.f32 %v1114, %v1234
        %v1272 = vadd.f32 %v1119, %v1234
        %v1273 = vadd.f32 %v1122, %v1234
        %v1274 = vadd.f32 %v1127, %v1234
        %v1275 = vadd.f32 %v1130, %v1234
        %v1276 = vadd.f32 %v1135, %v1234
        %v1277 = vadd.f32 %v1138, %v1234
        %v1278 = vadd.f32 %v1143, %v1234
        %v1279 = vadd.f32 %v1146, %v1234
        %v1280 = vadd.f32 %v1151, %v1234
        %v1281 = vadd.f32 %v1154, %v1234
        %v1282 = vadd.f32 %v1159, %v1234
        %v1283 = vadd.f32 %v1162, %v1234
        %v1284 = vadd.f32 %v1167, %v1234
        %v1285 = vadd.f32 %v1170, %v1234
        %v1286 = vadd.f32 %v1175, %v1234
        %v1287 = vadd.f32 %v1178, %v1234
        %v1288 = vadd.f32 %v1183, %v1234
        %v1289 = vadd.f32 %v1186, %v1234
        %v1290 = vadd.f32 %v1191, %v1234
        %v1291 = vadd.f32 %v1194, %v1234
        %v1292 = vadd.f32 %v1199, %v1234
        %v1293 = vadd.f32 %v1202, %v1234
        %v1294 = vadd.f32 %v1207, %v1234
        %v1295 = vadd.f32 %v1210, %v1234
        %v1296 = vadd.f32 %v1215, %v1234
        %v1297 = vadd.f32 %v1218, %v1234
        %v1298 = vadd.f32 %v1223, %v1234
        %v1299 = vadd.f32 %v1226, %v1234
        %1300 = vst [vmem:[%s298] sm:$0xff] %v1236
        %1301 = vst [vmem:[%s298 + $0x8] sm:$0xff] %v1237
        %1302 = vst [vmem:[%s298 + $0x10] sm:$0xff] %v1238
        %1303 = vst [vmem:[%s298 + $0x18] sm:$0xff] %v1239
        %1304 = vst [vmem:[%s298 + $0x20] sm:$0xff] %v1240
        %1305 = vst [vmem:[%s298 + $0x28] sm:$0xff] %v1241
        %1306 = vst [vmem:[%s298 + $0x30] sm:$0xff] %v1242
        %1307 = vst [vmem:[%s298 + $0x38] sm:$0xff] %v1243
        %1308 = vst [vmem:[%s298 + $0x40] sm:$0xff] %v1244
        %1309 = vst [vmem:[%s298 + $0x48] sm:$0xff] %v1245
        %1310 = vst [vmem:[%s298 + $0x50] sm:$0xff] %v1246
        %1311 = vst [vmem:[%s298 + $0x58] sm:$0xff] %v1247
        %1312 = vst [vmem:[%s298 + $0x60] sm:$0xff] %v1248
        %1313 = vst [vmem:[%s298 + $0x68] sm:$0xff] %v1249
        %1314 = vst [vmem:[%s298 + $0x70] sm:$0xff] %v1250
        %1315 = vst [vmem:[%s298 + $0x78] sm:$0xff] %v1251
        %1316 = vst [vmem:[%s298 + $0x80] sm:$0xff] %v1252
        %1317 = vst [vmem:[%s298 + $0x88] sm:$0xff] %v1253
        %1318 = vst [vmem:[%s298 + $0x90] sm:$0xff] %v1254
        %1319 = vst [vmem:[%s298 + $0x98] sm:$0xff] %v1255
        %1320 = vst [vmem:[%s298 + $0xa0] sm:$0xff] %v1256
        %1321 = vst [vmem:[%s298 + $0xa8] sm:$0xff] %v1257
        %1322 = vst [vmem:[%s298 + $0xb0] sm:$0xff] %v1258
        %1323 = vst [vmem:[%s298 + $0xb8] sm:$0xff] %v1259
        %1324 = vst [vmem:[%s298 + $0xc0] sm:$0xff] %v1260
        %1325 = vst [vmem:[%s298 + $0xc8] sm:$0xff] %v1261
        %1326 = vst [vmem:[%s298 + $0xd0] sm:$0xff] %v1262
        %1327 = vst [vmem:[%s298 + $0xd8] sm:$0xff] %v1263
        %1328 = vst [vmem:[%s298 + $0xe0] sm:$0xff] %v1264
        %1329 = vst [vmem:[%s298 + $0xe8] sm:$0xff] %v1265
        %1330 = vst [vmem:[%s298 + $0xf0] sm:$0xff] %v1266
        %1331 = vst [vmem:[%s298 + $0xf8] sm:$0xff] %v1267
        %1332 = vst [vmem:[%s298 + $0x100] sm:$0xff] %v1268
        %1333 = vst [vmem:[%s298 + $0x108] sm:$0xff] %v1269
        %1334 = vst [vmem:[%s298 + $0x110] sm:$0xff] %v1270
        %1335 = vst [vmem:[%s298 + $0x118] sm:$0xff] %v1271
        %1336 = vst [vmem:[%s298 + $0x120] sm:$0xff] %v1272
        %1337 = vst [vmem:[%s298 + $0x128] sm:$0xff] %v1273
        %1338 = vst [vmem:[%s298 + $0x130] sm:$0xff] %v1274
        %1339 = vst [vmem:[%s298 + $0x138] sm:$0xff] %v1275
        %1340 = vst [vmem:[%s298 + $0x140] sm:$0xff] %v1276
        %1341 = vst [vmem:[%s298 + $0x148] sm:$0xff] %v1277
        %1342 = vst [vmem:[%s298 + $0x150] sm:$0xff] %v1278
        %1343 = vst [vmem:[%s298 + $0x158] sm:$0xff] %v1279
        %1344 = vst [vmem:[%s298 + $0x160] sm:$0xff] %v1280
        %1345 = vst [vmem:[%s298 + $0x168] sm:$0xff] %v1281
        %1346 = vst [vmem:[%s298 + $0x170] sm:$0xff] %v1282
        %1347 = vst [vmem:[%s298 + $0x178] sm:$0xff] %v1283
        %1348 = vst [vmem:[%s298 + $0x180] sm:$0xff] %v1284
        %1349 = vst [vmem:[%s298 + $0x188] sm:$0xff] %v1285
        %1350 = vst [vmem:[%s298 + $0x190] sm:$0xff] %v1286
        %1351 = vst [vmem:[%s298 + $0x198] sm:$0xff] %v1287
        %1352 = vst [vmem:[%s298 + $0x1a0] sm:$0xff] %v1288
        %1353 = vst [vmem:[%s298 + $0x1a8] sm:$0xff] %v1289
        %1354 = vst [vmem:[%s298 + $0x1b0] sm:$0xff] %v1290
        %1355 = vst [vmem:[%s298 + $0x1b8] sm:$0xff] %v1291
        %1356 = vst [vmem:[%s298 + $0x1c0] sm:$0xff] %v1292
        %1357 = vst [vmem:[%s298 + $0x1c8] sm:$0xff] %v1293
        %1358 = vst [vmem:[%s298 + $0x1d0] sm:$0xff] %v1294
        %1359 = vst [vmem:[%s298 + $0x1d8] sm:$0xff] %v1295
        %1360 = vst [vmem:[%s298 + $0x1e0] sm:$0xff] %v1296
        %1361 = vst [vmem:[%s298 + $0x1e8] sm:$0xff] %v1297
        %1362 = vst [vmem:[%s298 + $0x1f0] sm:$0xff] %v1298
        %1363 = vst [vmem:[%s298 + $0x1f8] sm:$0xff] %v1299
        %s1364 = sand.u32 %s170, 1
        %s1365 = scalar_lea.sflag [#allocation3], %s1364
        %s1366 = sand.u32 %s170, 1
        %s1367 = smul.addr %s1366, 512
        %s1368 = scalar_lea.vmem [#allocation2], %s1367
        // Predicated region
        $region41: #{sagate_pallas.3} parent=39 // pred_check
          %p1369 = pneg %p180
        $region42: #{sagate_pallas.3} parent=39 // pred_check_branch
          %1371 = sbr.rel (%p1369) target = $region44
        $region43: #{sagate_pallas.3} parent=39 // pred_region
          %s1372 = smul.u32 64, %s24
          %s1374 = ssub.s32 8192, 8192
          %1375 = vsyncadd %s1365, %s1374
          %s1376 = smul.addr %s23, 128
          %s1377 = sadd.s32 %s1372, %s1376
          %s1378 = smul.addr %s1377, 128
          %s1379 = scalar_lea.hbm %s5, %s1378
          %s1380 = sshll.u32 %s1368, 4
          %s1381 = int_to_ptr.vmem [resolvable:$true] %s1380
          %1386 = dma.vmem_to_hbm [thread:$0]  %s1381, 8192, %s1379, %s1365, 128, 128, 8
        $region44: #{sagate_pallas.3} parent=39 // pred_fallthru
          _
      $region40: #{sagate_pallas.3} parent=5 // pred_fallthru
        _
      %p1387 = scmp.le.s32.totalorder 2, %s14
      // Predicated region
      $region45: #{sagate_pallas.3} parent=5 // pred_check
        %p1388 = pneg %p1387
      $region46: #{sagate_pallas.3} parent=5 // pred_check_branch
        %1390 = sbr.rel (%p1388) target = $region48
      $region47: #{sagate_pallas.3} parent=5 // pred_region
        %s1391 = ssub.s32 %s14, 2
        // Predicated region
        $region49: #{sagate_pallas.3} parent=47 // pred_check
          %p1392 = pneg %p186
        $region50: #{sagate_pallas.3} parent=47 // pred_check_branch
          %1394 = sbr.rel (%p1392) target = $region52
        $region51: #{sagate_pallas.3} parent=47 // pred_region
          %s1395 = sand.u32 %s171, 1
          %s1396 = scalar_lea.sflag [#allocation3], %s1395
          %s1397 = sand.u32 %s171, 1
          %s1398 = smul.addr %s1397, 512
          %s1399 = scalar_lea.vmem [#allocation2], %s1398
          %1400 = dma.done %s1396, 8192
        $region52: #{sagate_pallas.3} parent=47 // pred_fallthru
          _
      $region48: #{sagate_pallas.3} parent=5 // pred_fallthru
        _
    $region6: #{sagate_pallas.3} parent=1 // loop_footer
      %s18 = sadd.s32 1, %s14
    $region7: #{sagate_pallas.3} parent=1 // loop_footer_branch
      %13 = sbr.rel target = $region3
    $region8: #{sagate_pallas.3} parent=1 // loop_exit
      _
    %1401 = vsyncpa [#allocation3], 1
    %s1402 = scalar_lea.sflag [#allocation3], 1
    %1403 = vsyncpa %s1402, 1

</llo_original>
